<compile_context>
chip_gen: v7x
topology: tpu7x:2x2x1
jax: 0.10.0
libtpu: 0.0.40
codegen_flags: <defaults>
</compile_context>

<pallas_src>
import functools

import jax
import jax.numpy as jnp
from jax.experimental import pallas as pl
from jax.experimental.pallas import tpu as pltpu

NEG_SLOPE = 0.2   # GATv2Conv default negative_slope
LN_EPS = 1e-5     # PyG LayerNorm default eps


# ---------------------------------------------------------------------------
# Fused Pallas kernel: the full GAT stack (all layers) in one launch.
# ---------------------------------------------------------------------------
def make_gat_stack_kernel(num_layers, heads, c):
    hc = heads * c

    def kernel(*refs):
        # refs = (x, adj, [w, b, att, bias, lnw, lnb] * num_layers, out)
        x_ref, adj_ref = refs[0], refs[1]
        out_ref = refs[-1]

        x = x_ref[...]                                      # [N, Din0] f32
        adj = adj_ref[...]                                  # [N, N]    f32 (0/1)
        n = x.shape[0]

        for l in range(num_layers):
            w_ref, b_ref, att_ref, bias_ref, lnw_ref, lnb_ref = \
                refs[2 + 6 * l: 2 + 6 * (l + 1)]

            # One lane-dense projection for all heads of lin_l and lin_r:
            # W = [W_l(h=0..H-1) | W_r(h=0..H-1)], shape [Din, 2*H*C] (= 256 lanes).
            proj = jnp.dot(x, w_ref[...],
                           preferred_element_type=jnp.float32) + b_ref[...]
            xl_all = proj[:, :hc]                           # [N, H*C]
            xr_all = proj[:, hc:]                           # [N, H*C]

            acc = jnp.zeros((n, c), jnp.float32)
            for h in range(heads):                          # static unroll, no grid
                xl = xl_all[:, h * c:(h + 1) * c]           # [N, C]
                xr = xr_all[:, h * c:(h + 1) * c]           # [N, C]
                att = att_ref[h:h + 1, :]                   # [1, C]

                # e[i, j] = att . leaky_relu(x_r[i] + x_l[j])  (i = dst, j = src)
                s = xr[:, None, :] + xl[None, :, :]         # [N, N, C]
                s = jnp.where(s >= 0, s, NEG_SLOPE * s)     # leaky_relu (f32)
                e = jnp.sum(s * att[None, :, :], axis=-1)   # [N, N]

                # Masked softmax over sources (f32; -1e30 fill is f32-safe).
                e = jnp.where(adj > 0, e, jnp.float32(-1e30))
                m = jnp.max(e, axis=1, keepdims=True)
                p = jnp.exp(e - m) * adj
                denom = jnp.sum(p, axis=1, keepdims=True) + jnp.float32(1e-16)

                # Deferred normalization: aggregate first (MXU), then scale the
                # [N, C] result by 1/denom ([N, 1]) instead of dividing alpha[N, N].
                agg = jnp.dot(p, xl, preferred_element_type=jnp.float32)  # [N, C]
                inv = pl.reciprocal(denom, approx=False)    # exact; approx=True OK at scale
                acc = acc + agg * inv
                # NOTE: attention dropout is identity in eval mode.

            # concat=False -> mean over heads, then conv bias.
            out = acc / jnp.float32(heads) + bias_ref[...]  # [N, C]

            # PyG LayerNorm, mode='graph', batch=None: whole-graph mean / std,
            # denominator (std + eps), then affine.
            mu = jnp.mean(out)
            xc = out - mu
            std = jnp.sqrt(jnp.mean(xc * xc))
            out = xc / (std + jnp.float32(LN_EPS))
            out = out * lnw_ref[...] + lnb_ref[...]
            # NOTE: feature Dropout is identity in eval mode.

            x = out                                          # stays in VMEM/vregs

        out_ref[...] = x.astype(out_ref.dtype)

    return kernel


def gat_forward(x, adj, layer_params):
    """Entire GAT stack (all layers fused) in a single pallas_call."""
    n, _ = x.shape
    heads, c = layer_params[0]["att"].shape
    num_layers = len(layer_params)

    def full(shape):
        return pl.BlockSpec(shape, lambda i, _s=len(shape): (0,) * _s)

    in_specs = [full(x.shape), full(adj.shape)]
    args = [x, adj]
    for p in layer_params:
        for name in ("w", "b", "att", "bias", "lnw", "lnb"):
            arr = p[name]
            in_specs.append(full(arr.shape))
            args.append(arr)

    grid_spec = pltpu.PrefetchScalarGridSpec(
        num_scalar_prefetch=0,
        grid=(1,),
        in_specs=in_specs,
        out_specs=pl.BlockSpec((n, c), lambda i: (0, 0)),
        scratch_shapes=[],
    )
    return pl.pallas_call(
        make_gat_stack_kernel(num_layers, heads, c),
        out_shape=jax.ShapeDtypeStruct((n, c), jnp.float32),
        grid_spec=grid_spec,
        compiler_params=pltpu.CompilerParams(
            dimension_semantics=("arbitrary",)),
    )(*args)


# ---------------------------------------------------------------------------
# Pure-JAX reference (same math, same packed parameters) for correctness.
# ---------------------------------------------------------------------------
def gat_forward_ref(x, adj, layer_params):
    heads, c = layer_params[0]["att"].shape
    hc = heads * c
    for p in layer_params:
        proj = x @ p["w"] + p["b"]
        xl_all, xr_all = proj[:, :hc], proj[:, hc:]
        acc = 0.0
        for h in range(heads):
            xl = xl_all[:, h * c:(h + 1) * c]
            xr = xr_all[:, h * c:(h + 1) * c]
            s = xr[:, None, :] + xl[None, :, :]
            s = jnp.where(s >= 0, s, NEG_SLOPE * s)
            e = jnp.sum(s * p["att"][h][None, None, :], axis=-1)
            e = jnp.where(adj > 0, e, -1e30)
            w_ = jnp.exp(e - e.max(axis=1, keepdims=True)) * adj
            alpha = w_ / (w_.sum(axis=1, keepdims=True) + 1e-16)
            acc = acc + alpha @ xl
        out = acc / heads + p["bias"]
        mu = out.mean()
        xc = out - mu
        out = xc / (jnp.sqrt((xc * xc).mean()) + LN_EPS)
        x = out * p["lnw"] + p["lnb"]
    return x


# ---------------------------------------------------------------------------
# Parameter / input construction (deterministic, synthetic).
# ---------------------------------------------------------------------------
def glorot(key, shape, fan_in, fan_out):
    lim = (6.0 / (fan_in + fan_out)) ** 0.5
    return jax.random.uniform(key, shape, jnp.float32, -lim, lim)


def init_layer_params(key, din, c, heads):
    # Packed weight: [Din, 2*H*C] = [ W_l(h0..hH-1) | W_r(h0..hH-1) ].
    ks = jax.random.split(key, 4)
    hc = heads * c
    return dict(
        w=glorot(ks[0], (din, 2 * hc), din, heads * c),
        b=0.01 * jax.random.normal(ks[1], (1, 2 * hc), jnp.float32),
        att=glorot(ks[2], (heads, c), c, c),
        bias=0.01 * jax.random.normal(ks[3], (1, c), jnp.float32),
        lnw=jnp.ones((1, c), jnp.float32),   # PyG LayerNorm init
        lnb=jnp.zeros((1, c), jnp.float32),
    )


def edges_to_adj(edge_index, num_nodes):
    # adj[dst, src] = 1 ; remove_self_loops then add_self_loops (PyG behaviour).
    src, dst = edge_index
    adj = jnp.zeros((num_nodes, num_nodes), jnp.float32).at[dst, src].set(1.0)
    eye = jnp.eye(num_nodes, dtype=jnp.float32)
    return adj * (1.0 - eye) + eye


if __name__ == "__main__":
    # GAT(node_dim=8, edge_dim=4, layers=2, hidden_channels=32,
    #     attention_heads=4, attention_dropouts=0.1, dropouts=0.1)
    N, NODE_DIM, HIDDEN, HEADS, LAYERS, E = 16, 8, 32, 4, 2, 40
    # TODO(synk): edge_dim / lin_edge parameters are unused because GAT.forward
    # never passes edge_attr; dropouts are eval-mode identities.

    key = jax.random.PRNGKey(0)
    kx, ksrc, kdst, kp = jax.random.split(key, 4)

    x = jax.random.normal(kx, (N, NODE_DIM), jnp.float32)
    src = jax.random.randint(ksrc, (E,), 0, N)
    dst = jax.random.randint(kdst, (E,), 0, N)
    edge_index = jnp.stack([src, dst])            # [2, E], PyG convention
    adj = edges_to_adj(edge_index, N)

    layer_keys = jax.random.split(kp, LAYERS)
    layer_params = [
        init_layer_params(layer_keys[i],
                          NODE_DIM if i == 0 else HIDDEN,
                          HIDDEN, HEADS)
        for i in range(LAYERS)
    ]

    out = gat_forward(x, adj, layer_params)
    out = jax.block_until_ready(out)

    ref = gat_forward_ref(x, adj, layer_params)
    assert out.shape == (N, HIDDEN)
    assert jnp.all(jnp.isfinite(out))
    assert jnp.allclose(out, ref, rtol=1e-4, atol=1e-4), "mismatch vs JAX reference"

    print("KERNEL_OK")
</pallas_src>

<mosaic_0001>
module attributes {stable_mosaic.version = 11 : i64} {
  func.func @kernel(%arg0: i32, %arg1: memref<16x8xf32, #tpu.memory_space<vmem>>, %arg2: memref<16x16xf32, #tpu.memory_space<vmem>>, %arg3: memref<8x256xf32, #tpu.memory_space<vmem>>, %arg4: memref<1x256xf32, #tpu.memory_space<vmem>>, %arg5: memref<4x32xf32, #tpu.memory_space<vmem>>, %arg6: memref<1x32xf32, #tpu.memory_space<vmem>>, %arg7: memref<1x32xf32, #tpu.memory_space<vmem>>, %arg8: memref<1x32xf32, #tpu.memory_space<vmem>>, %arg9: memref<32x256xf32, #tpu.memory_space<vmem>>, %arg10: memref<1x256xf32, #tpu.memory_space<vmem>>, %arg11: memref<4x32xf32, #tpu.memory_space<vmem>>, %arg12: memref<1x32xf32, #tpu.memory_space<vmem>>, %arg13: memref<1x32xf32, #tpu.memory_space<vmem>>, %arg14: memref<1x32xf32, #tpu.memory_space<vmem>>, %arg15: memref<16x32xf32, #tpu.memory_space<vmem>>) attributes {dimension_semantics = [#tpu.dimension_semantics<arbitrary>], iteration_bounds = array<i64: 1>, scalar_prefetch = 0 : i64, scratch_operands = 0 : i64, tpu.core_type = #tpu.core_type<tc>, window_params = [{pipeline_mode = #tpu.pipeline_mode<synchronous>, transform_indices = @transform_0, window_bounds = array<i64: 16, 8>}, {pipeline_mode = #tpu.pipeline_mode<synchronous>, transform_indices = @transform_1, window_bounds = array<i64: 16, 16>}, {pipeline_mode = #tpu.pipeline_mode<synchronous>, transform_indices = @transform_2, window_bounds = array<i64: 8, 256>}, {pipeline_mode = #tpu.pipeline_mode<synchronous>, transform_indices = @transform_3, window_bounds = array<i64: 1, 256>}, {pipeline_mode = #tpu.pipeline_mode<synchronous>, transform_indices = @transform_4, window_bounds = array<i64: 4, 32>}, {pipeline_mode = #tpu.pipeline_mode<synchronous>, transform_indices = @transform_5, window_bounds = array<i64: 1, 32>}, {pipeline_mode = #tpu.pipeline_mode<synchronous>, transform_indices = @transform_6, window_bounds = array<i64: 1, 32>}, {pipeline_mode = #tpu.pipeline_mode<synchronous>, transform_indices = @transform_7, window_bounds = array<i64: 1, 32>}, {pipeline_mode = #tpu.pipeline_mode<synchronous>, transform_indices = @transform_8, window_bounds = array<i64: 32, 256>}, {pipeline_mode = #tpu.pipeline_mode<synchronous>, transform_indices = @transform_9, window_bounds = array<i64: 1, 256>}, {pipeline_mode = #tpu.pipeline_mode<synchronous>, transform_indices = @transform_10, window_bounds = array<i64: 4, 32>}, {pipeline_mode = #tpu.pipeline_mode<synchronous>, transform_indices = @transform_11, window_bounds = array<i64: 1, 32>}, {pipeline_mode = #tpu.pipeline_mode<synchronous>, transform_indices = @transform_12, window_bounds = array<i64: 1, 32>}, {pipeline_mode = #tpu.pipeline_mode<synchronous>, transform_indices = @transform_13, window_bounds = array<i64: 1, 32>}, {pipeline_mode = #tpu.pipeline_mode<synchronous>, transform_indices = @transform_14, window_bounds = array<i64: 16, 32>}]} {
    %c0 = arith.constant 0 : index
    %c0_0 = arith.constant 0 : index
    %0 = vector.load %arg1[%c0, %c0_0] : memref<16x8xf32, #tpu.memory_space<vmem>>, vector<16x8xf32>
    %c0_1 = arith.constant 0 : index
    %c0_2 = arith.constant 0 : index
    %1 = vector.load %arg2[%c0_1, %c0_2] : memref<16x16xf32, #tpu.memory_space<vmem>>, vector<16x16xf32>
    %c0_3 = arith.constant 0 : index
    %c0_4 = arith.constant 0 : index
    %2 = vector.load %arg3[%c0_3, %c0_4] : memref<8x256xf32, #tpu.memory_space<vmem>>, vector<8x256xf32>
    %cst = arith.constant dense<0.000000e+00> : vector<16x256xf32>
    %3 = tpu.matmul %0, %2, %cst {dimension_numbers = #tpu.dot_dimension_numbers<[1], [0], [0], [1], [0, 0, 1, 1], [], []>} : vector<16x8xf32>, vector<8x256xf32>, vector<16x256xf32> -> vector<16x256xf32>
    %c0_5 = arith.constant 0 : index
    %c0_6 = arith.constant 0 : index
    %4 = vector.load %arg4[%c0_5, %c0_6] : memref<1x256xf32, #tpu.memory_space<vmem>>, vector<1x256xf32>
    %5 = vector.broadcast %4 : vector<1x256xf32> to vector<16x256xf32>
    %6 = arith.addf %3, %5 : vector<16x256xf32>
    %7 = vector.extract_strided_slice %6 {offsets = [0, 0], sizes = [16, 128], strides = [1, 1]} : vector<16x256xf32> to vector<16x128xf32>
    %8 = vector.extract_strided_slice %6 {offsets = [0, 128], sizes = [16, 128], strides = [1, 1]} : vector<16x256xf32> to vector<16x128xf32>
    %cst_7 = arith.constant 0.000000e+00 : f32
    %9 = vector.broadcast %cst_7 : f32 to vector<16x32xf32>
    %10 = vector.extract_strided_slice %7 {offsets = [0, 0], sizes = [16, 32], strides = [1, 1]} : vector<16x128xf32> to vector<16x32xf32>
    %11 = vector.extract_strided_slice %8 {offsets = [0, 0], sizes = [16, 32], strides = [1, 1]} : vector<16x128xf32> to vector<16x32xf32>
    %c0_8 = arith.constant 0 : index
    %c0_9 = arith.constant 0 : index
    %12 = vector.load %arg5[%c0_8, %c0_9] : memref<4x32xf32, #tpu.memory_space<vmem>>, vector<1x32xf32>
    %13 = vector.shape_cast %11 : vector<16x32xf32> to vector<16x1x32xf32>
    %14 = vector.shape_cast %10 : vector<16x32xf32> to vector<1x16x32xf32>
    %15 = vector.broadcast %13 : vector<16x1x32xf32> to vector<16x16x32xf32>
    %16 = vector.broadcast %14 : vector<1x16x32xf32> to vector<16x16x32xf32>
    %17 = arith.addf %15, %16 : vector<16x16x32xf32>
    %cst_10 = arith.constant 0.000000e+00 : f32
    %18 = vector.broadcast %cst_10 : f32 to vector<16x16x32xf32>
    %19 = arith.cmpf oge, %17, %18 : vector<16x16x32xf32>
    %cst_11 = arith.constant 2.000000e-01 : f32
    %20 = vector.broadcast %cst_11 : f32 to vector<16x16x32xf32>
    %21 = arith.mulf %20, %17 : vector<16x16x32xf32>
    %22 = arith.select %19, %17, %21 : vector<16x16x32xi1>, vector<16x16x32xf32>
    %23 = vector.shape_cast %12 : vector<1x32xf32> to vector<1x1x32xf32>
    %24 = vector.broadcast %23 : vector<1x1x32xf32> to vector<16x16x32xf32>
    %25 = arith.mulf %22, %24 : vector<16x16x32xf32>
    %cst_12 = arith.constant dense<0.000000e+00> : vector<16x16xf32>
    %26 = vector.multi_reduction <add>, %25, %cst_12 [2] : vector<16x16x32xf32> to vector<16x16xf32>
    %cst_13 = arith.constant 0.000000e+00 : f32
    %27 = vector.broadcast %cst_13 : f32 to vector<16x16xf32>
    %28 = arith.cmpf ogt, %1, %27 : vector<16x16xf32>
    %cst_14 = arith.constant -1.000000e+30 : f32
    %29 = vector.broadcast %cst_14 : f32 to vector<16x16xf32>
    %30 = arith.select %28, %26, %29 : vector<16x16xi1>, vector<16x16xf32>
    %cst_15 = arith.constant dense<0xFF800000> : vector<16xf32>
    %31 = vector.multi_reduction <maximumf>, %30, %cst_15 [1] : vector<16x16xf32> to vector<16xf32>
    %32 = vector.shape_cast %31 : vector<16xf32> to vector<16x1xf32>
    %33 = vector.broadcast %32 : vector<16x1xf32> to vector<16x16xf32>
    %34 = arith.subf %30, %33 : vector<16x16xf32>
    %35 = math.exp %34 : vector<16x16xf32>
    %36 = arith.mulf %35, %1 : vector<16x16xf32>
    %cst_16 = arith.constant dense<0.000000e+00> : vector<16xf32>
    %37 = vector.multi_reduction <add>, %36, %cst_16 [1] : vector<16x16xf32> to vector<16xf32>
    %38 = vector.shape_cast %37 : vector<16xf32> to vector<16x1xf32>
    %cst_17 = arith.constant 1.000000e-16 : f32
    %39 = vector.broadcast %cst_17 : f32 to vector<16x1xf32>
    %40 = arith.addf %38, %39 : vector<16x1xf32>
    %cst_18 = arith.constant dense<0.000000e+00> : vector<16x32xf32>
    %41 = tpu.matmul %36, %10, %cst_18 {dimension_numbers = #tpu.dot_dimension_numbers<[1], [0], [0], [1], [0, 0, 1, 1], [], []>} : vector<16x16xf32>, vector<16x32xf32>, vector<16x32xf32> -> vector<16x32xf32>
    %42 = tpu.reciprocal %40 : vector<16x1xf32> -> vector<16x1xf32>
    %43 = vector.broadcast %42 : vector<16x1xf32> to vector<16x32xf32>
    %44 = arith.mulf %41, %43 : vector<16x32xf32>
    %45 = arith.addf %9, %44 : vector<16x32xf32>
    %46 = vector.extract_strided_slice %7 {offsets = [0, 32], sizes = [16, 32], strides = [1, 1]} : vector<16x128xf32> to vector<16x32xf32>
    %47 = vector.extract_strided_slice %8 {offsets = [0, 32], sizes = [16, 32], strides = [1, 1]} : vector<16x128xf32> to vector<16x32xf32>
    %c1 = arith.constant 1 : index
    %c0_19 = arith.constant 0 : index
    %48 = vector.load %arg5[%c1, %c0_19] : memref<4x32xf32, #tpu.memory_space<vmem>>, vector<1x32xf32>
    %49 = vector.shape_cast %47 : vector<16x32xf32> to vector<16x1x32xf32>
    %50 = vector.shape_cast %46 : vector<16x32xf32> to vector<1x16x32xf32>
    %51 = vector.broadcast %49 : vector<16x1x32xf32> to vector<16x16x32xf32>
    %52 = vector.broadcast %50 : vector<1x16x32xf32> to vector<16x16x32xf32>
    %53 = arith.addf %51, %52 : vector<16x16x32xf32>
    %cst_20 = arith.constant 0.000000e+00 : f32
    %54 = vector.broadcast %cst_20 : f32 to vector<16x16x32xf32>
    %55 = arith.cmpf oge, %53, %54 : vector<16x16x32xf32>
    %cst_21 = arith.constant 2.000000e-01 : f32
    %56 = vector.broadcast %cst_21 : f32 to vector<16x16x32xf32>
    %57 = arith.mulf %56, %53 : vector<16x16x32xf32>
    %58 = arith.select %55, %53, %57 : vector<16x16x32xi1>, vector<16x16x32xf32>
    %59 = vector.shape_cast %48 : vector<1x32xf32> to vector<1x1x32xf32>
    %60 = vector.broadcast %59 : vector<1x1x32xf32> to vector<16x16x32xf32>
    %61 = arith.mulf %58, %60 : vector<16x16x32xf32>
    %cst_22 = arith.constant dense<0.000000e+00> : vector<16x16xf32>
    %62 = vector.multi_reduction <add>, %61, %cst_22 [2] : vector<16x16x32xf32> to vector<16x16xf32>
    %cst_23 = arith.constant 0.000000e+00 : f32
    %63 = vector.broadcast %cst_23 : f32 to vector<16x16xf32>
    %64 = arith.cmpf ogt, %1, %63 : vector<16x16xf32>
    %cst_24 = arith.constant -1.000000e+30 : f32
    %65 = vector.broadcast %cst_24 : f32 to vector<16x16xf32>
    %66 = arith.select %64, %62, %65 : vector<16x16xi1>, vector<16x16xf32>
    %cst_25 = arith.constant dense<0xFF800000> : vector<16xf32>
    %67 = vector.multi_reduction <maximumf>, %66, %cst_25 [1] : vector<16x16xf32> to vector<16xf32>
    %68 = vector.shape_cast %67 : vector<16xf32> to vector<16x1xf32>
    %69 = vector.broadcast %68 : vector<16x1xf32> to vector<16x16xf32>
    %70 = arith.subf %66, %69 : vector<16x16xf32>
    %71 = math.exp %70 : vector<16x16xf32>
    %72 = arith.mulf %71, %1 : vector<16x16xf32>
    %cst_26 = arith.constant dense<0.000000e+00> : vector<16xf32>
    %73 = vector.multi_reduction <add>, %72, %cst_26 [1] : vector<16x16xf32> to vector<16xf32>
    %74 = vector.shape_cast %73 : vector<16xf32> to vector<16x1xf32>
    %cst_27 = arith.constant 1.000000e-16 : f32
    %75 = vector.broadcast %cst_27 : f32 to vector<16x1xf32>
    %76 = arith.addf %74, %75 : vector<16x1xf32>
    %cst_28 = arith.constant dense<0.000000e+00> : vector<16x32xf32>
    %77 = tpu.matmul %72, %46, %cst_28 {dimension_numbers = #tpu.dot_dimension_numbers<[1], [0], [0], [1], [0, 0, 1, 1], [], []>} : vector<16x16xf32>, vector<16x32xf32>, vector<16x32xf32> -> vector<16x32xf32>
    %78 = tpu.reciprocal %76 : vector<16x1xf32> -> vector<16x1xf32>
    %79 = vector.broadcast %78 : vector<16x1xf32> to vector<16x32xf32>
    %80 = arith.mulf %77, %79 : vector<16x32xf32>
    %81 = arith.addf %45, %80 : vector<16x32xf32>
    %82 = vector.extract_strided_slice %7 {offsets = [0, 64], sizes = [16, 32], strides = [1, 1]} : vector<16x128xf32> to vector<16x32xf32>
    %83 = vector.extract_strided_slice %8 {offsets = [0, 64], sizes = [16, 32], strides = [1, 1]} : vector<16x128xf32> to vector<16x32xf32>
    %c2 = arith.constant 2 : index
    %c0_29 = arith.constant 0 : index
    %84 = vector.load %arg5[%c2, %c0_29] : memref<4x32xf32, #tpu.memory_space<vmem>>, vector<1x32xf32>
    %85 = vector.shape_cast %83 : vector<16x32xf32> to vector<16x1x32xf32>
    %86 = vector.shape_cast %82 : vector<16x32xf32> to vector<1x16x32xf32>
    %87 = vector.broadcast %85 : vector<16x1x32xf32> to vector<16x16x32xf32>
    %88 = vector.broadcast %86 : vector<1x16x32xf32> to vector<16x16x32xf32>
    %89 = arith.addf %87, %88 : vector<16x16x32xf32>
    %cst_30 = arith.constant 0.000000e+00 : f32
    %90 = vector.broadcast %cst_30 : f32 to vector<16x16x32xf32>
    %91 = arith.cmpf oge, %89, %90 : vector<16x16x32xf32>
    %cst_31 = arith.constant 2.000000e-01 : f32
    %92 = vector.broadcast %cst_31 : f32 to vector<16x16x32xf32>
    %93 = arith.mulf %92, %89 : vector<16x16x32xf32>
    %94 = arith.select %91, %89, %93 : vector<16x16x32xi1>, vector<16x16x32xf32>
    %95 = vector.shape_cast %84 : vector<1x32xf32> to vector<1x1x32xf32>
    %96 = vector.broadcast %95 : vector<1x1x32xf32> to vector<16x16x32xf32>
    %97 = arith.mulf %94, %96 : vector<16x16x32xf32>
    %cst_32 = arith.constant dense<0.000000e+00> : vector<16x16xf32>
    %98 = vector.multi_reduction <add>, %97, %cst_32 [2] : vector<16x16x32xf32> to vector<16x16xf32>
    %cst_33 = arith.constant 0.000000e+00 : f32
    %99 = vector.broadcast %cst_33 : f32 to vector<16x16xf32>
    %100 = arith.cmpf ogt, %1, %99 : vector<16x16xf32>
    %cst_34 = arith.constant -1.000000e+30 : f32
    %101 = vector.broadcast %cst_34 : f32 to vector<16x16xf32>
    %102 = arith.select %100, %98, %101 : vector<16x16xi1>, vector<16x16xf32>
    %cst_35 = arith.constant dense<0xFF800000> : vector<16xf32>
    %103 = vector.multi_reduction <maximumf>, %102, %cst_35 [1] : vector<16x16xf32> to vector<16xf32>
    %104 = vector.shape_cast %103 : vector<16xf32> to vector<16x1xf32>
    %105 = vector.broadcast %104 : vector<16x1xf32> to vector<16x16xf32>
    %106 = arith.subf %102, %105 : vector<16x16xf32>
    %107 = math.exp %106 : vector<16x16xf32>
    %108 = arith.mulf %107, %1 : vector<16x16xf32>
    %cst_36 = arith.constant dense<0.000000e+00> : vector<16xf32>
    %109 = vector.multi_reduction <add>, %108, %cst_36 [1] : vector<16x16xf32> to vector<16xf32>
    %110 = vector.shape_cast %109 : vector<16xf32> to vector<16x1xf32>
    %cst_37 = arith.constant 1.000000e-16 : f32
    %111 = vector.broadcast %cst_37 : f32 to vector<16x1xf32>
    %112 = arith.addf %110, %111 : vector<16x1xf32>
    %cst_38 = arith.constant dense<0.000000e+00> : vector<16x32xf32>
    %113 = tpu.matmul %108, %82, %cst_38 {dimension_numbers = #tpu.dot_dimension_numbers<[1], [0], [0], [1], [0, 0, 1, 1], [], []>} : vector<16x16xf32>, vector<16x32xf32>, vector<16x32xf32> -> vector<16x32xf32>
    %114 = tpu.reciprocal %112 : vector<16x1xf32> -> vector<16x1xf32>
    %115 = vector.broadcast %114 : vector<16x1xf32> to vector<16x32xf32>
    %116 = arith.mulf %113, %115 : vector<16x32xf32>
    %117 = arith.addf %81, %116 : vector<16x32xf32>
    %118 = vector.extract_strided_slice %7 {offsets = [0, 96], sizes = [16, 32], strides = [1, 1]} : vector<16x128xf32> to vector<16x32xf32>
    %119 = vector.extract_strided_slice %8 {offsets = [0, 96], sizes = [16, 32], strides = [1, 1]} : vector<16x128xf32> to vector<16x32xf32>
    %c3 = arith.constant 3 : index
    %c0_39 = arith.constant 0 : index
    %120 = vector.load %arg5[%c3, %c0_39] : memref<4x32xf32, #tpu.memory_space<vmem>>, vector<1x32xf32>
    %121 = vector.shape_cast %119 : vector<16x32xf32> to vector<16x1x32xf32>
    %122 = vector.shape_cast %118 : vector<16x32xf32> to vector<1x16x32xf32>
    %123 = vector.broadcast %121 : vector<16x1x32xf32> to vector<16x16x32xf32>
    %124 = vector.broadcast %122 : vector<1x16x32xf32> to vector<16x16x32xf32>
    %125 = arith.addf %123, %124 : vector<16x16x32xf32>
    %cst_40 = arith.constant 0.000000e+00 : f32
    %126 = vector.broadcast %cst_40 : f32 to vector<16x16x32xf32>
    %127 = arith.cmpf oge, %125, %126 : vector<16x16x32xf32>
    %cst_41 = arith.constant 2.000000e-01 : f32
    %128 = vector.broadcast %cst_41 : f32 to vector<16x16x32xf32>
    %129 = arith.mulf %128, %125 : vector<16x16x32xf32>
    %130 = arith.select %127, %125, %129 : vector<16x16x32xi1>, vector<16x16x32xf32>
    %131 = vector.shape_cast %120 : vector<1x32xf32> to vector<1x1x32xf32>
    %132 = vector.broadcast %131 : vector<1x1x32xf32> to vector<16x16x32xf32>
    %133 = arith.mulf %130, %132 : vector<16x16x32xf32>
    %cst_42 = arith.constant dense<0.000000e+00> : vector<16x16xf32>
    %134 = vector.multi_reduction <add>, %133, %cst_42 [2] : vector<16x16x32xf32> to vector<16x16xf32>
    %cst_43 = arith.constant 0.000000e+00 : f32
    %135 = vector.broadcast %cst_43 : f32 to vector<16x16xf32>
    %136 = arith.cmpf ogt, %1, %135 : vector<16x16xf32>
    %cst_44 = arith.constant -1.000000e+30 : f32
    %137 = vector.broadcast %cst_44 : f32 to vector<16x16xf32>
    %138 = arith.select %136, %134, %137 : vector<16x16xi1>, vector<16x16xf32>
    %cst_45 = arith.constant dense<0xFF800000> : vector<16xf32>
    %139 = vector.multi_reduction <maximumf>, %138, %cst_45 [1] : vector<16x16xf32> to vector<16xf32>
    %140 = vector.shape_cast %139 : vector<16xf32> to vector<16x1xf32>
    %141 = vector.broadcast %140 : vector<16x1xf32> to vector<16x16xf32>
    %142 = arith.subf %138, %141 : vector<16x16xf32>
    %143 = math.exp %142 : vector<16x16xf32>
    %144 = arith.mulf %143, %1 : vector<16x16xf32>
    %cst_46 = arith.constant dense<0.000000e+00> : vector<16xf32>
    %145 = vector.multi_reduction <add>, %144, %cst_46 [1] : vector<16x16xf32> to vector<16xf32>
    %146 = vector.shape_cast %145 : vector<16xf32> to vector<16x1xf32>
    %cst_47 = arith.constant 1.000000e-16 : f32
    %147 = vector.broadcast %cst_47 : f32 to vector<16x1xf32>
    %148 = arith.addf %146, %147 : vector<16x1xf32>
    %cst_48 = arith.constant dense<0.000000e+00> : vector<16x32xf32>
    %149 = tpu.matmul %144, %118, %cst_48 {dimension_numbers = #tpu.dot_dimension_numbers<[1], [0], [0], [1], [0, 0, 1, 1], [], []>} : vector<16x16xf32>, vector<16x32xf32>, vector<16x32xf32> -> vector<16x32xf32>
    %150 = tpu.reciprocal %148 : vector<16x1xf32> -> vector<16x1xf32>
    %151 = vector.broadcast %150 : vector<16x1xf32> to vector<16x32xf32>
    %152 = arith.mulf %149, %151 : vector<16x32xf32>
    %153 = arith.addf %117, %152 : vector<16x32xf32>
    %cst_49 = arith.constant 4.000000e+00 : f32
    %154 = vector.broadcast %cst_49 : f32 to vector<16x32xf32>
    %155 = arith.divf %153, %154 : vector<16x32xf32>
    %c0_50 = arith.constant 0 : index
    %c0_51 = arith.constant 0 : index
    %156 = vector.load %arg6[%c0_50, %c0_51] : memref<1x32xf32, #tpu.memory_space<vmem>>, vector<1x32xf32>
    %157 = vector.broadcast %156 : vector<1x32xf32> to vector<16x32xf32>
    %158 = arith.addf %155, %157 : vector<16x32xf32>
    %159 = vector.shape_cast %158 : vector<16x32xf32> to vector<1x16x32xf32>
    %cst_52 = arith.constant dense<0.000000e+00> : vector<1xf32>
    %160 = vector.multi_reduction <add>, %159, %cst_52 [1, 2] : vector<1x16x32xf32> to vector<1xf32>
    %161 = vector.shape_cast %160 : vector<1xf32> to vector<1x1x1xf32>
    %162 = vector.extract %161[0, 0, 0] : f32 from vector<1x1x1xf32>
    %cst_53 = arith.constant 5.120000e+02 : f32
    %163 = arith.divf %162, %cst_53 : f32
    %164 = vector.broadcast %163 : f32 to vector<16x32xf32>
    %165 = arith.subf %158, %164 : vector<16x32xf32>
    %166 = arith.mulf %165, %165 : vector<16x32xf32>
    %167 = vector.shape_cast %166 : vector<16x32xf32> to vector<1x16x32xf32>
    %cst_54 = arith.constant dense<0.000000e+00> : vector<1xf32>
    %168 = vector.multi_reduction <add>, %167, %cst_54 [1, 2] : vector<1x16x32xf32> to vector<1xf32>
    %169 = vector.shape_cast %168 : vector<1xf32> to vector<1x1x1xf32>
    %170 = vector.extract %169[0, 0, 0] : f32 from vector<1x1x1xf32>
    %cst_55 = arith.constant 5.120000e+02 : f32
    %171 = arith.divf %170, %cst_55 : f32
    %172 = math.sqrt %171 : f32
    %cst_56 = arith.constant 9.99999974E-6 : f32
    %173 = arith.addf %172, %cst_56 : f32
    %174 = vector.broadcast %173 : f32 to vector<16x32xf32>
    %175 = arith.divf %165, %174 : vector<16x32xf32>
    %c0_57 = arith.constant 0 : index
    %c0_58 = arith.constant 0 : index
    %176 = vector.load %arg7[%c0_57, %c0_58] : memref<1x32xf32, #tpu.memory_space<vmem>>, vector<1x32xf32>
    %177 = vector.broadcast %176 : vector<1x32xf32> to vector<16x32xf32>
    %178 = arith.mulf %175, %177 : vector<16x32xf32>
    %c0_59 = arith.constant 0 : index
    %c0_60 = arith.constant 0 : index
    %179 = vector.load %arg8[%c0_59, %c0_60] : memref<1x32xf32, #tpu.memory_space<vmem>>, vector<1x32xf32>
    %180 = vector.broadcast %179 : vector<1x32xf32> to vector<16x32xf32>
    %181 = arith.addf %178, %180 : vector<16x32xf32>
    %c0_61 = arith.constant 0 : index
    %c0_62 = arith.constant 0 : index
    %182 = vector.load %arg9[%c0_61, %c0_62] : memref<32x256xf32, #tpu.memory_space<vmem>>, vector<32x256xf32>
    %cst_63 = arith.constant dense<0.000000e+00> : vector<16x256xf32>
    %183 = tpu.matmul %181, %182, %cst_63 {dimension_numbers = #tpu.dot_dimension_numbers<[1], [0], [0], [1], [0, 0, 1, 1], [], []>} : vector<16x32xf32>, vector<32x256xf32>, vector<16x256xf32> -> vector<16x256xf32>
    %c0_64 = arith.constant 0 : index
    %c0_65 = arith.constant 0 : index
    %184 = vector.load %arg10[%c0_64, %c0_65] : memref<1x256xf32, #tpu.memory_space<vmem>>, vector<1x256xf32>
    %185 = vector.broadcast %184 : vector<1x256xf32> to vector<16x256xf32>
    %186 = arith.addf %183, %185 : vector<16x256xf32>
    %187 = vector.extract_strided_slice %186 {offsets = [0, 0], sizes = [16, 128], strides = [1, 1]} : vector<16x256xf32> to vector<16x128xf32>
    %188 = vector.extract_strided_slice %186 {offsets = [0, 128], sizes = [16, 128], strides = [1, 1]} : vector<16x256xf32> to vector<16x128xf32>
    %cst_66 = arith.constant 0.000000e+00 : f32
    %189 = vector.broadcast %cst_66 : f32 to vector<16x32xf32>
    %190 = vector.extract_strided_slice %187 {offsets = [0, 0], sizes = [16, 32], strides = [1, 1]} : vector<16x128xf32> to vector<16x32xf32>
    %191 = vector.extract_strided_slice %188 {offsets = [0, 0], sizes = [16, 32], strides = [1, 1]} : vector<16x128xf32> to vector<16x32xf32>
    %c0_67 = arith.constant 0 : index
    %c0_68 = arith.constant 0 : index
    %192 = vector.load %arg11[%c0_67, %c0_68] : memref<4x32xf32, #tpu.memory_space<vmem>>, vector<1x32xf32>
    %193 = vector.shape_cast %191 : vector<16x32xf32> to vector<16x1x32xf32>
    %194 = vector.shape_cast %190 : vector<16x32xf32> to vector<1x16x32xf32>
    %195 = vector.broadcast %193 : vector<16x1x32xf32> to vector<16x16x32xf32>
    %196 = vector.broadcast %194 : vector<1x16x32xf32> to vector<16x16x32xf32>
    %197 = arith.addf %195, %196 : vector<16x16x32xf32>
    %cst_69 = arith.constant 0.000000e+00 : f32
    %198 = vector.broadcast %cst_69 : f32 to vector<16x16x32xf32>
    %199 = arith.cmpf oge, %197, %198 : vector<16x16x32xf32>
    %cst_70 = arith.constant 2.000000e-01 : f32
    %200 = vector.broadcast %cst_70 : f32 to vector<16x16x32xf32>
    %201 = arith.mulf %200, %197 : vector<16x16x32xf32>
    %202 = arith.select %199, %197, %201 : vector<16x16x32xi1>, vector<16x16x32xf32>
    %203 = vector.shape_cast %192 : vector<1x32xf32> to vector<1x1x32xf32>
    %204 = vector.broadcast %203 : vector<1x1x32xf32> to vector<16x16x32xf32>
    %205 = arith.mulf %202, %204 : vector<16x16x32xf32>
    %cst_71 = arith.constant dense<0.000000e+00> : vector<16x16xf32>
    %206 = vector.multi_reduction <add>, %205, %cst_71 [2] : vector<16x16x32xf32> to vector<16x16xf32>
    %cst_72 = arith.constant 0.000000e+00 : f32
    %207 = vector.broadcast %cst_72 : f32 to vector<16x16xf32>
    %208 = arith.cmpf ogt, %1, %207 : vector<16x16xf32>
    %cst_73 = arith.constant -1.000000e+30 : f32
    %209 = vector.broadcast %cst_73 : f32 to vector<16x16xf32>
    %210 = arith.select %208, %206, %209 : vector<16x16xi1>, vector<16x16xf32>
    %cst_74 = arith.constant dense<0xFF800000> : vector<16xf32>
    %211 = vector.multi_reduction <maximumf>, %210, %cst_74 [1] : vector<16x16xf32> to vector<16xf32>
    %212 = vector.shape_cast %211 : vector<16xf32> to vector<16x1xf32>
    %213 = vector.broadcast %212 : vector<16x1xf32> to vector<16x16xf32>
    %214 = arith.subf %210, %213 : vector<16x16xf32>
    %215 = math.exp %214 : vector<16x16xf32>
    %216 = arith.mulf %215, %1 : vector<16x16xf32>
    %cst_75 = arith.constant dense<0.000000e+00> : vector<16xf32>
    %217 = vector.multi_reduction <add>, %216, %cst_75 [1] : vector<16x16xf32> to vector<16xf32>
    %218 = vector.shape_cast %217 : vector<16xf32> to vector<16x1xf32>
    %cst_76 = arith.constant 1.000000e-16 : f32
    %219 = vector.broadcast %cst_76 : f32 to vector<16x1xf32>
    %220 = arith.addf %218, %219 : vector<16x1xf32>
    %cst_77 = arith.constant dense<0.000000e+00> : vector<16x32xf32>
    %221 = tpu.matmul %216, %190, %cst_77 {dimension_numbers = #tpu.dot_dimension_numbers<[1], [0], [0], [1], [0, 0, 1, 1], [], []>} : vector<16x16xf32>, vector<16x32xf32>, vector<16x32xf32> -> vector<16x32xf32>
    %222 = tpu.reciprocal %220 : vector<16x1xf32> -> vector<16x1xf32>
    %223 = vector.broadcast %222 : vector<16x1xf32> to vector<16x32xf32>
    %224 = arith.mulf %221, %223 : vector<16x32xf32>
    %225 = arith.addf %189, %224 : vector<16x32xf32>
    %226 = vector.extract_strided_slice %187 {offsets = [0, 32], sizes = [16, 32], strides = [1, 1]} : vector<16x128xf32> to vector<16x32xf32>
    %227 = vector.extract_strided_slice %188 {offsets = [0, 32], sizes = [16, 32], strides = [1, 1]} : vector<16x128xf32> to vector<16x32xf32>
    %c1_78 = arith.constant 1 : index
    %c0_79 = arith.constant 0 : index
    %228 = vector.load %arg11[%c1_78, %c0_79] : memref<4x32xf32, #tpu.memory_space<vmem>>, vector<1x32xf32>
    %229 = vector.shape_cast %227 : vector<16x32xf32> to vector<16x1x32xf32>
    %230 = vector.shape_cast %226 : vector<16x32xf32> to vector<1x16x32xf32>
    %231 = vector.broadcast %229 : vector<16x1x32xf32> to vector<16x16x32xf32>
    %232 = vector.broadcast %230 : vector<1x16x32xf32> to vector<16x16x32xf32>
    %233 = arith.addf %231, %232 : vector<16x16x32xf32>
    %cst_80 = arith.constant 0.000000e+00 : f32
    %234 = vector.broadcast %cst_80 : f32 to vector<16x16x32xf32>
    %235 = arith.cmpf oge, %233, %234 : vector<16x16x32xf32>
    %cst_81 = arith.constant 2.000000e-01 : f32
    %236 = vector.broadcast %cst_81 : f32 to vector<16x16x32xf32>
    %237 = arith.mulf %236, %233 : vector<16x16x32xf32>
    %238 = arith.select %235, %233, %237 : vector<16x16x32xi1>, vector<16x16x32xf32>
    %239 = vector.shape_cast %228 : vector<1x32xf32> to vector<1x1x32xf32>
    %240 = vector.broadcast %239 : vector<1x1x32xf32> to vector<16x16x32xf32>
    %241 = arith.mulf %238, %240 : vector<16x16x32xf32>
    %cst_82 = arith.constant dense<0.000000e+00> : vector<16x16xf32>
    %242 = vector.multi_reduction <add>, %241, %cst_82 [2] : vector<16x16x32xf32> to vector<16x16xf32>
    %cst_83 = arith.constant 0.000000e+00 : f32
    %243 = vector.broadcast %cst_83 : f32 to vector<16x16xf32>
    %244 = arith.cmpf ogt, %1, %243 : vector<16x16xf32>
    %cst_84 = arith.constant -1.000000e+30 : f32
    %245 = vector.broadcast %cst_84 : f32 to vector<16x16xf32>
    %246 = arith.select %244, %242, %245 : vector<16x16xi1>, vector<16x16xf32>
    %cst_85 = arith.constant dense<0xFF800000> : vector<16xf32>
    %247 = vector.multi_reduction <maximumf>, %246, %cst_85 [1] : vector<16x16xf32> to vector<16xf32>
    %248 = vector.shape_cast %247 : vector<16xf32> to vector<16x1xf32>
    %249 = vector.broadcast %248 : vector<16x1xf32> to vector<16x16xf32>
    %250 = arith.subf %246, %249 : vector<16x16xf32>
    %251 = math.exp %250 : vector<16x16xf32>
    %252 = arith.mulf %251, %1 : vector<16x16xf32>
    %cst_86 = arith.constant dense<0.000000e+00> : vector<16xf32>
    %253 = vector.multi_reduction <add>, %252, %cst_86 [1] : vector<16x16xf32> to vector<16xf32>
    %254 = vector.shape_cast %253 : vector<16xf32> to vector<16x1xf32>
    %cst_87 = arith.constant 1.000000e-16 : f32
    %255 = vector.broadcast %cst_87 : f32 to vector<16x1xf32>
    %256 = arith.addf %254, %255 : vector<16x1xf32>
    %cst_88 = arith.constant dense<0.000000e+00> : vector<16x32xf32>
    %257 = tpu.matmul %252, %226, %cst_88 {dimension_numbers = #tpu.dot_dimension_numbers<[1], [0], [0], [1], [0, 0, 1, 1], [], []>} : vector<16x16xf32>, vector<16x32xf32>, vector<16x32xf32> -> vector<16x32xf32>
    %258 = tpu.reciprocal %256 : vector<16x1xf32> -> vector<16x1xf32>
    %259 = vector.broadcast %258 : vector<16x1xf32> to vector<16x32xf32>
    %260 = arith.mulf %257, %259 : vector<16x32xf32>
    %261 = arith.addf %225, %260 : vector<16x32xf32>
    %262 = vector.extract_strided_slice %187 {offsets = [0, 64], sizes = [16, 32], strides = [1, 1]} : vector<16x128xf32> to vector<16x32xf32>
    %263 = vector.extract_strided_slice %188 {offsets = [0, 64], sizes = [16, 32], strides = [1, 1]} : vector<16x128xf32> to vector<16x32xf32>
    %c2_89 = arith.constant 2 : index
    %c0_90 = arith.constant 0 : index
    %264 = vector.load %arg11[%c2_89, %c0_90] : memref<4x32xf32, #tpu.memory_space<vmem>>, vector<1x32xf32>
    %265 = vector.shape_cast %263 : vector<16x32xf32> to vector<16x1x32xf32>
    %266 = vector.shape_cast %262 : vector<16x32xf32> to vector<1x16x32xf32>
    %267 = vector.broadcast %265 : vector<16x1x32xf32> to vector<16x16x32xf32>
    %268 = vector.broadcast %266 : vector<1x16x32xf32> to vector<16x16x32xf32>
    %269 = arith.addf %267, %268 : vector<16x16x32xf32>
    %cst_91 = arith.constant 0.000000e+00 : f32
    %270 = vector.broadcast %cst_91 : f32 to vector<16x16x32xf32>
    %271 = arith.cmpf oge, %269, %270 : vector<16x16x32xf32>
    %cst_92 = arith.constant 2.000000e-01 : f32
    %272 = vector.broadcast %cst_92 : f32 to vector<16x16x32xf32>
    %273 = arith.mulf %272, %269 : vector<16x16x32xf32>
    %274 = arith.select %271, %269, %273 : vector<16x16x32xi1>, vector<16x16x32xf32>
    %275 = vector.shape_cast %264 : vector<1x32xf32> to vector<1x1x32xf32>
    %276 = vector.broadcast %275 : vector<1x1x32xf32> to vector<16x16x32xf32>
    %277 = arith.mulf %274, %276 : vector<16x16x32xf32>
    %cst_93 = arith.constant dense<0.000000e+00> : vector<16x16xf32>
    %278 = vector.multi_reduction <add>, %277, %cst_93 [2] : vector<16x16x32xf32> to vector<16x16xf32>
    %cst_94 = arith.constant 0.000000e+00 : f32
    %279 = vector.broadcast %cst_94 : f32 to vector<16x16xf32>
    %280 = arith.cmpf ogt, %1, %279 : vector<16x16xf32>
    %cst_95 = arith.constant -1.000000e+30 : f32
    %281 = vector.broadcast %cst_95 : f32 to vector<16x16xf32>
    %282 = arith.select %280, %278, %281 : vector<16x16xi1>, vector<16x16xf32>
    %cst_96 = arith.constant dense<0xFF800000> : vector<16xf32>
    %283 = vector.multi_reduction <maximumf>, %282, %cst_96 [1] : vector<16x16xf32> to vector<16xf32>
    %284 = vector.shape_cast %283 : vector<16xf32> to vector<16x1xf32>
    %285 = vector.broadcast %284 : vector<16x1xf32> to vector<16x16xf32>
    %286 = arith.subf %282, %285 : vector<16x16xf32>
    %287 = math.exp %286 : vector<16x16xf32>
    %288 = arith.mulf %287, %1 : vector<16x16xf32>
    %cst_97 = arith.constant dense<0.000000e+00> : vector<16xf32>
    %289 = vector.multi_reduction <add>, %288, %cst_97 [1] : vector<16x16xf32> to vector<16xf32>
    %290 = vector.shape_cast %289 : vector<16xf32> to vector<16x1xf32>
    %cst_98 = arith.constant 1.000000e-16 : f32
    %291 = vector.broadcast %cst_98 : f32 to vector<16x1xf32>
    %292 = arith.addf %290, %291 : vector<16x1xf32>
    %cst_99 = arith.constant dense<0.000000e+00> : vector<16x32xf32>
    %293 = tpu.matmul %288, %262, %cst_99 {dimension_numbers = #tpu.dot_dimension_numbers<[1], [0], [0], [1], [0, 0, 1, 1], [], []>} : vector<16x16xf32>, vector<16x32xf32>, vector<16x32xf32> -> vector<16x32xf32>
    %294 = tpu.reciprocal %292 : vector<16x1xf32> -> vector<16x1xf32>
    %295 = vector.broadcast %294 : vector<16x1xf32> to vector<16x32xf32>
    %296 = arith.mulf %293, %295 : vector<16x32xf32>
    %297 = arith.addf %261, %296 : vector<16x32xf32>
    %298 = vector.extract_strided_slice %187 {offsets = [0, 96], sizes = [16, 32], strides = [1, 1]} : vector<16x128xf32> to vector<16x32xf32>
    %299 = vector.extract_strided_slice %188 {offsets = [0, 96], sizes = [16, 32], strides = [1, 1]} : vector<16x128xf32> to vector<16x32xf32>
    %c3_100 = arith.constant 3 : index
    %c0_101 = arith.constant 0 : index
    %300 = vector.load %arg11[%c3_100, %c0_101] : memref<4x32xf32, #tpu.memory_space<vmem>>, vector<1x32xf32>
    %301 = vector.shape_cast %299 : vector<16x32xf32> to vector<16x1x32xf32>
    %302 = vector.shape_cast %298 : vector<16x32xf32> to vector<1x16x32xf32>
    %303 = vector.broadcast %301 : vector<16x1x32xf32> to vector<16x16x32xf32>
    %304 = vector.broadcast %302 : vector<1x16x32xf32> to vector<16x16x32xf32>
    %305 = arith.addf %303, %304 : vector<16x16x32xf32>
    %cst_102 = arith.constant 0.000000e+00 : f32
    %306 = vector.broadcast %cst_102 : f32 to vector<16x16x32xf32>
    %307 = arith.cmpf oge, %305, %306 : vector<16x16x32xf32>
    %cst_103 = arith.constant 2.000000e-01 : f32
    %308 = vector.broadcast %cst_103 : f32 to vector<16x16x32xf32>
    %309 = arith.mulf %308, %305 : vector<16x16x32xf32>
    %310 = arith.select %307, %305, %309 : vector<16x16x32xi1>, vector<16x16x32xf32>
    %311 = vector.shape_cast %300 : vector<1x32xf32> to vector<1x1x32xf32>
    %312 = vector.broadcast %311 : vector<1x1x32xf32> to vector<16x16x32xf32>
    %313 = arith.mulf %310, %312 : vector<16x16x32xf32>
    %cst_104 = arith.constant dense<0.000000e+00> : vector<16x16xf32>
    %314 = vector.multi_reduction <add>, %313, %cst_104 [2] : vector<16x16x32xf32> to vector<16x16xf32>
    %cst_105 = arith.constant 0.000000e+00 : f32
    %315 = vector.broadcast %cst_105 : f32 to vector<16x16xf32>
    %316 = arith.cmpf ogt, %1, %315 : vector<16x16xf32>
    %cst_106 = arith.constant -1.000000e+30 : f32
    %317 = vector.broadcast %cst_106 : f32 to vector<16x16xf32>
    %318 = arith.select %316, %314, %317 : vector<16x16xi1>, vector<16x16xf32>
    %cst_107 = arith.constant dense<0xFF800000> : vector<16xf32>
    %319 = vector.multi_reduction <maximumf>, %318, %cst_107 [1] : vector<16x16xf32> to vector<16xf32>
    %320 = vector.shape_cast %319 : vector<16xf32> to vector<16x1xf32>
    %321 = vector.broadcast %320 : vector<16x1xf32> to vector<16x16xf32>
    %322 = arith.subf %318, %321 : vector<16x16xf32>
    %323 = math.exp %322 : vector<16x16xf32>
    %324 = arith.mulf %323, %1 : vector<16x16xf32>
    %cst_108 = arith.constant dense<0.000000e+00> : vector<16xf32>
    %325 = vector.multi_reduction <add>, %324, %cst_108 [1] : vector<16x16xf32> to vector<16xf32>
    %326 = vector.shape_cast %325 : vector<16xf32> to vector<16x1xf32>
    %cst_109 = arith.constant 1.000000e-16 : f32
    %327 = vector.broadcast %cst_109 : f32 to vector<16x1xf32>
    %328 = arith.addf %326, %327 : vector<16x1xf32>
    %cst_110 = arith.constant dense<0.000000e+00> : vector<16x32xf32>
    %329 = tpu.matmul %324, %298, %cst_110 {dimension_numbers = #tpu.dot_dimension_numbers<[1], [0], [0], [1], [0, 0, 1, 1], [], []>} : vector<16x16xf32>, vector<16x32xf32>, vector<16x32xf32> -> vector<16x32xf32>
    %330 = tpu.reciprocal %328 : vector<16x1xf32> -> vector<16x1xf32>
    %331 = vector.broadcast %330 : vector<16x1xf32> to vector<16x32xf32>
    %332 = arith.mulf %329, %331 : vector<16x32xf32>
    %333 = arith.addf %297, %332 : vector<16x32xf32>
    %cst_111 = arith.constant 4.000000e+00 : f32
    %334 = vector.broadcast %cst_111 : f32 to vector<16x32xf32>
    %335 = arith.divf %333, %334 : vector<16x32xf32>
    %c0_112 = arith.constant 0 : index
    %c0_113 = arith.constant 0 : index
    %336 = vector.load %arg12[%c0_112, %c0_113] : memref<1x32xf32, #tpu.memory_space<vmem>>, vector<1x32xf32>
    %337 = vector.broadcast %336 : vector<1x32xf32> to vector<16x32xf32>
    %338 = arith.addf %335, %337 : vector<16x32xf32>
    %339 = vector.shape_cast %338 : vector<16x32xf32> to vector<1x16x32xf32>
    %cst_114 = arith.constant dense<0.000000e+00> : vector<1xf32>
    %340 = vector.multi_reduction <add>, %339, %cst_114 [1, 2] : vector<1x16x32xf32> to vector<1xf32>
    %341 = vector.shape_cast %340 : vector<1xf32> to vector<1x1x1xf32>
    %342 = vector.extract %341[0, 0, 0] : f32 from vector<1x1x1xf32>
    %cst_115 = arith.constant 5.120000e+02 : f32
    %343 = arith.divf %342, %cst_115 : f32
    %344 = vector.broadcast %343 : f32 to vector<16x32xf32>
    %345 = arith.subf %338, %344 : vector<16x32xf32>
    %346 = arith.mulf %345, %345 : vector<16x32xf32>
    %347 = vector.shape_cast %346 : vector<16x32xf32> to vector<1x16x32xf32>
    %cst_116 = arith.constant dense<0.000000e+00> : vector<1xf32>
    %348 = vector.multi_reduction <add>, %347, %cst_116 [1, 2] : vector<1x16x32xf32> to vector<1xf32>
    %349 = vector.shape_cast %348 : vector<1xf32> to vector<1x1x1xf32>
    %350 = vector.extract %349[0, 0, 0] : f32 from vector<1x1x1xf32>
    %cst_117 = arith.constant 5.120000e+02 : f32
    %351 = arith.divf %350, %cst_117 : f32
    %352 = math.sqrt %351 : f32
    %cst_118 = arith.constant 9.99999974E-6 : f32
    %353 = arith.addf %352, %cst_118 : f32
    %354 = vector.broadcast %353 : f32 to vector<16x32xf32>
    %355 = arith.divf %345, %354 : vector<16x32xf32>
    %c0_119 = arith.constant 0 : index
    %c0_120 = arith.constant 0 : index
    %356 = vector.load %arg13[%c0_119, %c0_120] : memref<1x32xf32, #tpu.memory_space<vmem>>, vector<1x32xf32>
    %357 = vector.broadcast %356 : vector<1x32xf32> to vector<16x32xf32>
    %358 = arith.mulf %355, %357 : vector<16x32xf32>
    %c0_121 = arith.constant 0 : index
    %c0_122 = arith.constant 0 : index
    %359 = vector.load %arg14[%c0_121, %c0_122] : memref<1x32xf32, #tpu.memory_space<vmem>>, vector<1x32xf32>
    %360 = vector.broadcast %359 : vector<1x32xf32> to vector<16x32xf32>
    %361 = arith.addf %358, %360 : vector<16x32xf32>
    %c0_123 = arith.constant 0 : index
    %c0_124 = arith.constant 0 : index
    %362 = vector.load %arg15[%c0_123, %c0_124] : memref<16x32xf32, #tpu.memory_space<vmem>>, vector<16x32xf32>
    tpu.vector_store %arg15[%c0_123, %c0_124], %361 {strides = array<i32>} : memref<16x32xf32, #tpu.memory_space<vmem>>, vector<16x32xf32>,
    return
  }
  func.func @transform_0(%arg0: i32) -> (i32, i32) {
    %c0_i32 = arith.constant 0 : i32
    %c0_i32_0 = arith.constant 0 : i32
    %c0_i32_1 = arith.constant 0 : i32
    return %c0_i32, %c0_i32_0 : i32, i32
  }
  func.func @transform_1(%arg0: i32) -> (i32, i32) {
    %c0_i32 = arith.constant 0 : i32
    %c0_i32_0 = arith.constant 0 : i32
    %c0_i32_1 = arith.constant 0 : i32
    return %c0_i32, %c0_i32_0 : i32, i32
  }
  func.func @transform_2(%arg0: i32) -> (i32, i32) {
    %c0_i32 = arith.constant 0 : i32
    %c0_i32_0 = arith.constant 0 : i32
    %c0_i32_1 = arith.constant 0 : i32
    return %c0_i32, %c0_i32_0 : i32, i32
  }
  func.func @transform_3(%arg0: i32) -> (i32, i32) {
    %c0_i32 = arith.constant 0 : i32
    %c0_i32_0 = arith.constant 0 : i32
    %c0_i32_1 = arith.constant 0 : i32
    return %c0_i32, %c0_i32_0 : i32, i32
  }
  func.func @transform_4(%arg0: i32) -> (i32, i32) {
    %c0_i32 = arith.constant 0 : i32
    %c0_i32_0 = arith.constant 0 : i32
    %c0_i32_1 = arith.constant 0 : i32
    return %c0_i32, %c0_i32_0 : i32, i32
  }
  func.func @transform_5(%arg0: i32) -> (i32, i32) {
    %c0_i32 = arith.constant 0 : i32
    %c0_i32_0 = arith.constant 0 : i32
    %c0_i32_1 = arith.constant 0 : i32
    return %c0_i32, %c0_i32_0 : i32, i32
  }
  func.func @transform_6(%arg0: i32) -> (i32, i32) {
    %c0_i32 = arith.constant 0 : i32
    %c0_i32_0 = arith.constant 0 : i32
    %c0_i32_1 = arith.constant 0 : i32
    return %c0_i32, %c0_i32_0 : i32, i32
  }
  func.func @transform_7(%arg0: i32) -> (i32, i32) {
    %c0_i32 = arith.constant 0 : i32
    %c0_i32_0 = arith.constant 0 : i32
    %c0_i32_1 = arith.constant 0 : i32
    return %c0_i32, %c0_i32_0 : i32, i32
  }
  func.func @transform_8(%arg0: i32) -> (i32, i32) {
    %c0_i32 = arith.constant 0 : i32
    %c0_i32_0 = arith.constant 0 : i32
    %c0_i32_1 = arith.constant 0 : i32
    return %c0_i32, %c0_i32_0 : i32, i32
  }
  func.func @transform_9(%arg0: i32) -> (i32, i32) {
    %c0_i32 = arith.constant 0 : i32
    %c0_i32_0 = arith.constant 0 : i32
    %c0_i32_1 = arith.constant 0 : i32
    return %c0_i32, %c0_i32_0 : i32, i32
  }
  func.func @transform_10(%arg0: i32) -> (i32, i32) {
    %c0_i32 = arith.constant 0 : i32
    %c0_i32_0 = arith.constant 0 : i32
    %c0_i32_1 = arith.constant 0 : i32
    return %c0_i32, %c0_i32_0 : i32, i32
  }
  func.func @transform_11(%arg0: i32) -> (i32, i32) {
    %c0_i32 = arith.constant 0 : i32
    %c0_i32_0 = arith.constant 0 : i32
    %c0_i32_1 = arith.constant 0 : i32
    return %c0_i32, %c0_i32_0 : i32, i32
  }
  func.func @transform_12(%arg0: i32) -> (i32, i32) {
    %c0_i32 = arith.constant 0 : i32
    %c0_i32_0 = arith.constant 0 : i32
    %c0_i32_1 = arith.constant 0 : i32
    return %c0_i32, %c0_i32_0 : i32, i32
  }
  func.func @transform_13(%arg0: i32) -> (i32, i32) {
    %c0_i32 = arith.constant 0 : i32
    %c0_i32_0 = arith.constant 0 : i32
    %c0_i32_1 = arith.constant 0 : i32
    return %c0_i32, %c0_i32_0 : i32, i32
  }
  func.func @transform_14(%arg0: i32) -> (i32, i32) {
    %c0_i32 = arith.constant 0 : i32
    %c0_i32_0 = arith.constant 0 : i32
    %c0_i32_1 = arith.constant 0 : i32
    return %c0_i32, %c0_i32_0 : i32, i32
  }
}

</mosaic_0001>

<llo_original>
// kernel: tpu_custom_call.1
$region0: #{tpu_custom_call.1}
  #allocation0 [shape = 'u32[]', space=smem, size = 0x4, offset = 0x4, fixed_abs, tag = 'smem constant byte address 0x4 - core index']
  #allocation1 [shape = 'u32[144,128]{1,0:T(1,128)}', space=vmem, size = 0x12000, scoped, tag = 'internal scratch']
  %s0 = inlined_call_operand.vmem [shape: f32[16,8], index: 0, kind: input, shape index: {}]
  %s1 = inlined_call_operand.vmem [shape: f32[16,16], index: 1, kind: input, shape index: {}]
  %s2 = inlined_call_operand.hbm [shape: f32[8,256], index: 2, kind: input, shape index: {}]
  %s3 = inlined_call_operand.vmem [shape: f32[1,256], index: 3, kind: input, shape index: {}]
  %s4 = inlined_call_operand.vmem [shape: f32[4,32], index: 4, kind: input, shape index: {}]
  %s5 = inlined_call_operand.vmem [shape: f32[1,32], index: 5, kind: input, shape index: {}]
  %s6 = inlined_call_operand.vmem [shape: f32[1,32], index: 6, kind: input, shape index: {}]
  %s7 = inlined_call_operand.vmem [shape: f32[1,32], index: 7, kind: input, shape index: {}]
  %s8 = inlined_call_operand.hbm [shape: f32[32,256], index: 8, kind: input, shape index: {}]
  %s9 = inlined_call_operand.vmem [shape: f32[1,256], index: 9, kind: input, shape index: {}]
  %s10 = inlined_call_operand.vmem [shape: f32[4,32], index: 10, kind: input, shape index: {}]
  %s11 = inlined_call_operand.vmem [shape: f32[1,32], index: 11, kind: input, shape index: {}]
  %s12 = inlined_call_operand.vmem [shape: f32[1,32], index: 12, kind: input, shape index: {}]
  %s13 = inlined_call_operand.vmem [shape: f32[1,32], index: 13, kind: input, shape index: {}]
  %s14 = inlined_call_operand.hbm [shape: f32[16,32], index: 14, kind: output, shape index: {}]
  %s15 = sld [smem:[#allocation0]]
  $region74: #{tpu_custom_call.1} parent=0
    _
  %s17 = ssub.s32 1, %s15
  %s18 = scalar_select 0, %s17, %s15
  $region1: #{tpu_custom_call.1} parent=0
    #allocation2 [shape = 'u8[8192]{0}', space=vmem, size = 0x2000, scoped, tag = 'input window, operand 2, single buffered']
    #allocation3 [shape = 's32[1]{0}', space=sflag, size = 0x4, scoped, tag = 'scoped memory for tpu_custom_call.1']
    #allocation4 [shape = 's32[1]{0}', space=sflag, size = 0x4, scoped, tag = 'scoped memory for tpu_custom_call.1']
    #allocation5 [shape = 'u8[32768]{0}', space=vmem, size = 0x8000, scoped, tag = 'input window, operand 8, single buffered']
    #allocation6 [shape = 's32[1]{0}', space=sflag, size = 0x4, scoped, tag = 'scoped memory for tpu_custom_call.1']
    #allocation7 [shape = 'u8[8192]{0}', space=vmem, size = 0x2000, scoped, tag = 'output window, operand 0, single buffered']
    %19 = vsyncpa [#allocation3], 0
    %20 = vsyncpa [#allocation6], 0
    %21 = vsyncpa [#allocation4], 0
    // Predicated region
    $region2: #{tpu_custom_call.1} parent=1 // pred_check
      _
    $region3: #{tpu_custom_call.1} parent=1 // pred_check_branch
      %23 = sbr.rel (0) target = $region5
    $region4: #{tpu_custom_call.1} parent=1 // pred_region
      _
    $region5: #{tpu_custom_call.1} parent=1 // pred_fallthru
      _
    // Predicated region
    $region6: #{tpu_custom_call.1} parent=1 // pred_check
      _
    $region7: #{tpu_custom_call.1} parent=1 // pred_check_branch
      %25 = sbr.rel (0) target = $region9
    $region8: #{tpu_custom_call.1} parent=1 // pred_region
      _
    $region9: #{tpu_custom_call.1} parent=1 // pred_fallthru
      _
    // Predicated region
    $region10: #{tpu_custom_call.1} parent=1 // pred_check
      _
    $region11: #{tpu_custom_call.1} parent=1 // pred_check_branch
      %27 = sbr.rel (0) target = $region13
    $region12: #{tpu_custom_call.1} parent=1 // pred_region
      %s29 = ssub.s32 256, 256
      %30 = vsyncadd [#allocation3], %s29
      %s32 = sshll.u32 [#allocation2], 4
      %s33 = int_to_ptr.vmem [resolvable:$true] %s32
      %35 = dma.hbm_to_vmem [thread:$0]  %s2, 256, %s33, [#allocation3]
    $region13: #{tpu_custom_call.1} parent=1 // pred_fallthru
      _
    // Predicated region
    $region14: #{tpu_custom_call.1} parent=1 // pred_check
      _
    $region15: #{tpu_custom_call.1} parent=1 // pred_check_branch
      %37 = sbr.rel (0) target = $region17
    $region16: #{tpu_custom_call.1} parent=1 // pred_region
      _
    $region17: #{tpu_custom_call.1} parent=1 // pred_fallthru
      _
    // Predicated region
    $region18: #{tpu_custom_call.1} parent=1 // pred_check
      _
    $region19: #{tpu_custom_call.1} parent=1 // pred_check_branch
      %39 = sbr.rel (0) target = $region21
    $region20: #{tpu_custom_call.1} parent=1 // pred_region
      _
    $region21: #{tpu_custom_call.1} parent=1 // pred_fallthru
      _
    // Predicated region
    $region22: #{tpu_custom_call.1} parent=1 // pred_check
      _
    $region23: #{tpu_custom_call.1} parent=1 // pred_check_branch
      %41 = sbr.rel (0) target = $region25
    $region24: #{tpu_custom_call.1} parent=1 // pred_region
      _
    $region25: #{tpu_custom_call.1} parent=1 // pred_fallthru
      _
    // Predicated region
    $region26: #{tpu_custom_call.1} parent=1 // pred_check
      _
    $region27: #{tpu_custom_call.1} parent=1 // pred_check_branch
      %43 = sbr.rel (0) target = $region29
    $region28: #{tpu_custom_call.1} parent=1 // pred_region
      _
    $region29: #{tpu_custom_call.1} parent=1 // pred_fallthru
      _
    // Predicated region
    $region30: #{tpu_custom_call.1} parent=1 // pred_check
      _
    $region31: #{tpu_custom_call.1} parent=1 // pred_check_branch
      %45 = sbr.rel (0) target = $region33
    $region32: #{tpu_custom_call.1} parent=1 // pred_region
      _
    $region33: #{tpu_custom_call.1} parent=1 // pred_fallthru
      _
    // Predicated region
    $region34: #{tpu_custom_call.1} parent=1 // pred_check
      _
    $region35: #{tpu_custom_call.1} parent=1 // pred_check_branch
      %47 = sbr.rel (0) target = $region37
    $region36: #{tpu_custom_call.1} parent=1 // pred_region
      %s49 = ssub.s32 1024, 1024
      %50 = vsyncadd [#allocation6], %s49
      %s51 = sshll.u32 [#allocation5], 4
      %s52 = int_to_ptr.vmem [resolvable:$true] %s51
      %57 = dma.hbm_to_vmem [thread:$0]  %s8, 1024, %s52, [#allocation6], 256, 256, 16
    $region37: #{tpu_custom_call.1} parent=1 // pred_fallthru
      _
    // Predicated region
    $region38: #{tpu_custom_call.1} parent=1 // pred_check
      _
    $region39: #{tpu_custom_call.1} parent=1 // pred_check_branch
      %59 = sbr.rel (0) target = $region41
    $region40: #{tpu_custom_call.1} parent=1 // pred_region
      _
    $region41: #{tpu_custom_call.1} parent=1 // pred_fallthru
      _
    // Predicated region
    $region42: #{tpu_custom_call.1} parent=1 // pred_check
      _
    $region43: #{tpu_custom_call.1} parent=1 // pred_check_branch
      %61 = sbr.rel (0) target = $region45
    $region44: #{tpu_custom_call.1} parent=1 // pred_region
      _
    $region45: #{tpu_custom_call.1} parent=1 // pred_fallthru
      _
    // Predicated region
    $region46: #{tpu_custom_call.1} parent=1 // pred_check
      _
    $region47: #{tpu_custom_call.1} parent=1 // pred_check_branch
      %63 = sbr.rel (0) target = $region49
    $region48: #{tpu_custom_call.1} parent=1 // pred_region
      _
    $region49: #{tpu_custom_call.1} parent=1 // pred_fallthru
      _
    // Predicated region
    $region50: #{tpu_custom_call.1} parent=1 // pred_check
      _
    $region51: #{tpu_custom_call.1} parent=1 // pred_check_branch
      %65 = sbr.rel (0) target = $region53
    $region52: #{tpu_custom_call.1} parent=1 // pred_region
      _
    $region53: #{tpu_custom_call.1} parent=1 // pred_fallthru
      _
    // Predicated region
    $region54: #{tpu_custom_call.1} parent=1 // pred_check
      _
    $region55: #{tpu_custom_call.1} parent=1 // pred_check_branch
      %67 = sbr.rel (0) target = $region57
    $region56: #{tpu_custom_call.1} parent=1 // pred_region
      _
    $region57: #{tpu_custom_call.1} parent=1 // pred_fallthru
      _
    // Predicated region
    $region58: #{tpu_custom_call.1} parent=1 // pred_check
      _
    $region59: #{tpu_custom_call.1} parent=1 // pred_check_branch
      %69 = sbr.rel (0) target = $region61
    $region60: #{tpu_custom_call.1} parent=1 // pred_region
      %70 = dma.done [#allocation3], 256
    $region61: #{tpu_custom_call.1} parent=1 // pred_fallthru
      _
    // Predicated region
    $region62: #{tpu_custom_call.1} parent=1 // pred_check
      _
    $region63: #{tpu_custom_call.1} parent=1 // pred_check_branch
      %72 = sbr.rel (0) target = $region65
    $region64: #{tpu_custom_call.1} parent=1 // pred_region
      %73 = dma.done [#allocation6], 1024
    $region65: #{tpu_custom_call.1} parent=1 // pred_fallthru
      _
    %v74 = vld [vmem:[%s0] sm:$0xff]
    %v75 = vld [vmem:[%s0 + $0x8] sm:$0xff]
    %v76 = vld [vmem:[%s1] sm:$0xff]
    %v77 = vld [vmem:[%s1 + $0x8] sm:$0xff]
    %v78 = vld [vmem:[#allocation2] sm:$0xff]
    %v79 = vld [vmem:[#allocation2 + $0x8] sm:$0xff]
    %v80 = vld [vmem:[%s3] sm:$0x3]
    %v82 = vlaneseq
    %v83 = vshrl.u32 %v82, 7
    %v84 = vsub.s32 0, %v83
    %v85 = vrot.slane %v80, %v84
    %v86 = vlaneseq
    %v87 = vshrl.u32 %v86, 7
    %v88 = vsub.s32 1, %v87
    %v89 = vrot.slane %v80, %v88
    %vm92 = vcmask 64512
    %v94 = vsel %vm92, %v74, 0
    %v97 = vsel %vm92, %v75, 0
    %99 = vmatprep.subr.mxu0 %v79
    %100 = vmatpush1.msra.mxu0 %v78
    %101 = vmatprep.subr.mxu0 0.0
    %102 = vmatpush1.msra.mxu0 0.0
    %103 = vmatprep.subr.mxu0 0.0
    %104 = vmatpush1.msra.mxu0 0.0
    %105 = vmatprep.subr.mxu0 0.0
    %106 = vmatpush1.msra.mxu0 0.0
    %107 = vmatprep.subr.mxu0 0.0
    %108 = vmatpush1.msra.mxu0 0.0
    %109 = vmatprep.subr.mxu0 0.0
    %110 = vmatpush1.msra.mxu0 0.0
    %111 = vmatprep.subr.mxu0 0.0
    %112 = vmatpush1.msra.mxu0 0.0
    %113 = vmatprep.subr.mxu0 0.0
    %114 = vmatpush1.msra.mxu0 0.0
    %115 = vmatprep.subr.mxu0 0.0
    %116 = vmatpush1.msra.mxu0 0.0
    %117 = vmatprep.subr.mxu0 0.0
    %118 = vmatpush1.msra.mxu0 0.0
    %119 = vmatprep.subr.mxu0 0.0
    %120 = vmatpush1.msra.mxu0 0.0
    %121 = vmatprep.subr.mxu0 0.0
    %122 = vmatpush1.msra.mxu0 0.0
    %123 = vmatprep.subr.mxu0 0.0
    %124 = vmatpush1.msra.mxu0 0.0
    %125 = vmatprep.subr.mxu0 0.0
    %126 = vmatpush1.msra.mxu0 0.0
    %127 = vmatprep.subr.mxu0 0.0
    %128 = vmatpush1.msra.mxu0 0.0
    %129 = vmatprep.subr.mxu0 0.0
    %130 = vmatpush1.msra.mxu0 0.0
    %131 = vmatprep.subr.mxu0 0.0
    %132 = vmatpush1.msra.mxu0 0.0
    %133 = vmatprep.subr.mxu0 0.0
    %134 = vmatpush1.msra.mxu0 0.0
    %135 = vmatprep.subr.mxu0 0.0
    %136 = vmatpush1.msra.mxu0 0.0
    %137 = vmatprep.subr.mxu0 0.0
    %138 = vmatpush1.msra.mxu0 0.0
    %139 = vmatprep.subr.mxu0 0.0
    %140 = vmatpush1.msra.mxu0 0.0
    %141 = vmatprep.subr.mxu0 0.0
    %142 = vmatpush1.msra.mxu0 0.0
    %143 = vmatprep.subr.mxu0 0.0
    %144 = vmatpush1.msra.mxu0 0.0
    %145 = vmatprep.subr.mxu0 0.0
    %146 = vmatpush1.msra.mxu0 0.0
    %147 = vmatprep.subr.mxu0 0.0
    %148 = vmatpush1.msra.mxu0 0.0
    %149 = vmatprep.subr.mxu0 0.0
    %150 = vmatpush1.msra.mxu0 0.0
    %151 = vmatprep.subr.mxu0 0.0
    %152 = vmatpush1.msra.mxu0 0.0
    %153 = vmatprep.subr.mxu0 0.0
    %154 = vmatpush1.msra.mxu0 0.0
    %155 = vmatprep.subr.mxu0 0.0
    %156 = vmatpush1.msra.mxu0 0.0
    %157 = vmatprep.subr.mxu0 0.0
    %158 = vmatpush1.msra.mxu0 0.0
    %159 = vmatprep.subr.mxu0 0.0
    %160 = vmatpush1.msra.mxu0 0.0
    %161 = vmatprep.subr.mxu0 0.0
    %162 = vmatpush1.msra.mxu0 0.0
    %163 = vmatprep.mubr.f32.mxu0 0.0
    %164 = vmatmul.mubr.f32.gmra.mrb[0].mxu0 %v94
    %v165 = vpop.f32.mrb[0].mxu0
    %v166 = vadd.f32 %v85, %v165
    %v167 = vpop.f32.mrb[0].mxu0
    %v168 = vadd.f32 %v89, %v167
    %169 = vmatprep.mubr.f32.mxu0 0.0
    %170 = vmatmul.mubr.f32.gmra.mrb[0].mxu0 %v97
    %v171 = vpop.f32.mrb[0].mxu0
    %v172 = vadd.f32 %v85, %v171
    %v173 = vpop.f32.mrb[0].mxu0
    %v174 = vadd.f32 %v89, %v173
    %175 = vdwg.mxu0
    %v176 = vld [vmem:[%s4] sm:$0x1]
    %v179 = vcombine.high %v168, %v168
    %v181 = vunpack.c.l.s4 1966171168
    %v182 = vunpack.c.0.s8 %v181
    %v183 = vlaneseq
    %v184 = vshrl.u32 %v183, 7
    %v185 = vsub.s32 %v182, %v184
    %v186 = vrot.slane %v168, %v185
    %v188 = vunpack.c.l.s4 1966171168
    %v189 = vunpack.c.0.s8 %v188
    %v190 = vlaneseq
    %v191 = vshrl.u32 %v190, 7
    %v192 = vsub.s32 %v189, %v191
    %v193 = vrot.slane %v179, %v192
    %v194 = vcombine.high %v186, %v186
    %v195 = vcombine.high %v193, %v193
    %v197 = vunpack.c.l.s4 1966171168
    %v198 = vunpack.c.0.s8 %v197
    %v199 = vlaneseq
    %v200 = vshrl.u32 %v199, 7
    %v201 = vsub.s32 %v198, %v200
    %v202 = vrot.slane %v186, %v201
    %v204 = vunpack.c.l.s4 1966171168
    %v205 = vunpack.c.0.s8 %v204
    %v206 = vlaneseq
    %v207 = vshrl.u32 %v206, 7
    %v208 = vsub.s32 %v205, %v207
    %v209 = vrot.slane %v193, %v208
    %v211 = vunpack.c.l.s4 1966171168
    %v212 = vunpack.c.0.s8 %v211
    %v213 = vlaneseq
    %v214 = vshrl.u32 %v213, 7
    %v215 = vsub.s32 %v212, %v214
    %v216 = vrot.slane %v194, %v215
    %v218 = vunpack.c.l.s4 1966171168
    %v219 = vunpack.c.0.s8 %v218
    %v220 = vlaneseq
    %v221 = vshrl.u32 %v220, 7
    %v222 = vsub.s32 %v219, %v221
    %v223 = vrot.slane %v195, %v222
    %v224 = vcombine.high %v202, %v202
    %v225 = vcombine.high %v209, %v209
    %v226 = vcombine.high %v216, %v216
    %v227 = vcombine.high %v223, %v223
    %v228 = vcombine.high %v174, %v174
    %v230 = vunpack.c.l.s4 1966171168
    %v231 = vunpack.c.0.s8 %v230
    %v232 = vlaneseq
    %v233 = vshrl.u32 %v232, 7
    %v234 = vsub.s32 %v231, %v233
    %v235 = vrot.slane %v174, %v234
    %v237 = vunpack.c.l.s4 1966171168
    %v238 = vunpack.c.0.s8 %v237
    %v239 = vlaneseq
    %v240 = vshrl.u32 %v239, 7
    %v241 = vsub.s32 %v238, %v240
    %v242 = vrot.slane %v228, %v241
    %v243 = vcombine.high %v235, %v235
    %v244 = vcombine.high %v242, %v242
    %v246 = vunpack.c.l.s4 1966171168
    %v247 = vunpack.c.0.s8 %v246
    %v248 = vlaneseq
    %v249 = vshrl.u32 %v248, 7
    %v250 = vsub.s32 %v247, %v249
    %v251 = vrot.slane %v235, %v250
    %v253 = vunpack.c.l.s4 1966171168
    %v254 = vunpack.c.0.s8 %v253
    %v255 = vlaneseq
    %v256 = vshrl.u32 %v255, 7
    %v257 = vsub.s32 %v254, %v256
    %v258 = vrot.slane %v242, %v257
    %v260 = vunpack.c.l.s4 1966171168
    %v261 = vunpack.c.0.s8 %v260
    %v262 = vlaneseq
    %v263 = vshrl.u32 %v262, 7
    %v264 = vsub.s32 %v261, %v263
    %v265 = vrot.slane %v243, %v264
    %v267 = vunpack.c.l.s4 1966171168
    %v268 = vunpack.c.0.s8 %v267
    %v269 = vlaneseq
    %v270 = vshrl.u32 %v269, 7
    %v271 = vsub.s32 %v268, %v270
    %v272 = vrot.slane %v244, %v271
    %v273 = vcombine.high %v251, %v251
    %v274 = vcombine.high %v258, %v258
    %v275 = vcombine.high %v265, %v265
    %v276 = vcombine.high %v272, %v272
    %v277 = vlaneseq
    %v278 = vshrl.u32 %v277, 7
    %v279 = vsub.s32 0, %v278
    %v280 = vrot.slane %v202, %v279
    %v281 = vlaneseq
    %v282 = vshrl.u32 %v281, 7
    %v283 = vsub.s32 0, %v282
    %v284 = vrot.slane %v216, %v283
    %v285 = vlaneseq
    %v286 = vshrl.u32 %v285, 7
    %v287 = vsub.s32 0, %v286
    %v288 = vrot.slane %v224, %v287
    %v289 = vlaneseq
    %v290 = vshrl.u32 %v289, 7
    %v291 = vsub.s32 0, %v290
    %v292 = vrot.slane %v226, %v291
    %v293 = vlaneseq
    %v294 = vshrl.u32 %v293, 7
    %v295 = vsub.s32 0, %v294
    %v296 = vrot.slane %v209, %v295
    %v297 = vlaneseq
    %v298 = vshrl.u32 %v297, 7
    %v299 = vsub.s32 0, %v298
    %v300 = vrot.slane %v223, %v299
    %v301 = vlaneseq
    %v302 = vshrl.u32 %v301, 7
    %v303 = vsub.s32 0, %v302
    %v304 = vrot.slane %v225, %v303
    %v305 = vlaneseq
    %v306 = vshrl.u32 %v305, 7
    %v307 = vsub.s32 0, %v306
    %v308 = vrot.slane %v227, %v307
    %v309 = vlaneseq
    %v310 = vshrl.u32 %v309, 7
    %v311 = vsub.s32 0, %v310
    %v312 = vrot.slane %v251, %v311
    %v313 = vlaneseq
    %v314 = vshrl.u32 %v313, 7
    %v315 = vsub.s32 0, %v314
    %v316 = vrot.slane %v265, %v315
    %v317 = vlaneseq
    %v318 = vshrl.u32 %v317, 7
    %v319 = vsub.s32 0, %v318
    %v320 = vrot.slane %v273, %v319
    %v321 = vlaneseq
    %v322 = vshrl.u32 %v321, 7
    %v323 = vsub.s32 0, %v322
    %v324 = vrot.slane %v275, %v323
    %v325 = vlaneseq
    %v326 = vshrl.u32 %v325, 7
    %v327 = vsub.s32 0, %v326
    %v328 = vrot.slane %v258, %v327
    %v329 = vlaneseq
    %v330 = vshrl.u32 %v329, 7
    %v331 = vsub.s32 0, %v330
    %v332 = vrot.slane %v272, %v331
    %v333 = vlaneseq
    %v334 = vshrl.u32 %v333, 7
    %v335 = vsub.s32 0, %v334
    %v336 = vrot.slane %v274, %v335
    %v337 = vlaneseq
    %v338 = vshrl.u32 %v337, 7
    %v339 = vsub.s32 0, %v338
    %v340 = vrot.slane %v276, %v339
    %v357 = vadd.f32 %v280, %v166
    %v358 = vadd.f32 %v280, %v172
    %v359 = vadd.f32 %v284, %v166
    %v360 = vadd.f32 %v284, %v172
    %v361 = vadd.f32 %v288, %v166
    %v362 = vadd.f32 %v288, %v172
    %v363 = vadd.f32 %v292, %v166
    %v364 = vadd.f32 %v292, %v172
    %v365 = vadd.f32 %v296, %v166
    %v366 = vadd.f32 %v296, %v172
    %v367 = vadd.f32 %v300, %v166
    %v368 = vadd.f32 %v300, %v172
    %v369 = vadd.f32 %v304, %v166
    %v370 = vadd.f32 %v304, %v172
    %v371 = vadd.f32 %v308, %v166
    %v372 = vadd.f32 %v308, %v172
    %v373 = vadd.f32 %v312, %v166
    %v374 = vadd.f32 %v312, %v172
    %v375 = vadd.f32 %v316, %v166
    %v376 = vadd.f32 %v316, %v172
    %v377 = vadd.f32 %v320, %v166
    %v378 = vadd.f32 %v320, %v172
    %v379 = vadd.f32 %v324, %v166
    %v380 = vadd.f32 %v324, %v172
    %v381 = vadd.f32 %v328, %v166
    %v382 = vadd.f32 %v328, %v172
    %v383 = vadd.f32 %v332, %v166
    %v384 = vadd.f32 %v332, %v172
    %v385 = vadd.f32 %v336, %v166
    %v386 = vadd.f32 %v336, %v172
    %v387 = vadd.f32 %v340, %v166
    %v388 = vadd.f32 %v340, %v172
    %vm389 = vcmp.ge.f32.partialorder %v357, 0.0
    %vm390 = vcmp.ge.f32.partialorder %v358, 0.0
    %vm391 = vcmp.ge.f32.partialorder %v359, 0.0
    %vm392 = vcmp.ge.f32.partialorder %v360, 0.0
    %vm393 = vcmp.ge.f32.partialorder %v361, 0.0
    %vm394 = vcmp.ge.f32.partialorder %v362, 0.0
    %vm395 = vcmp.ge.f32.partialorder %v363, 0.0
    %vm396 = vcmp.ge.f32.partialorder %v364, 0.0
    %vm397 = vcmp.ge.f32.partialorder %v365, 0.0
    %vm398 = vcmp.ge.f32.partialorder %v366, 0.0
    %vm399 = vcmp.ge.f32.partialorder %v367, 0.0
    %vm400 = vcmp.ge.f32.partialorder %v368, 0.0
    %vm401 = vcmp.ge.f32.partialorder %v369, 0.0
    %vm402 = vcmp.ge.f32.partialorder %v370, 0.0
    %vm403 = vcmp.ge.f32.partialorder %v371, 0.0
    %vm404 = vcmp.ge.f32.partialorder %v372, 0.0
    %vm405 = vcmp.ge.f32.partialorder %v373, 0.0
    %vm406 = vcmp.ge.f32.partialorder %v374, 0.0
    %vm407 = vcmp.ge.f32.partialorder %v375, 0.0
    %vm408 = vcmp.ge.f32.partialorder %v376, 0.0
    %vm409 = vcmp.ge.f32.partialorder %v377, 0.0
    %vm410 = vcmp.ge.f32.partialorder %v378, 0.0
    %vm411 = vcmp.ge.f32.partialorder %v379, 0.0
    %vm412 = vcmp.ge.f32.partialorder %v380, 0.0
    %vm413 = vcmp.ge.f32.partialorder %v381, 0.0
    %vm414 = vcmp.ge.f32.partialorder %v382, 0.0
    %vm415 = vcmp.ge.f32.partialorder %v383, 0.0
    %vm416 = vcmp.ge.f32.partialorder %v384, 0.0
    %vm417 = vcmp.ge.f32.partialorder %v385, 0.0
    %vm418 = vcmp.ge.f32.partialorder %v386, 0.0
    %vm419 = vcmp.ge.f32.partialorder %v387, 0.0
    %vm420 = vcmp.ge.f32.partialorder %v388, 0.0
    %v421 = vmul.f32 %v357, 0.2
    %v422 = vmul.f32 %v358, 0.2
    %v423 = vmul.f32 %v359, 0.2
    %v424 = vmul.f32 %v360, 0.2
    %v425 = vmul.f32 %v361, 0.2
    %v426 = vmul.f32 %v362, 0.2
    %v427 = vmul.f32 %v363, 0.2
    %v428 = vmul.f32 %v364, 0.2
    %v429 = vmul.f32 %v365, 0.2
    %v430 = vmul.f32 %v366, 0.2
    %v431 = vmul.f32 %v367, 0.2
    %v432 = vmul.f32 %v368, 0.2
    %v433 = vmul.f32 %v369, 0.2
    %v434 = vmul.f32 %v370, 0.2
    %v435 = vmul.f32 %v371, 0.2
    %v436 = vmul.f32 %v372, 0.2
    %v437 = vmul.f32 %v373, 0.2
    %v438 = vmul.f32 %v374, 0.2
    %v439 = vmul.f32 %v375, 0.2
    %v440 = vmul.f32 %v376, 0.2
    %v441 = vmul.f32 %v377, 0.2
    %v442 = vmul.f32 %v378, 0.2
    %v443 = vmul.f32 %v379, 0.2
    %v444 = vmul.f32 %v380, 0.2
    %v445 = vmul.f32 %v381, 0.2
    %v446 = vmul.f32 %v382, 0.2
    %v447 = vmul.f32 %v383, 0.2
    %v448 = vmul.f32 %v384, 0.2
    %v449 = vmul.f32 %v385, 0.2
    %v450 = vmul.f32 %v386, 0.2
    %v451 = vmul.f32 %v387, 0.2
    %v452 = vmul.f32 %v388, 0.2
    %v453 = vsel %vm389, %v357, %v421
    %v454 = vsel %vm390, %v358, %v422
    %v455 = vsel %vm391, %v359, %v423
    %v456 = vsel %vm392, %v360, %v424
    %v457 = vsel %vm393, %v361, %v425
    %v458 = vsel %vm394, %v362, %v426
    %v459 = vsel %vm395, %v363, %v427
    %v460 = vsel %vm396, %v364, %v428
    %v461 = vsel %vm397, %v365, %v429
    %v462 = vsel %vm398, %v366, %v430
    %v463 = vsel %vm399, %v367, %v431
    %v464 = vsel %vm400, %v368, %v432
    %v465 = vsel %vm401, %v369, %v433
    %v466 = vsel %vm402, %v370, %v434
    %v467 = vsel %vm403, %v371, %v435
    %v468 = vsel %vm404, %v372, %v436
    %v469 = vsel %vm405, %v373, %v437
    %v470 = vsel %vm406, %v374, %v438
    %v471 = vsel %vm407, %v375, %v439
    %v472 = vsel %vm408, %v376, %v440
    %v473 = vsel %vm409, %v377, %v441
    %v474 = vsel %vm410, %v378, %v442
    %v475 = vsel %vm411, %v379, %v443
    %v476 = vsel %vm412, %v380, %v444
    %v477 = vsel %vm413, %v381, %v445
    %v478 = vsel %vm414, %v382, %v446
    %v479 = vsel %vm415, %v383, %v447
    %v480 = vsel %vm416, %v384, %v448
    %v481 = vsel %vm417, %v385, %v449
    %v482 = vsel %vm418, %v386, %v450
    %v483 = vsel %vm419, %v387, %v451
    %v484 = vsel %vm420, %v388, %v452
    %v485 = vlaneseq
    %v486 = vshrl.u32 %v485, 7
    %v487 = vsub.s32 0, %v486
    %v488 = vrot.slane %v176, %v487
    %v489 = vmul.f32 %v453, %v488
    %v490 = vmul.f32 %v454, %v488
    %v491 = vmul.f32 %v455, %v488
    %v492 = vmul.f32 %v456, %v488
    %v493 = vmul.f32 %v457, %v488
    %v494 = vmul.f32 %v458, %v488
    %v495 = vmul.f32 %v459, %v488
    %v496 = vmul.f32 %v460, %v488
    %v497 = vmul.f32 %v461, %v488
    %v498 = vmul.f32 %v462, %v488
    %v499 = vmul.f32 %v463, %v488
    %v500 = vmul.f32 %v464, %v488
    %v501 = vmul.f32 %v465, %v488
    %v502 = vmul.f32 %v466, %v488
    %v503 = vmul.f32 %v467, %v488
    %v504 = vmul.f32 %v468, %v488
    %v505 = vmul.f32 %v469, %v488
    %v506 = vmul.f32 %v470, %v488
    %v507 = vmul.f32 %v471, %v488
    %v508 = vmul.f32 %v472, %v488
    %v509 = vmul.f32 %v473, %v488
    %v510 = vmul.f32 %v474, %v488
    %v511 = vmul.f32 %v475, %v488
    %v512 = vmul.f32 %v476, %v488
    %v513 = vmul.f32 %v477, %v488
    %v514 = vmul.f32 %v478, %v488
    %v515 = vmul.f32 %v479, %v488
    %v516 = vmul.f32 %v480, %v488
    %v517 = vmul.f32 %v481, %v488
    %v518 = vmul.f32 %v482, %v488
    %v519 = vmul.f32 %v483, %v488
    %v520 = vmul.f32 %v484, %v488
    %vm521 = vcmask 261120
    %v522 = vsel %vm521, %v489, 0.0
    %523 = vadd.xlane.f32.xlu0 %v522
    %v524 = vpop.xlane.xlu0 %523
    %v525 = vsel %vm521, %v490, 0.0
    %526 = vadd.xlane.f32.xlu0 %v525
    %v527 = vpop.xlane.xlu0 %526
    %v528 = vsel %vm521, %v491, 0.0
    %529 = vadd.xlane.f32.xlu0 %v528
    %v530 = vpop.xlane.xlu0 %529
    %v531 = vsel %vm521, %v492, 0.0
    %532 = vadd.xlane.f32.xlu0 %v531
    %v533 = vpop.xlane.xlu0 %532
    %v534 = vsel %vm521, %v493, 0.0
    %535 = vadd.xlane.f32.xlu0 %v534
    %v536 = vpop.xlane.xlu0 %535
    %v537 = vsel %vm521, %v494, 0.0
    %538 = vadd.xlane.f32.xlu0 %v537
    %v539 = vpop.xlane.xlu0 %538
    %v540 = vsel %vm521, %v495, 0.0
    %541 = vadd.xlane.f32.xlu0 %v540
    %v542 = vpop.xlane.xlu0 %541
    %v543 = vsel %vm521, %v496, 0.0
    %544 = vadd.xlane.f32.xlu0 %v543
    %v545 = vpop.xlane.xlu0 %544
    %v546 = vsel %vm521, %v497, 0.0
    %547 = vadd.xlane.f32.xlu0 %v546
    %v548 = vpop.xlane.xlu0 %547
    %v549 = vsel %vm521, %v498, 0.0
    %550 = vadd.xlane.f32.xlu0 %v549
    %v551 = vpop.xlane.xlu0 %550
    %v552 = vsel %vm521, %v499, 0.0
    %553 = vadd.xlane.f32.xlu0 %v552
    %v554 = vpop.xlane.xlu0 %553
    %v555 = vsel %vm521, %v500, 0.0
    %556 = vadd.xlane.f32.xlu0 %v555
    %v557 = vpop.xlane.xlu0 %556
    %v558 = vsel %vm521, %v501, 0.0
    %559 = vadd.xlane.f32.xlu0 %v558
    %v560 = vpop.xlane.xlu0 %559
    %v561 = vsel %vm521, %v502, 0.0
    %562 = vadd.xlane.f32.xlu0 %v561
    %v563 = vpop.xlane.xlu0 %562
    %v564 = vsel %vm521, %v503, 0.0
    %565 = vadd.xlane.f32.xlu0 %v564
    %v566 = vpop.xlane.xlu0 %565
    %v567 = vsel %vm521, %v504, 0.0
    %568 = vadd.xlane.f32.xlu0 %v567
    %v569 = vpop.xlane.xlu0 %568
    %v570 = vsel %vm521, %v505, 0.0
    %571 = vadd.xlane.f32.xlu0 %v570
    %v572 = vpop.xlane.xlu0 %571
    %v573 = vsel %vm521, %v506, 0.0
    %574 = vadd.xlane.f32.xlu0 %v573
    %v575 = vpop.xlane.xlu0 %574
    %v576 = vsel %vm521, %v507, 0.0
    %577 = vadd.xlane.f32.xlu0 %v576
    %v578 = vpop.xlane.xlu0 %577
    %v579 = vsel %vm521, %v508, 0.0
    %580 = vadd.xlane.f32.xlu0 %v579
    %v581 = vpop.xlane.xlu0 %580
    %v582 = vsel %vm521, %v509, 0.0
    %583 = vadd.xlane.f32.xlu0 %v582
    %v584 = vpop.xlane.xlu0 %583
    %v585 = vsel %vm521, %v510, 0.0
    %586 = vadd.xlane.f32.xlu0 %v585
    %v587 = vpop.xlane.xlu0 %586
    %v588 = vsel %vm521, %v511, 0.0
    %589 = vadd.xlane.f32.xlu0 %v588
    %v590 = vpop.xlane.xlu0 %589
    %v591 = vsel %vm521, %v512, 0.0
    %592 = vadd.xlane.f32.xlu0 %v591
    %v593 = vpop.xlane.xlu0 %592
    %v594 = vsel %vm521, %v513, 0.0
    %595 = vadd.xlane.f32.xlu0 %v594
    %v596 = vpop.xlane.xlu0 %595
    %v597 = vsel %vm521, %v514, 0.0
    %598 = vadd.xlane.f32.xlu0 %v597
    %v599 = vpop.xlane.xlu0 %598
    %v600 = vsel %vm521, %v515, 0.0
    %601 = vadd.xlane.f32.xlu0 %v600
    %v602 = vpop.xlane.xlu0 %601
    %v603 = vsel %vm521, %v516, 0.0
    %604 = vadd.xlane.f32.xlu0 %v603
    %v605 = vpop.xlane.xlu0 %604
    %v606 = vsel %vm521, %v517, 0.0
    %607 = vadd.xlane.f32.xlu0 %v606
    %v608 = vpop.xlane.xlu0 %607
    %v609 = vsel %vm521, %v518, 0.0
    %610 = vadd.xlane.f32.xlu0 %v609
    %v611 = vpop.xlane.xlu0 %610
    %v612 = vsel %vm521, %v519, 0.0
    %613 = vadd.xlane.f32.xlu0 %v612
    %v614 = vpop.xlane.xlu0 %613
    %v615 = vsel %vm521, %v520, 0.0
    %616 = vadd.xlane.f32.xlu0 %v615
    %v617 = vpop.xlane.xlu0 %616
    %vm618 = vcmp.gt.f32.partialorder %v76, 0.0
    %vm619 = vcmp.gt.f32.partialorder %v77, 0.0
    %v652 = vlaneseq
    %v653 = vand.u32 %v652, 127
    %v654 = vlaneseq
    %v655 = vshrl.u32 %v654, 7
    %v656 = vsub.s32 %v653, %v655
    %v657 = vrot.slane %v524, %v656
    %v658 = vadd.s32 %v653, 4294967288
    %v659 = vlaneseq
    %v660 = vshrl.u32 %v659, 7
    %v661 = vsub.s32 %v658, %v660
    %v662 = vrot.slane %v527, %v661
    %vm663 = vcmask 130112
    %v664 = vsel %vm663, %v662, %v657
    %v665 = vlaneseq
    %v666 = vshrl.u32 %v665, 7
    %v667 = vsub.s32 %v653, %v666
    %v668 = vrot.slane %v530, %v667
    %v669 = vlaneseq
    %v670 = vshrl.u32 %v669, 7
    %v671 = vsub.s32 %v658, %v670
    %v672 = vrot.slane %v533, %v671
    %v673 = vsel %vm663, %v672, %v668
    %v674 = vlaneseq
    %v675 = vshrl.u32 %v674, 7
    %v676 = vsub.s32 %v653, %v675
    %v677 = vrot.slane %v536, %v676
    %v678 = vlaneseq
    %v679 = vshrl.u32 %v678, 7
    %v680 = vsub.s32 %v658, %v679
    %v681 = vrot.slane %v539, %v680
    %v682 = vsel %vm663, %v681, %v677
    %v683 = vlaneseq
    %v684 = vshrl.u32 %v683, 7
    %v685 = vsub.s32 %v653, %v684
    %v686 = vrot.slane %v542, %v685
    %v687 = vlaneseq
    %v688 = vshrl.u32 %v687, 7
    %v689 = vsub.s32 %v658, %v688
    %v690 = vrot.slane %v545, %v689
    %v691 = vsel %vm663, %v690, %v686
    %v692 = vlaneseq
    %v693 = vshrl.u32 %v692, 7
    %v694 = vsub.s32 %v653, %v693
    %v695 = vrot.slane %v548, %v694
    %v696 = vlaneseq
    %v697 = vshrl.u32 %v696, 7
    %v698 = vsub.s32 %v658, %v697
    %v699 = vrot.slane %v551, %v698
    %v700 = vsel %vm663, %v699, %v695
    %v701 = vlaneseq
    %v702 = vshrl.u32 %v701, 7
    %v703 = vsub.s32 %v653, %v702
    %v704 = vrot.slane %v554, %v703
    %v705 = vlaneseq
    %v706 = vshrl.u32 %v705, 7
    %v707 = vsub.s32 %v658, %v706
    %v708 = vrot.slane %v557, %v707
    %v709 = vsel %vm663, %v708, %v704
    %v710 = vlaneseq
    %v711 = vshrl.u32 %v710, 7
    %v712 = vsub.s32 %v653, %v711
    %v713 = vrot.slane %v560, %v712
    %v714 = vlaneseq
    %v715 = vshrl.u32 %v714, 7
    %v716 = vsub.s32 %v658, %v715
    %v717 = vrot.slane %v563, %v716
    %v718 = vsel %vm663, %v717, %v713
    %v719 = vlaneseq
    %v720 = vshrl.u32 %v719, 7
    %v721 = vsub.s32 %v653, %v720
    %v722 = vrot.slane %v566, %v721
    %v723 = vlaneseq
    %v724 = vshrl.u32 %v723, 7
    %v725 = vsub.s32 %v658, %v724
    %v726 = vrot.slane %v569, %v725
    %v727 = vsel %vm663, %v726, %v722
    %v728 = vlaneseq
    %v729 = vshrl.u32 %v728, 7
    %v730 = vsub.s32 %v653, %v729
    %v731 = vrot.slane %v572, %v730
    %v732 = vlaneseq
    %v733 = vshrl.u32 %v732, 7
    %v734 = vsub.s32 %v658, %v733
    %v735 = vrot.slane %v575, %v734
    %v736 = vsel %vm663, %v735, %v731
    %v737 = vlaneseq
    %v738 = vshrl.u32 %v737, 7
    %v739 = vsub.s32 %v653, %v738
    %v740 = vrot.slane %v578, %v739
    %v741 = vlaneseq
    %v742 = vshrl.u32 %v741, 7
    %v743 = vsub.s32 %v658, %v742
    %v744 = vrot.slane %v581, %v743
    %v745 = vsel %vm663, %v744, %v740
    %v746 = vlaneseq
    %v747 = vshrl.u32 %v746, 7
    %v748 = vsub.s32 %v653, %v747
    %v749 = vrot.slane %v584, %v748
    %v750 = vlaneseq
    %v751 = vshrl.u32 %v750, 7
    %v752 = vsub.s32 %v658, %v751
    %v753 = vrot.slane %v587, %v752
    %v754 = vsel %vm663, %v753, %v749
    %v755 = vlaneseq
    %v756 = vshrl.u32 %v755, 7
    %v757 = vsub.s32 %v653, %v756
    %v758 = vrot.slane %v590, %v757
    %v759 = vlaneseq
    %v760 = vshrl.u32 %v759, 7
    %v761 = vsub.s32 %v658, %v760
    %v762 = vrot.slane %v593, %v761
    %v763 = vsel %vm663, %v762, %v758
    %v764 = vlaneseq
    %v765 = vshrl.u32 %v764, 7
    %v766 = vsub.s32 %v653, %v765
    %v767 = vrot.slane %v596, %v766
    %v768 = vlaneseq
    %v769 = vshrl.u32 %v768, 7
    %v770 = vsub.s32 %v658, %v769
    %v771 = vrot.slane %v599, %v770
    %v772 = vsel %vm663, %v771, %v767
    %v773 = vlaneseq
    %v774 = vshrl.u32 %v773, 7
    %v775 = vsub.s32 %v653, %v774
    %v776 = vrot.slane %v602, %v775
    %v777 = vlaneseq
    %v778 = vshrl.u32 %v777, 7
    %v779 = vsub.s32 %v658, %v778
    %v780 = vrot.slane %v605, %v779
    %v781 = vsel %vm663, %v780, %v776
    %v782 = vlaneseq
    %v783 = vshrl.u32 %v782, 7
    %v784 = vsub.s32 %v653, %v783
    %v785 = vrot.slane %v608, %v784
    %v786 = vlaneseq
    %v787 = vshrl.u32 %v786, 7
    %v788 = vsub.s32 %v658, %v787
    %v789 = vrot.slane %v611, %v788
    %v790 = vsel %vm663, %v789, %v785
    %v791 = vlaneseq
    %v792 = vshrl.u32 %v791, 7
    %v793 = vsub.s32 %v653, %v792
    %v794 = vrot.slane %v614, %v793
    %v795 = vlaneseq
    %v796 = vshrl.u32 %v795, 7
    %v797 = vsub.s32 %v658, %v796
    %v798 = vrot.slane %v617, %v797
    %v799 = vsel %vm663, %v798, %v794
    %vm800 = vcmask 1041409
    %v801 = vsel %vm800, %v673, %v664
    %vm802 = vcmask 1042434
    %v803 = vsel %vm802, %v682, %v801
    %vm804 = vcmask 1043459
    %v805 = vsel %vm804, %v691, %v803
    %vm806 = vcmask 1044484
    %v807 = vsel %vm806, %v700, %v805
    %vm808 = vcmask 1045509
    %v809 = vsel %vm808, %v709, %v807
    %vm810 = vcmask 1046534
    %v811 = vsel %vm810, %v718, %v809
    %vm812 = vcmask 1047559
    %v813 = vsel %vm812, %v727, %v811
    %v814 = vsel %vm800, %v745, %v736
    %v815 = vsel %vm802, %v754, %v814
    %v816 = vsel %vm804, %v763, %v815
    %v817 = vsel %vm806, %v772, %v816
    %v818 = vsel %vm808, %v781, %v817
    %v819 = vsel %vm810, %v790, %v818
    %v820 = vsel %vm812, %v799, %v819
    %v823 = vsel %vm618, %v813, -1e+30
    %v824 = vsel %vm619, %v820, -1e+30
    %vm825 = vcmask 130048
    %v826 = vsel %vm825, %v823, -inf
    %827 = vmax.xlane.f32.xlu0 %v826
    %v828 = vpop.xlane.xlu0 %827
    %v829 = vsel %vm825, %v824, -inf
    %830 = vmax.xlane.f32.xlu0 %v829
    %v831 = vpop.xlane.xlu0 %830
    %v832 = vsub.f32 %v823, %v828
    %v833 = vsub.f32 %v824, %v831
    %v834 = vmul.f32 %v832, 1.442695
    %v835 = vpow.pop %v834
    %v836 = vmul.f32 %v833, 1.442695
    %v837 = vpow.pop %v836
    %v838 = vmul.f32 %v835, %v76
    %v839 = vmul.f32 %v837, %v77
    %v840 = vsel %vm825, %v838, 0.0
    %841 = vadd.xlane.f32.xlu0 %v840
    %v842 = vpop.xlane.xlu0 %841
    %v843 = vsel %vm825, %v839, 0.0
    %844 = vadd.xlane.f32.xlu0 %v843
    %v845 = vpop.xlane.xlu0 %844
    %v846 = vadd.f32 %v842, 1e-16
    %v847 = vadd.f32 %v845, 1e-16
    %v849 = vsel %vm825, %v838, 0
    %v852 = vsel %vm825, %v839, 0
    %854 = vmatprep.subr.mxu0 0.0
    %855 = vmatpush1.msra.mxu0 %v166
    %856 = vmatprep.subr.mxu0 0.0
    %857 = vmatpush1.msra.mxu0 %v172
    %858 = vmatprep.subr.mxu0 0.0
    %859 = vmatpush1.msra.mxu0 0.0
    %860 = vmatprep.subr.mxu0 0.0
    %861 = vmatpush1.msra.mxu0 0.0
    %862 = vmatprep.subr.mxu0 0.0
    %863 = vmatpush1.msra.mxu0 0.0
    %864 = vmatprep.subr.mxu0 0.0
    %865 = vmatpush1.msra.mxu0 0.0
    %866 = vmatprep.subr.mxu0 0.0
    %867 = vmatpush1.msra.mxu0 0.0
    %868 = vmatprep.subr.mxu0 0.0
    %869 = vmatpush1.msra.mxu0 0.0
    %870 = vmatprep.subr.mxu0 0.0
    %871 = vmatpush1.msra.mxu0 0.0
    %872 = vmatprep.subr.mxu0 0.0
    %873 = vmatpush1.msra.mxu0 0.0
    %874 = vmatprep.subr.mxu0 0.0
    %875 = vmatpush1.msra.mxu0 0.0
    %876 = vmatprep.subr.mxu0 0.0
    %877 = vmatpush1.msra.mxu0 0.0
    %878 = vmatprep.subr.mxu0 0.0
    %879 = vmatpush1.msra.mxu0 0.0
    %880 = vmatprep.subr.mxu0 0.0
    %881 = vmatpush1.msra.mxu0 0.0
    %882 = vmatprep.subr.mxu0 0.0
    %883 = vmatpush1.msra.mxu0 0.0
    %884 = vmatprep.subr.mxu0 0.0
    %885 = vmatpush1.msra.mxu0 0.0
    %886 = vmatprep.subr.mxu0 0.0
    %887 = vmatpush1.msra.mxu0 0.0
    %888 = vmatprep.subr.mxu0 0.0
    %889 = vmatpush1.msra.mxu0 0.0
    %890 = vmatprep.subr.mxu0 0.0
    %891 = vmatpush1.msra.mxu0 0.0
    %892 = vmatprep.subr.mxu0 0.0
    %893 = vmatpush1.msra.mxu0 0.0
    %894 = vmatprep.subr.mxu0 0.0
    %895 = vmatpush1.msra.mxu0 0.0
    %896 = vmatprep.subr.mxu0 0.0
    %897 = vmatpush1.msra.mxu0 0.0
    %898 = vmatprep.subr.mxu0 0.0
    %899 = vmatpush1.msra.mxu0 0.0
    %900 = vmatprep.subr.mxu0 0.0
    %901 = vmatpush1.msra.mxu0 0.0
    %902 = vmatprep.subr.mxu0 0.0
    %903 = vmatpush1.msra.mxu0 0.0
    %904 = vmatprep.subr.mxu0 0.0
    %905 = vmatpush1.msra.mxu0 0.0
    %906 = vmatprep.subr.mxu0 0.0
    %907 = vmatpush1.msra.mxu0 0.0
    %908 = vmatprep.subr.mxu0 0.0
    %909 = vmatpush1.msra.mxu0 0.0
    %910 = vmatprep.subr.mxu0 0.0
    %911 = vmatpush1.msra.mxu0 0.0
    %912 = vmatprep.subr.mxu0 0.0
    %913 = vmatpush1.msra.mxu0 0.0
    %914 = vmatprep.subr.mxu0 0.0
    %915 = vmatpush1.msra.mxu0 0.0
    %916 = vmatprep.subr.mxu0 0.0
    %917 = vmatpush1.msra.mxu0 0.0
    %918 = vmatprep.mubr.f32.mxu0 0.0
    %919 = vmatmul.mubr.f32.gmra.mrb[0].mxu0 %v849
    %v920 = vpop.f32.mrb[0].mxu0
    %v921 = vadd.f32 0.0, %v920
    %v922 = vpop.f32.mrb[0].mxu0
    %923 = vmatprep.mubr.f32.mxu0 0.0
    %924 = vmatmul.mubr.f32.gmra.mrb[0].mxu0 %v852
    %v925 = vpop.f32.mrb[0].mxu0
    %v926 = vadd.f32 0.0, %v925
    %v927 = vpop.f32.mrb[0].mxu0
    %928 = vdwg.mxu0
    %v929 = vrcp.pop %v846
    %v930 = vrcp.pop %v847
    %v931 = vmul.f32 %v921, %v929
    %v932 = vmul.f32 %v926, %v930
    %v933 = vadd.f32 %v931, 0.0
    %v934 = vadd.f32 %v932, 0.0
    %v935 = vld [vmem:[%s4 + $0x1] sm:$0x1]
    %v936 = vlaneseq
    %v937 = vshrl.u32 %v936, 7
    %v938 = vsub.s32 0, %v937
    %v939 = vrot.slane %v935, %v938
    %941 = vrot.lane.b32.xlu0 %v939, 32
    %v942 = vpop.permute.xlu0 %941
    %v944 = vmul.f32 %v453, %v942
    %v945 = vmul.f32 %v454, %v942
    %v946 = vmul.f32 %v455, %v942
    %v947 = vmul.f32 %v456, %v942
    %v948 = vmul.f32 %v457, %v942
    %v949 = vmul.f32 %v458, %v942
    %v950 = vmul.f32 %v459, %v942
    %v951 = vmul.f32 %v460, %v942
    %v952 = vmul.f32 %v461, %v942
    %v953 = vmul.f32 %v462, %v942
    %v954 = vmul.f32 %v463, %v942
    %v955 = vmul.f32 %v464, %v942
    %v956 = vmul.f32 %v465, %v942
    %v957 = vmul.f32 %v466, %v942
    %v958 = vmul.f32 %v467, %v942
    %v959 = vmul.f32 %v468, %v942
    %v960 = vmul.f32 %v469, %v942
    %v961 = vmul.f32 %v470, %v942
    %v962 = vmul.f32 %v471, %v942
    %v963 = vmul.f32 %v472, %v942
    %v964 = vmul.f32 %v473, %v942
    %v965 = vmul.f32 %v474, %v942
    %v966 = vmul.f32 %v475, %v942
    %v967 = vmul.f32 %v476, %v942
    %v968 = vmul.f32 %v477, %v942
    %v969 = vmul.f32 %v478, %v942
    %v970 = vmul.f32 %v479, %v942
    %v971 = vmul.f32 %v480, %v942
    %v972 = vmul.f32 %v481, %v942
    %v973 = vmul.f32 %v482, %v942
    %v974 = vmul.f32 %v483, %v942
    %v975 = vmul.f32 %v484, %v942
    %1008 = vrot.lane.b32.xlu0 %v944, 96
    %v1009 = vpop.permute.xlu0 %1008
    %1010 = vrot.lane.b32.xlu0 %v945, 96
    %v1011 = vpop.permute.xlu0 %1010
    %1012 = vrot.lane.b32.xlu0 %v946, 96
    %v1013 = vpop.permute.xlu0 %1012
    %1014 = vrot.lane.b32.xlu0 %v947, 96
    %v1015 = vpop.permute.xlu0 %1014
    %1016 = vrot.lane.b32.xlu0 %v948, 96
    %v1017 = vpop.permute.xlu0 %1016
    %1018 = vrot.lane.b32.xlu0 %v949, 96
    %v1019 = vpop.permute.xlu0 %1018
    %1020 = vrot.lane.b32.xlu0 %v950, 96
    %v1021 = vpop.permute.xlu0 %1020
    %1022 = vrot.lane.b32.xlu0 %v951, 96
    %v1023 = vpop.permute.xlu0 %1022
    %1024 = vrot.lane.b32.xlu0 %v952, 96
    %v1025 = vpop.permute.xlu0 %1024
    %1026 = vrot.lane.b32.xlu0 %v953, 96
    %v1027 = vpop.permute.xlu0 %1026
    %1028 = vrot.lane.b32.xlu0 %v954, 96
    %v1029 = vpop.permute.xlu0 %1028
    %1030 = vrot.lane.b32.xlu0 %v955, 96
    %v1031 = vpop.permute.xlu0 %1030
    %1032 = vrot.lane.b32.xlu0 %v956, 96
    %v1033 = vpop.permute.xlu0 %1032
    %1034 = vrot.lane.b32.xlu0 %v957, 96
    %v1035 = vpop.permute.xlu0 %1034
    %1036 = vrot.lane.b32.xlu0 %v958, 96
    %v1037 = vpop.permute.xlu0 %1036
    %1038 = vrot.lane.b32.xlu0 %v959, 96
    %v1039 = vpop.permute.xlu0 %1038
    %1040 = vrot.lane.b32.xlu0 %v960, 96
    %v1041 = vpop.permute.xlu0 %1040
    %1042 = vrot.lane.b32.xlu0 %v961, 96
    %v1043 = vpop.permute.xlu0 %1042
    %1044 = vrot.lane.b32.xlu0 %v962, 96
    %v1045 = vpop.permute.xlu0 %1044
    %1046 = vrot.lane.b32.xlu0 %v963, 96
    %v1047 = vpop.permute.xlu0 %1046
    %1048 = vrot.lane.b32.xlu0 %v964, 96
    %v1049 = vpop.permute.xlu0 %1048
    %1050 = vrot.lane.b32.xlu0 %v965, 96
    %v1051 = vpop.permute.xlu0 %1050
    %1052 = vrot.lane.b32.xlu0 %v966, 96
    %v1053 = vpop.permute.xlu0 %1052
    %1054 = vrot.lane.b32.xlu0 %v967, 96
    %v1055 = vpop.permute.xlu0 %1054
    %1056 = vrot.lane.b32.xlu0 %v968, 96
    %v1057 = vpop.permute.xlu0 %1056
    %1058 = vrot.lane.b32.xlu0 %v969, 96
    %v1059 = vpop.permute.xlu0 %1058
    %1060 = vrot.lane.b32.xlu0 %v970, 96
    %v1061 = vpop.permute.xlu0 %1060
    %1062 = vrot.lane.b32.xlu0 %v971, 96
    %v1063 = vpop.permute.xlu0 %1062
    %1064 = vrot.lane.b32.xlu0 %v972, 96
    %v1065 = vpop.permute.xlu0 %1064
    %1066 = vrot.lane.b32.xlu0 %v973, 96
    %v1067 = vpop.permute.xlu0 %1066
    %1068 = vrot.lane.b32.xlu0 %v974, 96
    %v1069 = vpop.permute.xlu0 %1068
    %1070 = vrot.lane.b32.xlu0 %v975, 96
    %v1071 = vpop.permute.xlu0 %1070
    %v1104 = vsel %vm521, %v1009, 0.0
    %1105 = vadd.xlane.f32.xlu0 %v1104
    %v1106 = vpop.xlane.xlu0 %1105
    %v1107 = vsel %vm521, %v1011, 0.0
    %1108 = vadd.xlane.f32.xlu0 %v1107
    %v1109 = vpop.xlane.xlu0 %1108
    %v1110 = vsel %vm521, %v1013, 0.0
    %1111 = vadd.xlane.f32.xlu0 %v1110
    %v1112 = vpop.xlane.xlu0 %1111
    %v1113 = vsel %vm521, %v1015, 0.0
    %1114 = vadd.xlane.f32.xlu0 %v1113
    %v1115 = vpop.xlane.xlu0 %1114
    %v1116 = vsel %vm521, %v1017, 0.0
    %1117 = vadd.xlane.f32.xlu0 %v1116
    %v1118 = vpop.xlane.xlu0 %1117
    %v1119 = vsel %vm521, %v1019, 0.0
    %1120 = vadd.xlane.f32.xlu0 %v1119
    %v1121 = vpop.xlane.xlu0 %1120
    %v1122 = vsel %vm521, %v1021, 0.0
    %1123 = vadd.xlane.f32.xlu0 %v1122
    %v1124 = vpop.xlane.xlu0 %1123
    %v1125 = vsel %vm521, %v1023, 0.0
    %1126 = vadd.xlane.f32.xlu0 %v1125
    %v1127 = vpop.xlane.xlu0 %1126
    %v1128 = vsel %vm521, %v1025, 0.0
    %1129 = vadd.xlane.f32.xlu0 %v1128
    %v1130 = vpop.xlane.xlu0 %1129
    %v1131 = vsel %vm521, %v1027, 0.0
    %1132 = vadd.xlane.f32.xlu0 %v1131
    %v1133 = vpop.xlane.xlu0 %1132
    %v1134 = vsel %vm521, %v1029, 0.0
    %1135 = vadd.xlane.f32.xlu0 %v1134
    %v1136 = vpop.xlane.xlu0 %1135
    %v1137 = vsel %vm521, %v1031, 0.0
    %1138 = vadd.xlane.f32.xlu0 %v1137
    %v1139 = vpop.xlane.xlu0 %1138
    %v1140 = vsel %vm521, %v1033, 0.0
    %1141 = vadd.xlane.f32.xlu0 %v1140
    %v1142 = vpop.xlane.xlu0 %1141
    %v1143 = vsel %vm521, %v1035, 0.0
    %1144 = vadd.xlane.f32.xlu0 %v1143
    %v1145 = vpop.xlane.xlu0 %1144
    %v1146 = vsel %vm521, %v1037, 0.0
    %1147 = vadd.xlane.f32.xlu0 %v1146
    %v1148 = vpop.xlane.xlu0 %1147
    %v1149 = vsel %vm521, %v1039, 0.0
    %1150 = vadd.xlane.f32.xlu0 %v1149
    %v1151 = vpop.xlane.xlu0 %1150
    %v1152 = vsel %vm521, %v1041, 0.0
    %1153 = vadd.xlane.f32.xlu0 %v1152
    %v1154 = vpop.xlane.xlu0 %1153
    %v1155 = vsel %vm521, %v1043, 0.0
    %1156 = vadd.xlane.f32.xlu0 %v1155
    %v1157 = vpop.xlane.xlu0 %1156
    %v1158 = vsel %vm521, %v1045, 0.0
    %1159 = vadd.xlane.f32.xlu0 %v1158
    %v1160 = vpop.xlane.xlu0 %1159
    %v1161 = vsel %vm521, %v1047, 0.0
    %1162 = vadd.xlane.f32.xlu0 %v1161
    %v1163 = vpop.xlane.xlu0 %1162
    %v1164 = vsel %vm521, %v1049, 0.0
    %1165 = vadd.xlane.f32.xlu0 %v1164
    %v1166 = vpop.xlane.xlu0 %1165
    %v1167 = vsel %vm521, %v1051, 0.0
    %1168 = vadd.xlane.f32.xlu0 %v1167
    %v1169 = vpop.xlane.xlu0 %1168
    %v1170 = vsel %vm521, %v1053, 0.0
    %1171 = vadd.xlane.f32.xlu0 %v1170
    %v1172 = vpop.xlane.xlu0 %1171
    %v1173 = vsel %vm521, %v1055, 0.0
    %1174 = vadd.xlane.f32.xlu0 %v1173
    %v1175 = vpop.xlane.xlu0 %1174
    %v1176 = vsel %vm521, %v1057, 0.0
    %1177 = vadd.xlane.f32.xlu0 %v1176
    %v1178 = vpop.xlane.xlu0 %1177
    %v1179 = vsel %vm521, %v1059, 0.0
    %1180 = vadd.xlane.f32.xlu0 %v1179
    %v1181 = vpop.xlane.xlu0 %1180
    %v1182 = vsel %vm521, %v1061, 0.0
    %1183 = vadd.xlane.f32.xlu0 %v1182
    %v1184 = vpop.xlane.xlu0 %1183
    %v1185 = vsel %vm521, %v1063, 0.0
    %1186 = vadd.xlane.f32.xlu0 %v1185
    %v1187 = vpop.xlane.xlu0 %1186
    %v1188 = vsel %vm521, %v1065, 0.0
    %1189 = vadd.xlane.f32.xlu0 %v1188
    %v1190 = vpop.xlane.xlu0 %1189
    %v1191 = vsel %vm521, %v1067, 0.0
    %1192 = vadd.xlane.f32.xlu0 %v1191
    %v1193 = vpop.xlane.xlu0 %1192
    %v1194 = vsel %vm521, %v1069, 0.0
    %1195 = vadd.xlane.f32.xlu0 %v1194
    %v1196 = vpop.xlane.xlu0 %1195
    %v1197 = vsel %vm521, %v1071, 0.0
    %1198 = vadd.xlane.f32.xlu0 %v1197
    %v1199 = vpop.xlane.xlu0 %1198
    %v1232 = vlaneseq
    %v1233 = vshrl.u32 %v1232, 7
    %v1234 = vsub.s32 %v653, %v1233
    %v1235 = vrot.slane %v1106, %v1234
    %v1236 = vlaneseq
    %v1237 = vshrl.u32 %v1236, 7
    %v1238 = vsub.s32 %v658, %v1237
    %v1239 = vrot.slane %v1109, %v1238
    %v1240 = vsel %vm663, %v1239, %v1235
    %v1241 = vlaneseq
    %v1242 = vshrl.u32 %v1241, 7
    %v1243 = vsub.s32 %v653, %v1242
    %v1244 = vrot.slane %v1112, %v1243
    %v1245 = vlaneseq
    %v1246 = vshrl.u32 %v1245, 7
    %v1247 = vsub.s32 %v658, %v1246
    %v1248 = vrot.slane %v1115, %v1247
    %v1249 = vsel %vm663, %v1248, %v1244
    %v1250 = vlaneseq
    %v1251 = vshrl.u32 %v1250, 7
    %v1252 = vsub.s32 %v653, %v1251
    %v1253 = vrot.slane %v1118, %v1252
    %v1254 = vlaneseq
    %v1255 = vshrl.u32 %v1254, 7
    %v1256 = vsub.s32 %v658, %v1255
    %v1257 = vrot.slane %v1121, %v1256
    %v1258 = vsel %vm663, %v1257, %v1253
    %v1259 = vlaneseq
    %v1260 = vshrl.u32 %v1259, 7
    %v1261 = vsub.s32 %v653, %v1260
    %v1262 = vrot.slane %v1124, %v1261
    %v1263 = vlaneseq
    %v1264 = vshrl.u32 %v1263, 7
    %v1265 = vsub.s32 %v658, %v1264
    %v1266 = vrot.slane %v1127, %v1265
    %v1267 = vsel %vm663, %v1266, %v1262
    %v1268 = vlaneseq
    %v1269 = vshrl.u32 %v1268, 7
    %v1270 = vsub.s32 %v653, %v1269
    %v1271 = vrot.slane %v1130, %v1270
    %v1272 = vlaneseq
    %v1273 = vshrl.u32 %v1272, 7
    %v1274 = vsub.s32 %v658, %v1273
    %v1275 = vrot.slane %v1133, %v1274
    %v1276 = vsel %vm663, %v1275, %v1271
    %v1277 = vlaneseq
    %v1278 = vshrl.u32 %v1277, 7
    %v1279 = vsub.s32 %v653, %v1278
    %v1280 = vrot.slane %v1136, %v1279
    %v1281 = vlaneseq
    %v1282 = vshrl.u32 %v1281, 7
    %v1283 = vsub.s32 %v658, %v1282
    %v1284 = vrot.slane %v1139, %v1283
    %v1285 = vsel %vm663, %v1284, %v1280
    %v1286 = vlaneseq
    %v1287 = vshrl.u32 %v1286, 7
    %v1288 = vsub.s32 %v653, %v1287
    %v1289 = vrot.slane %v1142, %v1288
    %v1290 = vlaneseq
    %v1291 = vshrl.u32 %v1290, 7
    %v1292 = vsub.s32 %v658, %v1291
    %v1293 = vrot.slane %v1145, %v1292
    %v1294 = vsel %vm663, %v1293, %v1289
    %v1295 = vlaneseq
    %v1296 = vshrl.u32 %v1295, 7
    %v1297 = vsub.s32 %v653, %v1296
    %v1298 = vrot.slane %v1148, %v1297
    %v1299 = vlaneseq
    %v1300 = vshrl.u32 %v1299, 7
    %v1301 = vsub.s32 %v658, %v1300
    %v1302 = vrot.slane %v1151, %v1301
    %v1303 = vsel %vm663, %v1302, %v1298
    %v1304 = vlaneseq
    %v1305 = vshrl.u32 %v1304, 7
    %v1306 = vsub.s32 %v653, %v1305
    %v1307 = vrot.slane %v1154, %v1306
    %v1308 = vlaneseq
    %v1309 = vshrl.u32 %v1308, 7
    %v1310 = vsub.s32 %v658, %v1309
    %v1311 = vrot.slane %v1157, %v1310
    %v1312 = vsel %vm663, %v1311, %v1307
    %v1313 = vlaneseq
    %v1314 = vshrl.u32 %v1313, 7
    %v1315 = vsub.s32 %v653, %v1314
    %v1316 = vrot.slane %v1160, %v1315
    %v1317 = vlaneseq
    %v1318 = vshrl.u32 %v1317, 7
    %v1319 = vsub.s32 %v658, %v1318
    %v1320 = vrot.slane %v1163, %v1319
    %v1321 = vsel %vm663, %v1320, %v1316
    %v1322 = vlaneseq
    %v1323 = vshrl.u32 %v1322, 7
    %v1324 = vsub.s32 %v653, %v1323
    %v1325 = vrot.slane %v1166, %v1324
    %v1326 = vlaneseq
    %v1327 = vshrl.u32 %v1326, 7
    %v1328 = vsub.s32 %v658, %v1327
    %v1329 = vrot.slane %v1169, %v1328
    %v1330 = vsel %vm663, %v1329, %v1325
    %v1331 = vlaneseq
    %v1332 = vshrl.u32 %v1331, 7
    %v1333 = vsub.s32 %v653, %v1332
    %v1334 = vrot.slane %v1172, %v1333
    %v1335 = vlaneseq
    %v1336 = vshrl.u32 %v1335, 7
    %v1337 = vsub.s32 %v658, %v1336
    %v1338 = vrot.slane %v1175, %v1337
    %v1339 = vsel %vm663, %v1338, %v1334
    %v1340 = vlaneseq
    %v1341 = vshrl.u32 %v1340, 7
    %v1342 = vsub.s32 %v653, %v1341
    %v1343 = vrot.slane %v1178, %v1342
    %v1344 = vlaneseq
    %v1345 = vshrl.u32 %v1344, 7
    %v1346 = vsub.s32 %v658, %v1345
    %v1347 = vrot.slane %v1181, %v1346
    %v1348 = vsel %vm663, %v1347, %v1343
    %v1349 = vlaneseq
    %v1350 = vshrl.u32 %v1349, 7
    %v1351 = vsub.s32 %v653, %v1350
    %v1352 = vrot.slane %v1184, %v1351
    %v1353 = vlaneseq
    %v1354 = vshrl.u32 %v1353, 7
    %v1355 = vsub.s32 %v658, %v1354
    %v1356 = vrot.slane %v1187, %v1355
    %v1357 = vsel %vm663, %v1356, %v1352
    %v1358 = vlaneseq
    %v1359 = vshrl.u32 %v1358, 7
    %v1360 = vsub.s32 %v653, %v1359
    %v1361 = vrot.slane %v1190, %v1360
    %v1362 = vlaneseq
    %v1363 = vshrl.u32 %v1362, 7
    %v1364 = vsub.s32 %v658, %v1363
    %v1365 = vrot.slane %v1193, %v1364
    %v1366 = vsel %vm663, %v1365, %v1361
    %v1367 = vlaneseq
    %v1368 = vshrl.u32 %v1367, 7
    %v1369 = vsub.s32 %v653, %v1368
    %v1370 = vrot.slane %v1196, %v1369
    %v1371 = vlaneseq
    %v1372 = vshrl.u32 %v1371, 7
    %v1373 = vsub.s32 %v658, %v1372
    %v1374 = vrot.slane %v1199, %v1373
    %v1375 = vsel %vm663, %v1374, %v1370
    %v1376 = vsel %vm800, %v1249, %v1240
    %v1377 = vsel %vm802, %v1258, %v1376
    %v1378 = vsel %vm804, %v1267, %v1377
    %v1379 = vsel %vm806, %v1276, %v1378
    %v1380 = vsel %vm808, %v1285, %v1379
    %v1381 = vsel %vm810, %v1294, %v1380
    %v1382 = vsel %vm812, %v1303, %v1381
    %v1383 = vsel %vm800, %v1321, %v1312
    %v1384 = vsel %vm802, %v1330, %v1383
    %v1385 = vsel %vm804, %v1339, %v1384
    %v1386 = vsel %vm806, %v1348, %v1385
    %v1387 = vsel %vm808, %v1357, %v1386
    %v1388 = vsel %vm810, %v1366, %v1387
    %v1389 = vsel %vm812, %v1375, %v1388
    %v1392 = vsel %vm618, %v1382, -1e+30
    %v1393 = vsel %vm619, %v1389, -1e+30
    %v1394 = vsel %vm825, %v1392, -inf
    %1395 = vmax.xlane.f32.xlu0 %v1394
    %v1396 = vpop.xlane.xlu0 %1395
    %v1397 = vsel %vm825, %v1393, -inf
    %1398 = vmax.xlane.f32.xlu0 %v1397
    %v1399 = vpop.xlane.xlu0 %1398
    %v1400 = vsub.f32 %v1392, %v1396
    %v1401 = vsub.f32 %v1393, %v1399
    %v1402 = vmul.f32 %v1400, 1.442695
    %v1403 = vpow.pop %v1402
    %v1404 = vmul.f32 %v1401, 1.442695
    %v1405 = vpow.pop %v1404
    %v1406 = vmul.f32 %v1403, %v76
    %v1407 = vmul.f32 %v1405, %v77
    %v1408 = vsel %vm825, %v1406, 0.0
    %1409 = vadd.xlane.f32.xlu0 %v1408
    %v1410 = vpop.xlane.xlu0 %1409
    %v1411 = vsel %vm825, %v1407, 0.0
    %1412 = vadd.xlane.f32.xlu0 %v1411
    %v1413 = vpop.xlane.xlu0 %1412
    %v1414 = vadd.f32 %v1410, 1e-16
    %v1415 = vadd.f32 %v1413, 1e-16
    %1418 = vrot.lane.b32.xlu0 %v166, 96
    %v1419 = vpop.permute.xlu0 %1418
    %1420 = vrot.lane.b32.xlu0 %v172, 96
    %v1421 = vpop.permute.xlu0 %1420
    %v1425 = vsel %vm825, %v1406, 0
    %v1428 = vsel %vm825, %v1407, 0
    %1430 = vmatprep.subr.mxu0 0.0
    %1431 = vmatpush1.msra.mxu0 %v1419
    %1432 = vmatprep.subr.mxu0 0.0
    %1433 = vmatpush1.msra.mxu0 %v1421
    %1434 = vmatprep.subr.mxu0 0.0
    %1435 = vmatpush1.msra.mxu0 0.0
    %1436 = vmatprep.subr.mxu0 0.0
    %1437 = vmatpush1.msra.mxu0 0.0
    %1438 = vmatprep.subr.mxu0 0.0
    %1439 = vmatpush1.msra.mxu0 0.0
    %1440 = vmatprep.subr.mxu0 0.0
    %1441 = vmatpush1.msra.mxu0 0.0
    %1442 = vmatprep.subr.mxu0 0.0
    %1443 = vmatpush1.msra.mxu0 0.0
    %1444 = vmatprep.subr.mxu0 0.0
    %1445 = vmatpush1.msra.mxu0 0.0
    %1446 = vmatprep.subr.mxu0 0.0
    %1447 = vmatpush1.msra.mxu0 0.0
    %1448 = vmatprep.subr.mxu0 0.0
    %1449 = vmatpush1.msra.mxu0 0.0
    %1450 = vmatprep.subr.mxu0 0.0
    %1451 = vmatpush1.msra.mxu0 0.0
    %1452 = vmatprep.subr.mxu0 0.0
    %1453 = vmatpush1.msra.mxu0 0.0
    %1454 = vmatprep.subr.mxu0 0.0
    %1455 = vmatpush1.msra.mxu0 0.0
    %1456 = vmatprep.subr.mxu0 0.0
    %1457 = vmatpush1.msra.mxu0 0.0
    %1458 = vmatprep.subr.mxu0 0.0
    %1459 = vmatpush1.msra.mxu0 0.0
    %1460 = vmatprep.subr.mxu0 0.0
    %1461 = vmatpush1.msra.mxu0 0.0
    %1462 = vmatprep.subr.mxu0 0.0
    %1463 = vmatpush1.msra.mxu0 0.0
    %1464 = vmatprep.subr.mxu0 0.0
    %1465 = vmatpush1.msra.mxu0 0.0
    %1466 = vmatprep.subr.mxu0 0.0
    %1467 = vmatpush1.msra.mxu0 0.0
    %1468 = vmatprep.subr.mxu0 0.0
    %1469 = vmatpush1.msra.mxu0 0.0
    %1470 = vmatprep.subr.mxu0 0.0
    %1471 = vmatpush1.msra.mxu0 0.0
    %1472 = vmatprep.subr.mxu0 0.0
    %1473 = vmatpush1.msra.mxu0 0.0
    %1474 = vmatprep.subr.mxu0 0.0
    %1475 = vmatpush1.msra.mxu0 0.0
    %1476 = vmatprep.subr.mxu0 0.0
    %1477 = vmatpush1.msra.mxu0 0.0
    %1478 = vmatprep.subr.mxu0 0.0
    %1479 = vmatpush1.msra.mxu0 0.0
    %1480 = vmatprep.subr.mxu0 0.0
    %1481 = vmatpush1.msra.mxu0 0.0
    %1482 = vmatprep.subr.mxu0 0.0
    %1483 = vmatpush1.msra.mxu0 0.0
    %1484 = vmatprep.subr.mxu0 0.0
    %1485 = vmatpush1.msra.mxu0 0.0
    %1486 = vmatprep.subr.mxu0 0.0
    %1487 = vmatpush1.msra.mxu0 0.0
    %1488 = vmatprep.subr.mxu0 0.0
    %1489 = vmatpush1.msra.mxu0 0.0
    %1490 = vmatprep.subr.mxu0 0.0
    %1491 = vmatpush1.msra.mxu0 0.0
    %1492 = vmatprep.subr.mxu0 0.0
    %1493 = vmatpush1.msra.mxu0 0.0
    %1494 = vmatprep.mubr.f32.mxu0 0.0
    %1495 = vmatmul.mubr.f32.gmra.mrb[0].mxu0 %v1425
    %v1496 = vpop.f32.mrb[0].mxu0
    %v1497 = vadd.f32 0.0, %v1496
    %v1498 = vpop.f32.mrb[0].mxu0
    %1499 = vmatprep.mubr.f32.mxu0 0.0
    %1500 = vmatmul.mubr.f32.gmra.mrb[0].mxu0 %v1428
    %v1501 = vpop.f32.mrb[0].mxu0
    %v1502 = vadd.f32 0.0, %v1501
    %v1503 = vpop.f32.mrb[0].mxu0
    %1504 = vdwg.mxu0
    %v1505 = vrcp.pop %v1414
    %v1506 = vrcp.pop %v1415
    %v1507 = vmul.f32 %v1497, %v1505
    %v1508 = vmul.f32 %v1502, %v1506
    %v1509 = vadd.f32 %v933, %v1507
    %v1510 = vadd.f32 %v934, %v1508
    %v1511 = vld [vmem:[%s4 + $0x2] sm:$0x1]
    %v1512 = vlaneseq
    %v1513 = vshrl.u32 %v1512, 7
    %v1514 = vsub.s32 0, %v1513
    %v1515 = vrot.slane %v1511, %v1514
    %1517 = vrot.lane.b32.xlu0 %v1515, 64
    %v1518 = vpop.permute.xlu0 %1517
    %v1520 = vmul.f32 %v453, %v1518
    %v1521 = vmul.f32 %v454, %v1518
    %v1522 = vmul.f32 %v455, %v1518
    %v1523 = vmul.f32 %v456, %v1518
    %v1524 = vmul.f32 %v457, %v1518
    %v1525 = vmul.f32 %v458, %v1518
    %v1526 = vmul.f32 %v459, %v1518
    %v1527 = vmul.f32 %v460, %v1518
    %v1528 = vmul.f32 %v461, %v1518
    %v1529 = vmul.f32 %v462, %v1518
    %v1530 = vmul.f32 %v463, %v1518
    %v1531 = vmul.f32 %v464, %v1518
    %v1532 = vmul.f32 %v465, %v1518
    %v1533 = vmul.f32 %v466, %v1518
    %v1534 = vmul.f32 %v467, %v1518
    %v1535 = vmul.f32 %v468, %v1518
    %v1536 = vmul.f32 %v469, %v1518
    %v1537 = vmul.f32 %v470, %v1518
    %v1538 = vmul.f32 %v471, %v1518
    %v1539 = vmul.f32 %v472, %v1518
    %v1540 = vmul.f32 %v473, %v1518
    %v1541 = vmul.f32 %v474, %v1518
    %v1542 = vmul.f32 %v475, %v1518
    %v1543 = vmul.f32 %v476, %v1518
    %v1544 = vmul.f32 %v477, %v1518
    %v1545 = vmul.f32 %v478, %v1518
    %v1546 = vmul.f32 %v479, %v1518
    %v1547 = vmul.f32 %v480, %v1518
    %v1548 = vmul.f32 %v481, %v1518
    %v1549 = vmul.f32 %v482, %v1518
    %v1550 = vmul.f32 %v483, %v1518
    %v1551 = vmul.f32 %v484, %v1518
    %1584 = vrot.lane.b32.xlu0 %v1520, 64
    %v1585 = vpop.permute.xlu0 %1584
    %1586 = vrot.lane.b32.xlu0 %v1521, 64
    %v1587 = vpop.permute.xlu0 %1586
    %1588 = vrot.lane.b32.xlu0 %v1522, 64
    %v1589 = vpop.permute.xlu0 %1588
    %1590 = vrot.lane.b32.xlu0 %v1523, 64
    %v1591 = vpop.permute.xlu0 %1590
    %1592 = vrot.lane.b32.xlu0 %v1524, 64
    %v1593 = vpop.permute.xlu0 %1592
    %1594 = vrot.lane.b32.xlu0 %v1525, 64
    %v1595 = vpop.permute.xlu0 %1594
    %1596 = vrot.lane.b32.xlu0 %v1526, 64
    %v1597 = vpop.permute.xlu0 %1596
    %1598 = vrot.lane.b32.xlu0 %v1527, 64
    %v1599 = vpop.permute.xlu0 %1598
    %1600 = vrot.lane.b32.xlu0 %v1528, 64
    %v1601 = vpop.permute.xlu0 %1600
    %1602 = vrot.lane.b32.xlu0 %v1529, 64
    %v1603 = vpop.permute.xlu0 %1602
    %1604 = vrot.lane.b32.xlu0 %v1530, 64
    %v1605 = vpop.permute.xlu0 %1604
    %1606 = vrot.lane.b32.xlu0 %v1531, 64
    %v1607 = vpop.permute.xlu0 %1606
    %1608 = vrot.lane.b32.xlu0 %v1532, 64
    %v1609 = vpop.permute.xlu0 %1608
    %1610 = vrot.lane.b32.xlu0 %v1533, 64
    %v1611 = vpop.permute.xlu0 %1610
    %1612 = vrot.lane.b32.xlu0 %v1534, 64
    %v1613 = vpop.permute.xlu0 %1612
    %1614 = vrot.lane.b32.xlu0 %v1535, 64
    %v1615 = vpop.permute.xlu0 %1614
    %1616 = vrot.lane.b32.xlu0 %v1536, 64
    %v1617 = vpop.permute.xlu0 %1616
    %1618 = vrot.lane.b32.xlu0 %v1537, 64
    %v1619 = vpop.permute.xlu0 %1618
    %1620 = vrot.lane.b32.xlu0 %v1538, 64
    %v1621 = vpop.permute.xlu0 %1620
    %1622 = vrot.lane.b32.xlu0 %v1539, 64
    %v1623 = vpop.permute.xlu0 %1622
    %1624 = vrot.lane.b32.xlu0 %v1540, 64
    %v1625 = vpop.permute.xlu0 %1624
    %1626 = vrot.lane.b32.xlu0 %v1541, 64
    %v1627 = vpop.permute.xlu0 %1626
    %1628 = vrot.lane.b32.xlu0 %v1542, 64
    %v1629 = vpop.permute.xlu0 %1628
    %1630 = vrot.lane.b32.xlu0 %v1543, 64
    %v1631 = vpop.permute.xlu0 %1630
    %1632 = vrot.lane.b32.xlu0 %v1544, 64
    %v1633 = vpop.permute.xlu0 %1632
    %1634 = vrot.lane.b32.xlu0 %v1545, 64
    %v1635 = vpop.permute.xlu0 %1634
    %1636 = vrot.lane.b32.xlu0 %v1546, 64
    %v1637 = vpop.permute.xlu0 %1636
    %1638 = vrot.lane.b32.xlu0 %v1547, 64
    %v1639 = vpop.permute.xlu0 %1638
    %1640 = vrot.lane.b32.xlu0 %v1548, 64
    %v1641 = vpop.permute.xlu0 %1640
    %1642 = vrot.lane.b32.xlu0 %v1549, 64
    %v1643 = vpop.permute.xlu0 %1642
    %1644 = vrot.lane.b32.xlu0 %v1550, 64
    %v1645 = vpop.permute.xlu0 %1644
    %1646 = vrot.lane.b32.xlu0 %v1551, 64
    %v1647 = vpop.permute.xlu0 %1646
    %v1680 = vsel %vm521, %v1585, 0.0
    %1681 = vadd.xlane.f32.xlu0 %v1680
    %v1682 = vpop.xlane.xlu0 %1681
    %v1683 = vsel %vm521, %v1587, 0.0
    %1684 = vadd.xlane.f32.xlu0 %v1683
    %v1685 = vpop.xlane.xlu0 %1684
    %v1686 = vsel %vm521, %v1589, 0.0
    %1687 = vadd.xlane.f32.xlu0 %v1686
    %v1688 = vpop.xlane.xlu0 %1687
    %v1689 = vsel %vm521, %v1591, 0.0
    %1690 = vadd.xlane.f32.xlu0 %v1689
    %v1691 = vpop.xlane.xlu0 %1690
    %v1692 = vsel %vm521, %v1593, 0.0
    %1693 = vadd.xlane.f32.xlu0 %v1692
    %v1694 = vpop.xlane.xlu0 %1693
    %v1695 = vsel %vm521, %v1595, 0.0
    %1696 = vadd.xlane.f32.xlu0 %v1695
    %v1697 = vpop.xlane.xlu0 %1696
    %v1698 = vsel %vm521, %v1597, 0.0
    %1699 = vadd.xlane.f32.xlu0 %v1698
    %v1700 = vpop.xlane.xlu0 %1699
    %v1701 = vsel %vm521, %v1599, 0.0
    %1702 = vadd.xlane.f32.xlu0 %v1701
    %v1703 = vpop.xlane.xlu0 %1702
    %v1704 = vsel %vm521, %v1601, 0.0
    %1705 = vadd.xlane.f32.xlu0 %v1704
    %v1706 = vpop.xlane.xlu0 %1705
    %v1707 = vsel %vm521, %v1603, 0.0
    %1708 = vadd.xlane.f32.xlu0 %v1707
    %v1709 = vpop.xlane.xlu0 %1708
    %v1710 = vsel %vm521, %v1605, 0.0
    %1711 = vadd.xlane.f32.xlu0 %v1710
    %v1712 = vpop.xlane.xlu0 %1711
    %v1713 = vsel %vm521, %v1607, 0.0
    %1714 = vadd.xlane.f32.xlu0 %v1713
    %v1715 = vpop.xlane.xlu0 %1714
    %v1716 = vsel %vm521, %v1609, 0.0
    %1717 = vadd.xlane.f32.xlu0 %v1716
    %v1718 = vpop.xlane.xlu0 %1717
    %v1719 = vsel %vm521, %v1611, 0.0
    %1720 = vadd.xlane.f32.xlu0 %v1719
    %v1721 = vpop.xlane.xlu0 %1720
    %v1722 = vsel %vm521, %v1613, 0.0
    %1723 = vadd.xlane.f32.xlu0 %v1722
    %v1724 = vpop.xlane.xlu0 %1723
    %v1725 = vsel %vm521, %v1615, 0.0
    %1726 = vadd.xlane.f32.xlu0 %v1725
    %v1727 = vpop.xlane.xlu0 %1726
    %v1728 = vsel %vm521, %v1617, 0.0
    %1729 = vadd.xlane.f32.xlu0 %v1728
    %v1730 = vpop.xlane.xlu0 %1729
    %v1731 = vsel %vm521, %v1619, 0.0
    %1732 = vadd.xlane.f32.xlu0 %v1731
    %v1733 = vpop.xlane.xlu0 %1732
    %v1734 = vsel %vm521, %v1621, 0.0
    %1735 = vadd.xlane.f32.xlu0 %v1734
    %v1736 = vpop.xlane.xlu0 %1735
    %v1737 = vsel %vm521, %v1623, 0.0
    %1738 = vadd.xlane.f32.xlu0 %v1737
    %v1739 = vpop.xlane.xlu0 %1738
    %v1740 = vsel %vm521, %v1625, 0.0
    %1741 = vadd.xlane.f32.xlu0 %v1740
    %v1742 = vpop.xlane.xlu0 %1741
    %v1743 = vsel %vm521, %v1627, 0.0
    %1744 = vadd.xlane.f32.xlu0 %v1743
    %v1745 = vpop.xlane.xlu0 %1744
    %v1746 = vsel %vm521, %v1629, 0.0
    %1747 = vadd.xlane.f32.xlu0 %v1746
    %v1748 = vpop.xlane.xlu0 %1747
    %v1749 = vsel %vm521, %v1631, 0.0
    %1750 = vadd.xlane.f32.xlu0 %v1749
    %v1751 = vpop.xlane.xlu0 %1750
    %v1752 = vsel %vm521, %v1633, 0.0
    %1753 = vadd.xlane.f32.xlu0 %v1752
    %v1754 = vpop.xlane.xlu0 %1753
    %v1755 = vsel %vm521, %v1635, 0.0
    %1756 = vadd.xlane.f32.xlu0 %v1755
    %v1757 = vpop.xlane.xlu0 %1756
    %v1758 = vsel %vm521, %v1637, 0.0
    %1759 = vadd.xlane.f32.xlu0 %v1758
    %v1760 = vpop.xlane.xlu0 %1759
    %v1761 = vsel %vm521, %v1639, 0.0
    %1762 = vadd.xlane.f32.xlu0 %v1761
    %v1763 = vpop.xlane.xlu0 %1762
    %v1764 = vsel %vm521, %v1641, 0.0
    %1765 = vadd.xlane.f32.xlu0 %v1764
    %v1766 = vpop.xlane.xlu0 %1765
    %v1767 = vsel %vm521, %v1643, 0.0
    %1768 = vadd.xlane.f32.xlu0 %v1767
    %v1769 = vpop.xlane.xlu0 %1768
    %v1770 = vsel %vm521, %v1645, 0.0
    %1771 = vadd.xlane.f32.xlu0 %v1770
    %v1772 = vpop.xlane.xlu0 %1771
    %v1773 = vsel %vm521, %v1647, 0.0
    %1774 = vadd.xlane.f32.xlu0 %v1773
    %v1775 = vpop.xlane.xlu0 %1774
    %v1808 = vlaneseq
    %v1809 = vshrl.u32 %v1808, 7
    %v1810 = vsub.s32 %v653, %v1809
    %v1811 = vrot.slane %v1682, %v1810
    %v1812 = vlaneseq
    %v1813 = vshrl.u32 %v1812, 7
    %v1814 = vsub.s32 %v658, %v1813
    %v1815 = vrot.slane %v1685, %v1814
    %v1816 = vsel %vm663, %v1815, %v1811
    %v1817 = vlaneseq
    %v1818 = vshrl.u32 %v1817, 7
    %v1819 = vsub.s32 %v653, %v1818
    %v1820 = vrot.slane %v1688, %v1819
    %v1821 = vlaneseq
    %v1822 = vshrl.u32 %v1821, 7
    %v1823 = vsub.s32 %v658, %v1822
    %v1824 = vrot.slane %v1691, %v1823
    %v1825 = vsel %vm663, %v1824, %v1820
    %v1826 = vlaneseq
    %v1827 = vshrl.u32 %v1826, 7
    %v1828 = vsub.s32 %v653, %v1827
    %v1829 = vrot.slane %v1694, %v1828
    %v1830 = vlaneseq
    %v1831 = vshrl.u32 %v1830, 7
    %v1832 = vsub.s32 %v658, %v1831
    %v1833 = vrot.slane %v1697, %v1832
    %v1834 = vsel %vm663, %v1833, %v1829
    %v1835 = vlaneseq
    %v1836 = vshrl.u32 %v1835, 7
    %v1837 = vsub.s32 %v653, %v1836
    %v1838 = vrot.slane %v1700, %v1837
    %v1839 = vlaneseq
    %v1840 = vshrl.u32 %v1839, 7
    %v1841 = vsub.s32 %v658, %v1840
    %v1842 = vrot.slane %v1703, %v1841
    %v1843 = vsel %vm663, %v1842, %v1838
    %v1844 = vlaneseq
    %v1845 = vshrl.u32 %v1844, 7
    %v1846 = vsub.s32 %v653, %v1845
    %v1847 = vrot.slane %v1706, %v1846
    %v1848 = vlaneseq
    %v1849 = vshrl.u32 %v1848, 7
    %v1850 = vsub.s32 %v658, %v1849
    %v1851 = vrot.slane %v1709, %v1850
    %v1852 = vsel %vm663, %v1851, %v1847
    %v1853 = vlaneseq
    %v1854 = vshrl.u32 %v1853, 7
    %v1855 = vsub.s32 %v653, %v1854
    %v1856 = vrot.slane %v1712, %v1855
    %v1857 = vlaneseq
    %v1858 = vshrl.u32 %v1857, 7
    %v1859 = vsub.s32 %v658, %v1858
    %v1860 = vrot.slane %v1715, %v1859
    %v1861 = vsel %vm663, %v1860, %v1856
    %v1862 = vlaneseq
    %v1863 = vshrl.u32 %v1862, 7
    %v1864 = vsub.s32 %v653, %v1863
    %v1865 = vrot.slane %v1718, %v1864
    %v1866 = vlaneseq
    %v1867 = vshrl.u32 %v1866, 7
    %v1868 = vsub.s32 %v658, %v1867
    %v1869 = vrot.slane %v1721, %v1868
    %v1870 = vsel %vm663, %v1869, %v1865
    %v1871 = vlaneseq
    %v1872 = vshrl.u32 %v1871, 7
    %v1873 = vsub.s32 %v653, %v1872
    %v1874 = vrot.slane %v1724, %v1873
    %v1875 = vlaneseq
    %v1876 = vshrl.u32 %v1875, 7
    %v1877 = vsub.s32 %v658, %v1876
    %v1878 = vrot.slane %v1727, %v1877
    %v1879 = vsel %vm663, %v1878, %v1874
    %v1880 = vlaneseq
    %v1881 = vshrl.u32 %v1880, 7
    %v1882 = vsub.s32 %v653, %v1881
    %v1883 = vrot.slane %v1730, %v1882
    %v1884 = vlaneseq
    %v1885 = vshrl.u32 %v1884, 7
    %v1886 = vsub.s32 %v658, %v1885
    %v1887 = vrot.slane %v1733, %v1886
    %v1888 = vsel %vm663, %v1887, %v1883
    %v1889 = vlaneseq
    %v1890 = vshrl.u32 %v1889, 7
    %v1891 = vsub.s32 %v653, %v1890
    %v1892 = vrot.slane %v1736, %v1891
    %v1893 = vlaneseq
    %v1894 = vshrl.u32 %v1893, 7
    %v1895 = vsub.s32 %v658, %v1894
    %v1896 = vrot.slane %v1739, %v1895
    %v1897 = vsel %vm663, %v1896, %v1892
    %v1898 = vlaneseq
    %v1899 = vshrl.u32 %v1898, 7
    %v1900 = vsub.s32 %v653, %v1899
    %v1901 = vrot.slane %v1742, %v1900
    %v1902 = vlaneseq
    %v1903 = vshrl.u32 %v1902, 7
    %v1904 = vsub.s32 %v658, %v1903
    %v1905 = vrot.slane %v1745, %v1904
    %v1906 = vsel %vm663, %v1905, %v1901
    %v1907 = vlaneseq
    %v1908 = vshrl.u32 %v1907, 7
    %v1909 = vsub.s32 %v653, %v1908
    %v1910 = vrot.slane %v1748, %v1909
    %v1911 = vlaneseq
    %v1912 = vshrl.u32 %v1911, 7
    %v1913 = vsub.s32 %v658, %v1912
    %v1914 = vrot.slane %v1751, %v1913
    %v1915 = vsel %vm663, %v1914, %v1910
    %v1916 = vlaneseq
    %v1917 = vshrl.u32 %v1916, 7
    %v1918 = vsub.s32 %v653, %v1917
    %v1919 = vrot.slane %v1754, %v1918
    %v1920 = vlaneseq
    %v1921 = vshrl.u32 %v1920, 7
    %v1922 = vsub.s32 %v658, %v1921
    %v1923 = vrot.slane %v1757, %v1922
    %v1924 = vsel %vm663, %v1923, %v1919
    %v1925 = vlaneseq
    %v1926 = vshrl.u32 %v1925, 7
    %v1927 = vsub.s32 %v653, %v1926
    %v1928 = vrot.slane %v1760, %v1927
    %v1929 = vlaneseq
    %v1930 = vshrl.u32 %v1929, 7
    %v1931 = vsub.s32 %v658, %v1930
    %v1932 = vrot.slane %v1763, %v1931
    %v1933 = vsel %vm663, %v1932, %v1928
    %v1934 = vlaneseq
    %v1935 = vshrl.u32 %v1934, 7
    %v1936 = vsub.s32 %v653, %v1935
    %v1937 = vrot.slane %v1766, %v1936
    %v1938 = vlaneseq
    %v1939 = vshrl.u32 %v1938, 7
    %v1940 = vsub.s32 %v658, %v1939
    %v1941 = vrot.slane %v1769, %v1940
    %v1942 = vsel %vm663, %v1941, %v1937
    %v1943 = vlaneseq
    %v1944 = vshrl.u32 %v1943, 7
    %v1945 = vsub.s32 %v653, %v1944
    %v1946 = vrot.slane %v1772, %v1945
    %v1947 = vlaneseq
    %v1948 = vshrl.u32 %v1947, 7
    %v1949 = vsub.s32 %v658, %v1948
    %v1950 = vrot.slane %v1775, %v1949
    %v1951 = vsel %vm663, %v1950, %v1946
    %v1952 = vsel %vm800, %v1825, %v1816
    %v1953 = vsel %vm802, %v1834, %v1952
    %v1954 = vsel %vm804, %v1843, %v1953
    %v1955 = vsel %vm806, %v1852, %v1954
    %v1956 = vsel %vm808, %v1861, %v1955
    %v1957 = vsel %vm810, %v1870, %v1956
    %v1958 = vsel %vm812, %v1879, %v1957
    %v1959 = vsel %vm800, %v1897, %v1888
    %v1960 = vsel %vm802, %v1906, %v1959
    %v1961 = vsel %vm804, %v1915, %v1960
    %v1962 = vsel %vm806, %v1924, %v1961
    %v1963 = vsel %vm808, %v1933, %v1962
    %v1964 = vsel %vm810, %v1942, %v1963
    %v1965 = vsel %vm812, %v1951, %v1964
    %v1968 = vsel %vm618, %v1958, -1e+30
    %v1969 = vsel %vm619, %v1965, -1e+30
    %v1970 = vsel %vm825, %v1968, -inf
    %1971 = vmax.xlane.f32.xlu0 %v1970
    %v1972 = vpop.xlane.xlu0 %1971
    %v1973 = vsel %vm825, %v1969, -inf
    %1974 = vmax.xlane.f32.xlu0 %v1973
    %v1975 = vpop.xlane.xlu0 %1974
    %v1976 = vsub.f32 %v1968, %v1972
    %v1977 = vsub.f32 %v1969, %v1975
    %v1978 = vmul.f32 %v1976, 1.442695
    %v1979 = vpow.pop %v1978
    %v1980 = vmul.f32 %v1977, 1.442695
    %v1981 = vpow.pop %v1980
    %v1982 = vmul.f32 %v1979, %v76
    %v1983 = vmul.f32 %v1981, %v77
    %v1984 = vsel %vm825, %v1982, 0.0
    %1985 = vadd.xlane.f32.xlu0 %v1984
    %v1986 = vpop.xlane.xlu0 %1985
    %v1987 = vsel %vm825, %v1983, 0.0
    %1988 = vadd.xlane.f32.xlu0 %v1987
    %v1989 = vpop.xlane.xlu0 %1988
    %v1990 = vadd.f32 %v1986, 1e-16
    %v1991 = vadd.f32 %v1989, 1e-16
    %1992 = vrot.lane.b32.xlu0 %v166, 64
    %v1993 = vpop.permute.xlu0 %1992
    %1994 = vrot.lane.b32.xlu0 %v172, 64
    %v1995 = vpop.permute.xlu0 %1994
    %v1999 = vsel %vm825, %v1982, 0
    %v2002 = vsel %vm825, %v1983, 0
    %2004 = vmatprep.subr.mxu0 0.0
    %2005 = vmatpush1.msra.mxu0 %v1993
    %2006 = vmatprep.subr.mxu0 0.0
    %2007 = vmatpush1.msra.mxu0 %v1995
    %2008 = vmatprep.subr.mxu0 0.0
    %2009 = vmatpush1.msra.mxu0 0.0
    %2010 = vmatprep.subr.mxu0 0.0
    %2011 = vmatpush1.msra.mxu0 0.0
    %2012 = vmatprep.subr.mxu0 0.0
    %2013 = vmatpush1.msra.mxu0 0.0
    %2014 = vmatprep.subr.mxu0 0.0
    %2015 = vmatpush1.msra.mxu0 0.0
    %2016 = vmatprep.subr.mxu0 0.0
    %2017 = vmatpush1.msra.mxu0 0.0
    %2018 = vmatprep.subr.mxu0 0.0
    %2019 = vmatpush1.msra.mxu0 0.0
    %2020 = vmatprep.subr.mxu0 0.0
    %2021 = vmatpush1.msra.mxu0 0.0
    %2022 = vmatprep.subr.mxu0 0.0
    %2023 = vmatpush1.msra.mxu0 0.0
    %2024 = vmatprep.subr.mxu0 0.0
    %2025 = vmatpush1.msra.mxu0 0.0
    %2026 = vmatprep.subr.mxu0 0.0
    %2027 = vmatpush1.msra.mxu0 0.0
    %2028 = vmatprep.subr.mxu0 0.0
    %2029 = vmatpush1.msra.mxu0 0.0
    %2030 = vmatprep.subr.mxu0 0.0
    %2031 = vmatpush1.msra.mxu0 0.0
    %2032 = vmatprep.subr.mxu0 0.0
    %2033 = vmatpush1.msra.mxu0 0.0
    %2034 = vmatprep.subr.mxu0 0.0
    %2035 = vmatpush1.msra.mxu0 0.0
    %2036 = vmatprep.subr.mxu0 0.0
    %2037 = vmatpush1.msra.mxu0 0.0
    %2038 = vmatprep.subr.mxu0 0.0
    %2039 = vmatpush1.msra.mxu0 0.0
    %2040 = vmatprep.subr.mxu0 0.0
    %2041 = vmatpush1.msra.mxu0 0.0
    %2042 = vmatprep.subr.mxu0 0.0
    %2043 = vmatpush1.msra.mxu0 0.0
    %2044 = vmatprep.subr.mxu0 0.0
    %2045 = vmatpush1.msra.mxu0 0.0
    %2046 = vmatprep.subr.mxu0 0.0
    %2047 = vmatpush1.msra.mxu0 0.0
    %2048 = vmatprep.subr.mxu0 0.0
    %2049 = vmatpush1.msra.mxu0 0.0
    %2050 = vmatprep.subr.mxu0 0.0
    %2051 = vmatpush1.msra.mxu0 0.0
    %2052 = vmatprep.subr.mxu0 0.0
    %2053 = vmatpush1.msra.mxu0 0.0
    %2054 = vmatprep.subr.mxu0 0.0
    %2055 = vmatpush1.msra.mxu0 0.0
    %2056 = vmatprep.subr.mxu0 0.0
    %2057 = vmatpush1.msra.mxu0 0.0
    %2058 = vmatprep.subr.mxu0 0.0
    %2059 = vmatpush1.msra.mxu0 0.0
    %2060 = vmatprep.subr.mxu0 0.0
    %2061 = vmatpush1.msra.mxu0 0.0
    %2062 = vmatprep.subr.mxu0 0.0
    %2063 = vmatpush1.msra.mxu0 0.0
    %2064 = vmatprep.subr.mxu0 0.0
    %2065 = vmatpush1.msra.mxu0 0.0
    %2066 = vmatprep.subr.mxu0 0.0
    %2067 = vmatpush1.msra.mxu0 0.0
    %2068 = vmatprep.mubr.f32.mxu0 0.0
    %2069 = vmatmul.mubr.f32.gmra.mrb[0].mxu0 %v1999
    %v2070 = vpop.f32.mrb[0].mxu0
    %v2071 = vadd.f32 0.0, %v2070
    %v2072 = vpop.f32.mrb[0].mxu0
    %2073 = vmatprep.mubr.f32.mxu0 0.0
    %2074 = vmatmul.mubr.f32.gmra.mrb[0].mxu0 %v2002
    %v2075 = vpop.f32.mrb[0].mxu0
    %v2076 = vadd.f32 0.0, %v2075
    %v2077 = vpop.f32.mrb[0].mxu0
    %2078 = vdwg.mxu0
    %v2079 = vrcp.pop %v1990
    %v2080 = vrcp.pop %v1991
    %v2081 = vmul.f32 %v2071, %v2079
    %v2082 = vmul.f32 %v2076, %v2080
    %v2083 = vadd.f32 %v1509, %v2081
    %v2084 = vadd.f32 %v1510, %v2082
    %v2085 = vld [vmem:[%s4 + $0x3] sm:$0x1]
    %v2086 = vlaneseq
    %v2087 = vshrl.u32 %v2086, 7
    %v2088 = vsub.s32 0, %v2087
    %v2089 = vrot.slane %v2085, %v2088
    %2091 = vrot.lane.b32.xlu0 %v2089, 96
    %v2092 = vpop.permute.xlu0 %2091
    %v2094 = vmul.f32 %v453, %v2092
    %v2095 = vmul.f32 %v454, %v2092
    %v2096 = vmul.f32 %v455, %v2092
    %v2097 = vmul.f32 %v456, %v2092
    %v2098 = vmul.f32 %v457, %v2092
    %v2099 = vmul.f32 %v458, %v2092
    %v2100 = vmul.f32 %v459, %v2092
    %v2101 = vmul.f32 %v460, %v2092
    %v2102 = vmul.f32 %v461, %v2092
    %v2103 = vmul.f32 %v462, %v2092
    %v2104 = vmul.f32 %v463, %v2092
    %v2105 = vmul.f32 %v464, %v2092
    %v2106 = vmul.f32 %v465, %v2092
    %v2107 = vmul.f32 %v466, %v2092
    %v2108 = vmul.f32 %v467, %v2092
    %v2109 = vmul.f32 %v468, %v2092
    %v2110 = vmul.f32 %v469, %v2092
    %v2111 = vmul.f32 %v470, %v2092
    %v2112 = vmul.f32 %v471, %v2092
    %v2113 = vmul.f32 %v472, %v2092
    %v2114 = vmul.f32 %v473, %v2092
    %v2115 = vmul.f32 %v474, %v2092
    %v2116 = vmul.f32 %v475, %v2092
    %v2117 = vmul.f32 %v476, %v2092
    %v2118 = vmul.f32 %v477, %v2092
    %v2119 = vmul.f32 %v478, %v2092
    %v2120 = vmul.f32 %v479, %v2092
    %v2121 = vmul.f32 %v480, %v2092
    %v2122 = vmul.f32 %v481, %v2092
    %v2123 = vmul.f32 %v482, %v2092
    %v2124 = vmul.f32 %v483, %v2092
    %v2125 = vmul.f32 %v484, %v2092
    %2158 = vrot.lane.b32.xlu0 %v2094, 32
    %v2159 = vpop.permute.xlu0 %2158
    %2160 = vrot.lane.b32.xlu0 %v2095, 32
    %v2161 = vpop.permute.xlu0 %2160
    %2162 = vrot.lane.b32.xlu0 %v2096, 32
    %v2163 = vpop.permute.xlu0 %2162
    %2164 = vrot.lane.b32.xlu0 %v2097, 32
    %v2165 = vpop.permute.xlu0 %2164
    %2166 = vrot.lane.b32.xlu0 %v2098, 32
    %v2167 = vpop.permute.xlu0 %2166
    %2168 = vrot.lane.b32.xlu0 %v2099, 32
    %v2169 = vpop.permute.xlu0 %2168
    %2170 = vrot.lane.b32.xlu0 %v2100, 32
    %v2171 = vpop.permute.xlu0 %2170
    %2172 = vrot.lane.b32.xlu0 %v2101, 32
    %v2173 = vpop.permute.xlu0 %2172
    %2174 = vrot.lane.b32.xlu0 %v2102, 32
    %v2175 = vpop.permute.xlu0 %2174
    %2176 = vrot.lane.b32.xlu0 %v2103, 32
    %v2177 = vpop.permute.xlu0 %2176
    %2178 = vrot.lane.b32.xlu0 %v2104, 32
    %v2179 = vpop.permute.xlu0 %2178
    %2180 = vrot.lane.b32.xlu0 %v2105, 32
    %v2181 = vpop.permute.xlu0 %2180
    %2182 = vrot.lane.b32.xlu0 %v2106, 32
    %v2183 = vpop.permute.xlu0 %2182
    %2184 = vrot.lane.b32.xlu0 %v2107, 32
    %v2185 = vpop.permute.xlu0 %2184
    %2186 = vrot.lane.b32.xlu0 %v2108, 32
    %v2187 = vpop.permute.xlu0 %2186
    %2188 = vrot.lane.b32.xlu0 %v2109, 32
    %v2189 = vpop.permute.xlu0 %2188
    %2190 = vrot.lane.b32.xlu0 %v2110, 32
    %v2191 = vpop.permute.xlu0 %2190
    %2192 = vrot.lane.b32.xlu0 %v2111, 32
    %v2193 = vpop.permute.xlu0 %2192
    %2194 = vrot.lane.b32.xlu0 %v2112, 32
    %v2195 = vpop.permute.xlu0 %2194
    %2196 = vrot.lane.b32.xlu0 %v2113, 32
    %v2197 = vpop.permute.xlu0 %2196
    %2198 = vrot.lane.b32.xlu0 %v2114, 32
    %v2199 = vpop.permute.xlu0 %2198
    %2200 = vrot.lane.b32.xlu0 %v2115, 32
    %v2201 = vpop.permute.xlu0 %2200
    %2202 = vrot.lane.b32.xlu0 %v2116, 32
    %v2203 = vpop.permute.xlu0 %2202
    %2204 = vrot.lane.b32.xlu0 %v2117, 32
    %v2205 = vpop.permute.xlu0 %2204
    %2206 = vrot.lane.b32.xlu0 %v2118, 32
    %v2207 = vpop.permute.xlu0 %2206
    %2208 = vrot.lane.b32.xlu0 %v2119, 32
    %v2209 = vpop.permute.xlu0 %2208
    %2210 = vrot.lane.b32.xlu0 %v2120, 32
    %v2211 = vpop.permute.xlu0 %2210
    %2212 = vrot.lane.b32.xlu0 %v2121, 32
    %v2213 = vpop.permute.xlu0 %2212
    %2214 = vrot.lane.b32.xlu0 %v2122, 32
    %v2215 = vpop.permute.xlu0 %2214
    %2216 = vrot.lane.b32.xlu0 %v2123, 32
    %v2217 = vpop.permute.xlu0 %2216
    %2218 = vrot.lane.b32.xlu0 %v2124, 32
    %v2219 = vpop.permute.xlu0 %2218
    %2220 = vrot.lane.b32.xlu0 %v2125, 32
    %v2221 = vpop.permute.xlu0 %2220
    %v2254 = vsel %vm521, %v2159, 0.0
    %2255 = vadd.xlane.f32.xlu0 %v2254
    %v2256 = vpop.xlane.xlu0 %2255
    %v2257 = vsel %vm521, %v2161, 0.0
    %2258 = vadd.xlane.f32.xlu0 %v2257
    %v2259 = vpop.xlane.xlu0 %2258
    %v2260 = vsel %vm521, %v2163, 0.0
    %2261 = vadd.xlane.f32.xlu0 %v2260
    %v2262 = vpop.xlane.xlu0 %2261
    %v2263 = vsel %vm521, %v2165, 0.0
    %2264 = vadd.xlane.f32.xlu0 %v2263
    %v2265 = vpop.xlane.xlu0 %2264
    %v2266 = vsel %vm521, %v2167, 0.0
    %2267 = vadd.xlane.f32.xlu0 %v2266
    %v2268 = vpop.xlane.xlu0 %2267
    %v2269 = vsel %vm521, %v2169, 0.0
    %2270 = vadd.xlane.f32.xlu0 %v2269
    %v2271 = vpop.xlane.xlu0 %2270
    %v2272 = vsel %vm521, %v2171, 0.0
    %2273 = vadd.xlane.f32.xlu0 %v2272
    %v2274 = vpop.xlane.xlu0 %2273
    %v2275 = vsel %vm521, %v2173, 0.0
    %2276 = vadd.xlane.f32.xlu0 %v2275
    %v2277 = vpop.xlane.xlu0 %2276
    %v2278 = vsel %vm521, %v2175, 0.0
    %2279 = vadd.xlane.f32.xlu0 %v2278
    %v2280 = vpop.xlane.xlu0 %2279
    %v2281 = vsel %vm521, %v2177, 0.0
    %2282 = vadd.xlane.f32.xlu0 %v2281
    %v2283 = vpop.xlane.xlu0 %2282
    %v2284 = vsel %vm521, %v2179, 0.0
    %2285 = vadd.xlane.f32.xlu0 %v2284
    %v2286 = vpop.xlane.xlu0 %2285
    %v2287 = vsel %vm521, %v2181, 0.0
    %2288 = vadd.xlane.f32.xlu0 %v2287
    %v2289 = vpop.xlane.xlu0 %2288
    %v2290 = vsel %vm521, %v2183, 0.0
    %2291 = vadd.xlane.f32.xlu0 %v2290
    %v2292 = vpop.xlane.xlu0 %2291
    %v2293 = vsel %vm521, %v2185, 0.0
    %2294 = vadd.xlane.f32.xlu0 %v2293
    %v2295 = vpop.xlane.xlu0 %2294
    %v2296 = vsel %vm521, %v2187, 0.0
    %2297 = vadd.xlane.f32.xlu0 %v2296
    %v2298 = vpop.xlane.xlu0 %2297
    %v2299 = vsel %vm521, %v2189, 0.0
    %2300 = vadd.xlane.f32.xlu0 %v2299
    %v2301 = vpop.xlane.xlu0 %2300
    %v2302 = vsel %vm521, %v2191, 0.0
    %2303 = vadd.xlane.f32.xlu0 %v2302
    %v2304 = vpop.xlane.xlu0 %2303
    %v2305 = vsel %vm521, %v2193, 0.0
    %2306 = vadd.xlane.f32.xlu0 %v2305
    %v2307 = vpop.xlane.xlu0 %2306
    %v2308 = vsel %vm521, %v2195, 0.0
    %2309 = vadd.xlane.f32.xlu0 %v2308
    %v2310 = vpop.xlane.xlu0 %2309
    %v2311 = vsel %vm521, %v2197, 0.0
    %2312 = vadd.xlane.f32.xlu0 %v2311
    %v2313 = vpop.xlane.xlu0 %2312
    %v2314 = vsel %vm521, %v2199, 0.0
    %2315 = vadd.xlane.f32.xlu0 %v2314
    %v2316 = vpop.xlane.xlu0 %2315
    %v2317 = vsel %vm521, %v2201, 0.0
    %2318 = vadd.xlane.f32.xlu0 %v2317
    %v2319 = vpop.xlane.xlu0 %2318
    %v2320 = vsel %vm521, %v2203, 0.0
    %2321 = vadd.xlane.f32.xlu0 %v2320
    %v2322 = vpop.xlane.xlu0 %2321
    %v2323 = vsel %vm521, %v2205, 0.0
    %2324 = vadd.xlane.f32.xlu0 %v2323
    %v2325 = vpop.xlane.xlu0 %2324
    %v2326 = vsel %vm521, %v2207, 0.0
    %2327 = vadd.xlane.f32.xlu0 %v2326
    %v2328 = vpop.xlane.xlu0 %2327
    %v2329 = vsel %vm521, %v2209, 0.0
    %2330 = vadd.xlane.f32.xlu0 %v2329
    %v2331 = vpop.xlane.xlu0 %2330
    %v2332 = vsel %vm521, %v2211, 0.0
    %2333 = vadd.xlane.f32.xlu0 %v2332
    %v2334 = vpop.xlane.xlu0 %2333
    %v2335 = vsel %vm521, %v2213, 0.0
    %2336 = vadd.xlane.f32.xlu0 %v2335
    %v2337 = vpop.xlane.xlu0 %2336
    %v2338 = vsel %vm521, %v2215, 0.0
    %2339 = vadd.xlane.f32.xlu0 %v2338
    %v2340 = vpop.xlane.xlu0 %2339
    %v2341 = vsel %vm521, %v2217, 0.0
    %2342 = vadd.xlane.f32.xlu0 %v2341
    %v2343 = vpop.xlane.xlu0 %2342
    %v2344 = vsel %vm521, %v2219, 0.0
    %2345 = vadd.xlane.f32.xlu0 %v2344
    %v2346 = vpop.xlane.xlu0 %2345
    %v2347 = vsel %vm521, %v2221, 0.0
    %2348 = vadd.xlane.f32.xlu0 %v2347
    %v2349 = vpop.xlane.xlu0 %2348
    %v2382 = vlaneseq
    %v2383 = vshrl.u32 %v2382, 7
    %v2384 = vsub.s32 %v653, %v2383
    %v2385 = vrot.slane %v2256, %v2384
    %v2386 = vlaneseq
    %v2387 = vshrl.u32 %v2386, 7
    %v2388 = vsub.s32 %v658, %v2387
    %v2389 = vrot.slane %v2259, %v2388
    %v2390 = vsel %vm663, %v2389, %v2385
    %v2391 = vlaneseq
    %v2392 = vshrl.u32 %v2391, 7
    %v2393 = vsub.s32 %v653, %v2392
    %v2394 = vrot.slane %v2262, %v2393
    %v2395 = vlaneseq
    %v2396 = vshrl.u32 %v2395, 7
    %v2397 = vsub.s32 %v658, %v2396
    %v2398 = vrot.slane %v2265, %v2397
    %v2399 = vsel %vm663, %v2398, %v2394
    %v2400 = vlaneseq
    %v2401 = vshrl.u32 %v2400, 7
    %v2402 = vsub.s32 %v653, %v2401
    %v2403 = vrot.slane %v2268, %v2402
    %v2404 = vlaneseq
    %v2405 = vshrl.u32 %v2404, 7
    %v2406 = vsub.s32 %v658, %v2405
    %v2407 = vrot.slane %v2271, %v2406
    %v2408 = vsel %vm663, %v2407, %v2403
    %v2409 = vlaneseq
    %v2410 = vshrl.u32 %v2409, 7
    %v2411 = vsub.s32 %v653, %v2410
    %v2412 = vrot.slane %v2274, %v2411
    %v2413 = vlaneseq
    %v2414 = vshrl.u32 %v2413, 7
    %v2415 = vsub.s32 %v658, %v2414
    %v2416 = vrot.slane %v2277, %v2415
    %v2417 = vsel %vm663, %v2416, %v2412
    %v2418 = vlaneseq
    %v2419 = vshrl.u32 %v2418, 7
    %v2420 = vsub.s32 %v653, %v2419
    %v2421 = vrot.slane %v2280, %v2420
    %v2422 = vlaneseq
    %v2423 = vshrl.u32 %v2422, 7
    %v2424 = vsub.s32 %v658, %v2423
    %v2425 = vrot.slane %v2283, %v2424
    %v2426 = vsel %vm663, %v2425, %v2421
    %v2427 = vlaneseq
    %v2428 = vshrl.u32 %v2427, 7
    %v2429 = vsub.s32 %v653, %v2428
    %v2430 = vrot.slane %v2286, %v2429
    %v2431 = vlaneseq
    %v2432 = vshrl.u32 %v2431, 7
    %v2433 = vsub.s32 %v658, %v2432
    %v2434 = vrot.slane %v2289, %v2433
    %v2435 = vsel %vm663, %v2434, %v2430
    %v2436 = vlaneseq
    %v2437 = vshrl.u32 %v2436, 7
    %v2438 = vsub.s32 %v653, %v2437
    %v2439 = vrot.slane %v2292, %v2438
    %v2440 = vlaneseq
    %v2441 = vshrl.u32 %v2440, 7
    %v2442 = vsub.s32 %v658, %v2441
    %v2443 = vrot.slane %v2295, %v2442
    %v2444 = vsel %vm663, %v2443, %v2439
    %v2445 = vlaneseq
    %v2446 = vshrl.u32 %v2445, 7
    %v2447 = vsub.s32 %v653, %v2446
    %v2448 = vrot.slane %v2298, %v2447
    %v2449 = vlaneseq
    %v2450 = vshrl.u32 %v2449, 7
    %v2451 = vsub.s32 %v658, %v2450
    %v2452 = vrot.slane %v2301, %v2451
    %v2453 = vsel %vm663, %v2452, %v2448
    %v2454 = vlaneseq
    %v2455 = vshrl.u32 %v2454, 7
    %v2456 = vsub.s32 %v653, %v2455
    %v2457 = vrot.slane %v2304, %v2456
    %v2458 = vlaneseq
    %v2459 = vshrl.u32 %v2458, 7
    %v2460 = vsub.s32 %v658, %v2459
    %v2461 = vrot.slane %v2307, %v2460
    %v2462 = vsel %vm663, %v2461, %v2457
    %v2463 = vlaneseq
    %v2464 = vshrl.u32 %v2463, 7
    %v2465 = vsub.s32 %v653, %v2464
    %v2466 = vrot.slane %v2310, %v2465
    %v2467 = vlaneseq
    %v2468 = vshrl.u32 %v2467, 7
    %v2469 = vsub.s32 %v658, %v2468
    %v2470 = vrot.slane %v2313, %v2469
    %v2471 = vsel %vm663, %v2470, %v2466
    %v2472 = vlaneseq
    %v2473 = vshrl.u32 %v2472, 7
    %v2474 = vsub.s32 %v653, %v2473
    %v2475 = vrot.slane %v2316, %v2474
    %v2476 = vlaneseq
    %v2477 = vshrl.u32 %v2476, 7
    %v2478 = vsub.s32 %v658, %v2477
    %v2479 = vrot.slane %v2319, %v2478
    %v2480 = vsel %vm663, %v2479, %v2475
    %v2481 = vlaneseq
    %v2482 = vshrl.u32 %v2481, 7
    %v2483 = vsub.s32 %v653, %v2482
    %v2484 = vrot.slane %v2322, %v2483
    %v2485 = vlaneseq
    %v2486 = vshrl.u32 %v2485, 7
    %v2487 = vsub.s32 %v658, %v2486
    %v2488 = vrot.slane %v2325, %v2487
    %v2489 = vsel %vm663, %v2488, %v2484
    %v2490 = vlaneseq
    %v2491 = vshrl.u32 %v2490, 7
    %v2492 = vsub.s32 %v653, %v2491
    %v2493 = vrot.slane %v2328, %v2492
    %v2494 = vlaneseq
    %v2495 = vshrl.u32 %v2494, 7
    %v2496 = vsub.s32 %v658, %v2495
    %v2497 = vrot.slane %v2331, %v2496
    %v2498 = vsel %vm663, %v2497, %v2493
    %v2499 = vlaneseq
    %v2500 = vshrl.u32 %v2499, 7
    %v2501 = vsub.s32 %v653, %v2500
    %v2502 = vrot.slane %v2334, %v2501
    %v2503 = vlaneseq
    %v2504 = vshrl.u32 %v2503, 7
    %v2505 = vsub.s32 %v658, %v2504
    %v2506 = vrot.slane %v2337, %v2505
    %v2507 = vsel %vm663, %v2506, %v2502
    %v2508 = vlaneseq
    %v2509 = vshrl.u32 %v2508, 7
    %v2510 = vsub.s32 %v653, %v2509
    %v2511 = vrot.slane %v2340, %v2510
    %v2512 = vlaneseq
    %v2513 = vshrl.u32 %v2512, 7
    %v2514 = vsub.s32 %v658, %v2513
    %v2515 = vrot.slane %v2343, %v2514
    %v2516 = vsel %vm663, %v2515, %v2511
    %v2517 = vlaneseq
    %v2518 = vshrl.u32 %v2517, 7
    %v2519 = vsub.s32 %v653, %v2518
    %v2520 = vrot.slane %v2346, %v2519
    %v2521 = vlaneseq
    %v2522 = vshrl.u32 %v2521, 7
    %v2523 = vsub.s32 %v658, %v2522
    %v2524 = vrot.slane %v2349, %v2523
    %v2525 = vsel %vm663, %v2524, %v2520
    %v2526 = vsel %vm800, %v2399, %v2390
    %v2527 = vsel %vm802, %v2408, %v2526
    %v2528 = vsel %vm804, %v2417, %v2527
    %v2529 = vsel %vm806, %v2426, %v2528
    %v2530 = vsel %vm808, %v2435, %v2529
    %v2531 = vsel %vm810, %v2444, %v2530
    %v2532 = vsel %vm812, %v2453, %v2531
    %v2533 = vsel %vm800, %v2471, %v2462
    %v2534 = vsel %vm802, %v2480, %v2533
    %v2535 = vsel %vm804, %v2489, %v2534
    %v2536 = vsel %vm806, %v2498, %v2535
    %v2537 = vsel %vm808, %v2507, %v2536
    %v2538 = vsel %vm810, %v2516, %v2537
    %v2539 = vsel %vm812, %v2525, %v2538
    %v2542 = vsel %vm618, %v2532, -1e+30
    %v2543 = vsel %vm619, %v2539, -1e+30
    %v2544 = vsel %vm825, %v2542, -inf
    %2545 = vmax.xlane.f32.xlu0 %v2544
    %v2546 = vpop.xlane.xlu0 %2545
    %v2547 = vsel %vm825, %v2543, -inf
    %2548 = vmax.xlane.f32.xlu0 %v2547
    %v2549 = vpop.xlane.xlu0 %2548
    %v2550 = vsub.f32 %v2542, %v2546
    %v2551 = vsub.f32 %v2543, %v2549
    %v2552 = vmul.f32 %v2550, 1.442695
    %v2553 = vpow.pop %v2552
    %v2554 = vmul.f32 %v2551, 1.442695
    %v2555 = vpow.pop %v2554
    %v2556 = vmul.f32 %v2553, %v76
    %v2557 = vmul.f32 %v2555, %v77
    %v2558 = vsel %vm825, %v2556, 0.0
    %2559 = vadd.xlane.f32.xlu0 %v2558
    %v2560 = vpop.xlane.xlu0 %2559
    %v2561 = vsel %vm825, %v2557, 0.0
    %2562 = vadd.xlane.f32.xlu0 %v2561
    %v2563 = vpop.xlane.xlu0 %2562
    %v2564 = vadd.f32 %v2560, 1e-16
    %v2565 = vadd.f32 %v2563, 1e-16
    %2566 = vrot.lane.b32.xlu0 %v166, 32
    %v2567 = vpop.permute.xlu0 %2566
    %2568 = vrot.lane.b32.xlu0 %v172, 32
    %v2569 = vpop.permute.xlu0 %2568
    %v2573 = vsel %vm825, %v2556, 0
    %v2576 = vsel %vm825, %v2557, 0
    %2578 = vmatprep.subr.mxu0 0.0
    %2579 = vmatpush1.msra.mxu0 %v2567
    %2580 = vmatprep.subr.mxu0 0.0
    %2581 = vmatpush1.msra.mxu0 %v2569
    %2582 = vmatprep.subr.mxu0 0.0
    %2583 = vmatpush1.msra.mxu0 0.0
    %2584 = vmatprep.subr.mxu0 0.0
    %2585 = vmatpush1.msra.mxu0 0.0
    %2586 = vmatprep.subr.mxu0 0.0
    %2587 = vmatpush1.msra.mxu0 0.0
    %2588 = vmatprep.subr.mxu0 0.0
    %2589 = vmatpush1.msra.mxu0 0.0
    %2590 = vmatprep.subr.mxu0 0.0
    %2591 = vmatpush1.msra.mxu0 0.0
    %2592 = vmatprep.subr.mxu0 0.0
    %2593 = vmatpush1.msra.mxu0 0.0
    %2594 = vmatprep.subr.mxu0 0.0
    %2595 = vmatpush1.msra.mxu0 0.0
    %2596 = vmatprep.subr.mxu0 0.0
    %2597 = vmatpush1.msra.mxu0 0.0
    %2598 = vmatprep.subr.mxu0 0.0
    %2599 = vmatpush1.msra.mxu0 0.0
    %2600 = vmatprep.subr.mxu0 0.0
    %2601 = vmatpush1.msra.mxu0 0.0
    %2602 = vmatprep.subr.mxu0 0.0
    %2603 = vmatpush1.msra.mxu0 0.0
    %2604 = vmatprep.subr.mxu0 0.0
    %2605 = vmatpush1.msra.mxu0 0.0
    %2606 = vmatprep.subr.mxu0 0.0
    %2607 = vmatpush1.msra.mxu0 0.0
    %2608 = vmatprep.subr.mxu0 0.0
    %2609 = vmatpush1.msra.mxu0 0.0
    %2610 = vmatprep.subr.mxu0 0.0
    %2611 = vmatpush1.msra.mxu0 0.0
    %2612 = vmatprep.subr.mxu0 0.0
    %2613 = vmatpush1.msra.mxu0 0.0
    %2614 = vmatprep.subr.mxu0 0.0
    %2615 = vmatpush1.msra.mxu0 0.0
    %2616 = vmatprep.subr.mxu0 0.0
    %2617 = vmatpush1.msra.mxu0 0.0
    %2618 = vmatprep.subr.mxu0 0.0
    %2619 = vmatpush1.msra.mxu0 0.0
    %2620 = vmatprep.subr.mxu0 0.0
    %2621 = vmatpush1.msra.mxu0 0.0
    %2622 = vmatprep.subr.mxu0 0.0
    %2623 = vmatpush1.msra.mxu0 0.0
    %2624 = vmatprep.subr.mxu0 0.0
    %2625 = vmatpush1.msra.mxu0 0.0
    %2626 = vmatprep.subr.mxu0 0.0
    %2627 = vmatpush1.msra.mxu0 0.0
    %2628 = vmatprep.subr.mxu0 0.0
    %2629 = vmatpush1.msra.mxu0 0.0
    %2630 = vmatprep.subr.mxu0 0.0
    %2631 = vmatpush1.msra.mxu0 0.0
    %2632 = vmatprep.subr.mxu0 0.0
    %2633 = vmatpush1.msra.mxu0 0.0
    %2634 = vmatprep.subr.mxu0 0.0
    %2635 = vmatpush1.msra.mxu0 0.0
    %2636 = vmatprep.subr.mxu0 0.0
    %2637 = vmatpush1.msra.mxu0 0.0
    %2638 = vmatprep.subr.mxu0 0.0
    %2639 = vmatpush1.msra.mxu0 0.0
    %2640 = vmatprep.subr.mxu0 0.0
    %2641 = vmatpush1.msra.mxu0 0.0
    %2642 = vmatprep.mubr.f32.mxu0 0.0
    %2643 = vmatmul.mubr.f32.gmra.mrb[0].mxu0 %v2573
    %v2644 = vpop.f32.mrb[0].mxu0
    %v2645 = vadd.f32 0.0, %v2644
    %v2646 = vpop.f32.mrb[0].mxu0
    %2647 = vmatprep.mubr.f32.mxu0 0.0
    %2648 = vmatmul.mubr.f32.gmra.mrb[0].mxu0 %v2576
    %v2649 = vpop.f32.mrb[0].mxu0
    %v2650 = vadd.f32 0.0, %v2649
    %v2651 = vpop.f32.mrb[0].mxu0
    %2652 = vdwg.mxu0
    %v2653 = vrcp.pop %v2564
    %v2654 = vrcp.pop %v2565
    %v2655 = vmul.f32 %v2645, %v2653
    %v2656 = vmul.f32 %v2650, %v2654
    %v2657 = vadd.f32 %v2083, %v2655
    %v2658 = vadd.f32 %v2084, %v2656
    %v2659 = vrcp.pop 4.0
    %v2660 = vmul.f32 %v2657, %v2659
    %v2661 = vmul.f32 %v2658, %v2659
    %v2662 = vld [vmem:[%s5] sm:$0x1]
    %v2664 = vlaneseq
    %v2665 = vshrl.u32 %v2664, 7
    %v2666 = vsub.s32 0, %v2665
    %v2667 = vrot.slane %v2662, %v2666
    %v2669 = vadd.f32 %v2660, %v2667
    %v2670 = vadd.f32 %v2661, %v2667
    %v2671 = vsel %vm521, %v2669, 0.0
    %v2672 = vsel %vm521, %v2670, 0.0
    %v2673 = vadd.f32 %v2671, %v2672
    %2674 = vadd.xlane.f32.xlu0 %v2673
    %v2675 = vpop.xlane.xlu0 %2674
    %v2676 = vrot.slane %v2675, 4
    %v2677 = vadd.f32 %v2675, %v2676
    %v2678 = vrot.slane %v2677, 2
    %v2679 = vadd.f32 %v2677, %v2678
    %v2680 = vrot.slane %v2679, 1
    %v2681 = vadd.f32 %v2679, %v2680
    %s2682 = vtos %v2681
    %v2683 = vrcp.pop 512.0
    %s2684 = vtos %v2683
    %s2685 = smul.f32 %s2682, %s2684
    %v2686 = vstv %s2685
    %v2687 = vsub.f32 %v2669, %v2686
    %v2688 = vsub.f32 %v2670, %v2686
    %v2689 = vmul.f32 %v2687, %v2687
    %v2690 = vmul.f32 %v2688, %v2688
    %v2691 = vsel %vm521, %v2689, 0.0
    %v2692 = vsel %vm521, %v2690, 0.0
    %v2693 = vadd.f32 %v2691, %v2692
    %2694 = vadd.xlane.f32.xlu0 %v2693
    %v2695 = vpop.xlane.xlu0 %2694
    %v2696 = vrot.slane %v2695, 4
    %v2697 = vadd.f32 %v2695, %v2696
    %v2698 = vrot.slane %v2697, 2
    %v2699 = vadd.f32 %v2697, %v2698
    %v2700 = vrot.slane %v2699, 1
    %v2701 = vadd.f32 %v2699, %v2700
    %s2702 = vtos %v2701
    %v2703 = vrcp.pop 512.0
    %s2704 = vtos %v2703
    %s2705 = smul.f32 %s2702, %s2704
    %v2706 = vstv %s2705
    %v2707 = vrsqrt.pop %v2706
    %v2708 = vmul.f32 %v2706, %v2707
    %vm2709 = vcmp.eq.f32.partialorder %v2706, inf
    %v2710 = vsel %vm2709, %v2706, %v2708
    %vm2711 = vcmp.eq.f32.partialorder %v2706, 0.0
    %v2712 = vand.u32 %v2706, 2147483648
    %v2713 = vsel %vm2711, %v2712, %v2710
    %s2714 = vtos %v2713
    %s2715 = sadd.f32 %s2714, 1e-05
    %v2716 = vstv %s2715
    %v2717 = vrcp.pop %v2716
    %v2718 = vmul.f32 %v2687, %v2717
    %v2719 = vmul.f32 %v2688, %v2717
    %v2720 = vld [vmem:[%s6] sm:$0x1]
    %v2722 = vlaneseq
    %v2723 = vshrl.u32 %v2722, 7
    %v2724 = vsub.s32 0, %v2723
    %v2725 = vrot.slane %v2720, %v2724
    %v2727 = vmul.f32 %v2718, %v2725
    %v2728 = vmul.f32 %v2719, %v2725
    %v2729 = vld [vmem:[%s7] sm:$0x1]
    %v2731 = vlaneseq
    %v2732 = vshrl.u32 %v2731, 7
    %v2733 = vsub.s32 0, %v2732
    %v2734 = vrot.slane %v2729, %v2733
    %v2736 = vadd.f32 %v2727, %v2734
    %v2737 = vadd.f32 %v2728, %v2734
    %v2738 = vld [vmem:[#allocation5] sm:$0xff]
    %v2739 = vld [vmem:[#allocation5 + $0x8] sm:$0xff]
    %v2740 = vld [vmem:[#allocation5 + $0x10] sm:$0xff]
    %v2741 = vld [vmem:[#allocation5 + $0x18] sm:$0xff]
    %v2742 = vld [vmem:[#allocation5 + $0x20] sm:$0xff]
    %v2743 = vld [vmem:[#allocation5 + $0x28] sm:$0xff]
    %v2744 = vld [vmem:[#allocation5 + $0x30] sm:$0xff]
    %v2745 = vld [vmem:[#allocation5 + $0x38] sm:$0xff]
    %v2746 = vld [vmem:[%s9] sm:$0x3]
    %v2748 = vlaneseq
    %v2749 = vshrl.u32 %v2748, 7
    %v2750 = vsub.s32 0, %v2749
    %v2751 = vrot.slane %v2746, %v2750
    %v2752 = vlaneseq
    %v2753 = vshrl.u32 %v2752, 7
    %v2754 = vsub.s32 1, %v2753
    %v2755 = vrot.slane %v2746, %v2754
    %v2759 = vsel %vm521, %v2736, 0
    %v2762 = vsel %vm521, %v2737, 0
    %2764 = vmatprep.subr.mxu0 %v2739
    %2765 = vmatpush1.msra.mxu0 %v2738
    %2766 = vmatprep.subr.mxu0 %v2741
    %2767 = vmatpush1.msra.mxu0 %v2740
    %2768 = vmatprep.subr.mxu0 %v2743
    %2769 = vmatpush1.msra.mxu0 %v2742
    %2770 = vmatprep.subr.mxu0 %v2745
    %2771 = vmatpush1.msra.mxu0 %v2744
    %2772 = vmatprep.subr.mxu0 0.0
    %2773 = vmatpush1.msra.mxu0 0.0
    %2774 = vmatprep.subr.mxu0 0.0
    %2775 = vmatpush1.msra.mxu0 0.0
    %2776 = vmatprep.subr.mxu0 0.0
    %2777 = vmatpush1.msra.mxu0 0.0
    %2778 = vmatprep.subr.mxu0 0.0
    %2779 = vmatpush1.msra.mxu0 0.0
    %2780 = vmatprep.subr.mxu0 0.0
    %2781 = vmatpush1.msra.mxu0 0.0
    %2782 = vmatprep.subr.mxu0 0.0
    %2783 = vmatpush1.msra.mxu0 0.0
    %2784 = vmatprep.subr.mxu0 0.0
    %2785 = vmatpush1.msra.mxu0 0.0
    %2786 = vmatprep.subr.mxu0 0.0
    %2787 = vmatpush1.msra.mxu0 0.0
    %2788 = vmatprep.subr.mxu0 0.0
    %2789 = vmatpush1.msra.mxu0 0.0
    %2790 = vmatprep.subr.mxu0 0.0
    %2791 = vmatpush1.msra.mxu0 0.0
    %2792 = vmatprep.subr.mxu0 0.0
    %2793 = vmatpush1.msra.mxu0 0.0
    %2794 = vmatprep.subr.mxu0 0.0
    %2795 = vmatpush1.msra.mxu0 0.0
    %2796 = vmatprep.subr.mxu0 0.0
    %2797 = vmatpush1.msra.mxu0 0.0
    %2798 = vmatprep.subr.mxu0 0.0
    %2799 = vmatpush1.msra.mxu0 0.0
    %2800 = vmatprep.subr.mxu0 0.0
    %2801 = vmatpush1.msra.mxu0 0.0
    %2802 = vmatprep.subr.mxu0 0.0
    %2803 = vmatpush1.msra.mxu0 0.0
    %2804 = vmatprep.subr.mxu0 0.0
    %2805 = vmatpush1.msra.mxu0 0.0
    %2806 = vmatprep.subr.mxu0 0.0
    %2807 = vmatpush1.msra.mxu0 0.0
    %2808 = vmatprep.subr.mxu0 0.0
    %2809 = vmatpush1.msra.mxu0 0.0
    %2810 = vmatprep.subr.mxu0 0.0
    %2811 = vmatpush1.msra.mxu0 0.0
    %2812 = vmatprep.subr.mxu0 0.0
    %2813 = vmatpush1.msra.mxu0 0.0
    %2814 = vmatprep.subr.mxu0 0.0
    %2815 = vmatpush1.msra.mxu0 0.0
    %2816 = vmatprep.subr.mxu0 0.0
    %2817 = vmatpush1.msra.mxu0 0.0
    %2818 = vmatprep.subr.mxu0 0.0
    %2819 = vmatpush1.msra.mxu0 0.0
    %2820 = vmatprep.subr.mxu0 0.0
    %2821 = vmatpush1.msra.mxu0 0.0
    %2822 = vmatprep.subr.mxu0 0.0
    %2823 = vmatpush1.msra.mxu0 0.0
    %2824 = vmatprep.subr.mxu0 0.0
    %2825 = vmatpush1.msra.mxu0 0.0
    %2826 = vmatprep.subr.mxu0 0.0
    %2827 = vmatpush1.msra.mxu0 0.0
    %2828 = vmatprep.mubr.f32.mxu0 0.0
    %2829 = vmatmul.mubr.f32.gmra.mrb[0].mxu0 %v2759
    %v2830 = vpop.f32.mrb[0].mxu0
    %v2831 = vadd.f32 %v2751, %v2830
    %v2832 = vpop.f32.mrb[0].mxu0
    %v2833 = vadd.f32 %v2755, %v2832
    %2834 = vmatprep.mubr.f32.mxu0 0.0
    %2835 = vmatmul.mubr.f32.gmra.mrb[0].mxu0 %v2762
    %v2836 = vpop.f32.mrb[0].mxu0
    %v2837 = vadd.f32 %v2751, %v2836
    %v2838 = vpop.f32.mrb[0].mxu0
    %v2839 = vadd.f32 %v2755, %v2838
    %2840 = vdwg.mxu0
    %v2841 = vld [vmem:[%s10] sm:$0x1]
    %v2844 = vcombine.high %v2833, %v2833
    %v2846 = vunpack.c.l.s4 1966171168
    %v2847 = vunpack.c.0.s8 %v2846
    %v2848 = vlaneseq
    %v2849 = vshrl.u32 %v2848, 7
    %v2850 = vsub.s32 %v2847, %v2849
    %v2851 = vrot.slane %v2833, %v2850
    %v2853 = vunpack.c.l.s4 1966171168
    %v2854 = vunpack.c.0.s8 %v2853
    %v2855 = vlaneseq
    %v2856 = vshrl.u32 %v2855, 7
    %v2857 = vsub.s32 %v2854, %v2856
    %v2858 = vrot.slane %v2844, %v2857
    %v2859 = vcombine.high %v2851, %v2851
    %v2860 = vcombine.high %v2858, %v2858
    %v2862 = vunpack.c.l.s4 1966171168
    %v2863 = vunpack.c.0.s8 %v2862
    %v2864 = vlaneseq
    %v2865 = vshrl.u32 %v2864, 7
    %v2866 = vsub.s32 %v2863, %v2865
    %v2867 = vrot.slane %v2851, %v2866
    %v2869 = vunpack.c.l.s4 1966171168
    %v2870 = vunpack.c.0.s8 %v2869
    %v2871 = vlaneseq
    %v2872 = vshrl.u32 %v2871, 7
    %v2873 = vsub.s32 %v2870, %v2872
    %v2874 = vrot.slane %v2858, %v2873
    %v2876 = vunpack.c.l.s4 1966171168
    %v2877 = vunpack.c.0.s8 %v2876
    %v2878 = vlaneseq
    %v2879 = vshrl.u32 %v2878, 7
    %v2880 = vsub.s32 %v2877, %v2879
    %v2881 = vrot.slane %v2859, %v2880
    %v2883 = vunpack.c.l.s4 1966171168
    %v2884 = vunpack.c.0.s8 %v2883
    %v2885 = vlaneseq
    %v2886 = vshrl.u32 %v2885, 7
    %v2887 = vsub.s32 %v2884, %v2886
    %v2888 = vrot.slane %v2860, %v2887
    %v2889 = vcombine.high %v2867, %v2867
    %v2890 = vcombine.high %v2874, %v2874
    %v2891 = vcombine.high %v2881, %v2881
    %v2892 = vcombine.high %v2888, %v2888
    %v2893 = vcombine.high %v2839, %v2839
    %v2895 = vunpack.c.l.s4 1966171168
    %v2896 = vunpack.c.0.s8 %v2895
    %v2897 = vlaneseq
    %v2898 = vshrl.u32 %v2897, 7
    %v2899 = vsub.s32 %v2896, %v2898
    %v2900 = vrot.slane %v2839, %v2899
    %v2902 = vunpack.c.l.s4 1966171168
    %v2903 = vunpack.c.0.s8 %v2902
    %v2904 = vlaneseq
    %v2905 = vshrl.u32 %v2904, 7
    %v2906 = vsub.s32 %v2903, %v2905
    %v2907 = vrot.slane %v2893, %v2906
    %v2908 = vcombine.high %v2900, %v2900
    %v2909 = vcombine.high %v2907, %v2907
    %v2911 = vunpack.c.l.s4 1966171168
    %v2912 = vunpack.c.0.s8 %v2911
    %v2913 = vlaneseq
    %v2914 = vshrl.u32 %v2913, 7
    %v2915 = vsub.s32 %v2912, %v2914
    %v2916 = vrot.slane %v2900, %v2915
    %v2918 = vunpack.c.l.s4 1966171168
    %v2919 = vunpack.c.0.s8 %v2918
    %v2920 = vlaneseq
    %v2921 = vshrl.u32 %v2920, 7
    %v2922 = vsub.s32 %v2919, %v2921
    %v2923 = vrot.slane %v2907, %v2922
    %v2925 = vunpack.c.l.s4 1966171168
    %v2926 = vunpack.c.0.s8 %v2925
    %v2927 = vlaneseq
    %v2928 = vshrl.u32 %v2927, 7
    %v2929 = vsub.s32 %v2926, %v2928
    %v2930 = vrot.slane %v2908, %v2929
    %v2932 = vunpack.c.l.s4 1966171168
    %v2933 = vunpack.c.0.s8 %v2932
    %v2934 = vlaneseq
    %v2935 = vshrl.u32 %v2934, 7
    %v2936 = vsub.s32 %v2933, %v2935
    %v2937 = vrot.slane %v2909, %v2936
    %v2938 = vcombine.high %v2916, %v2916
    %v2939 = vcombine.high %v2923, %v2923
    %v2940 = vcombine.high %v2930, %v2930
    %v2941 = vcombine.high %v2937, %v2937
    %v2942 = vlaneseq
    %v2943 = vshrl.u32 %v2942, 7
    %v2944 = vsub.s32 0, %v2943
    %v2945 = vrot.slane %v2867, %v2944
    %v2946 = vlaneseq
    %v2947 = vshrl.u32 %v2946, 7
    %v2948 = vsub.s32 0, %v2947
    %v2949 = vrot.slane %v2881, %v2948
    %v2950 = vlaneseq
    %v2951 = vshrl.u32 %v2950, 7
    %v2952 = vsub.s32 0, %v2951
    %v2953 = vrot.slane %v2889, %v2952
    %v2954 = vlaneseq
    %v2955 = vshrl.u32 %v2954, 7
    %v2956 = vsub.s32 0, %v2955
    %v2957 = vrot.slane %v2891, %v2956
    %v2958 = vlaneseq
    %v2959 = vshrl.u32 %v2958, 7
    %v2960 = vsub.s32 0, %v2959
    %v2961 = vrot.slane %v2874, %v2960
    %v2962 = vlaneseq
    %v2963 = vshrl.u32 %v2962, 7
    %v2964 = vsub.s32 0, %v2963
    %v2965 = vrot.slane %v2888, %v2964
    %v2966 = vlaneseq
    %v2967 = vshrl.u32 %v2966, 7
    %v2968 = vsub.s32 0, %v2967
    %v2969 = vrot.slane %v2890, %v2968
    %v2970 = vlaneseq
    %v2971 = vshrl.u32 %v2970, 7
    %v2972 = vsub.s32 0, %v2971
    %v2973 = vrot.slane %v2892, %v2972
    %v2974 = vlaneseq
    %v2975 = vshrl.u32 %v2974, 7
    %v2976 = vsub.s32 0, %v2975
    %v2977 = vrot.slane %v2916, %v2976
    %v2978 = vlaneseq
    %v2979 = vshrl.u32 %v2978, 7
    %v2980 = vsub.s32 0, %v2979
    %v2981 = vrot.slane %v2930, %v2980
    %v2982 = vlaneseq
    %v2983 = vshrl.u32 %v2982, 7
    %v2984 = vsub.s32 0, %v2983
    %v2985 = vrot.slane %v2938, %v2984
    %v2986 = vlaneseq
    %v2987 = vshrl.u32 %v2986, 7
    %v2988 = vsub.s32 0, %v2987
    %v2989 = vrot.slane %v2940, %v2988
    %v2990 = vlaneseq
    %v2991 = vshrl.u32 %v2990, 7
    %v2992 = vsub.s32 0, %v2991
    %v2993 = vrot.slane %v2923, %v2992
    %v2994 = vlaneseq
    %v2995 = vshrl.u32 %v2994, 7
    %v2996 = vsub.s32 0, %v2995
    %v2997 = vrot.slane %v2937, %v2996
    %v2998 = vlaneseq
    %v2999 = vshrl.u32 %v2998, 7
    %v3000 = vsub.s32 0, %v2999
    %v3001 = vrot.slane %v2939, %v3000
    %v3002 = vlaneseq
    %v3003 = vshrl.u32 %v3002, 7
    %v3004 = vsub.s32 0, %v3003
    %v3005 = vrot.slane %v2941, %v3004
    %v3022 = vadd.f32 %v2945, %v2831
    %v3023 = vadd.f32 %v2945, %v2837
    %v3024 = vadd.f32 %v2949, %v2831
    %v3025 = vadd.f32 %v2949, %v2837
    %v3026 = vadd.f32 %v2953, %v2831
    %v3027 = vadd.f32 %v2953, %v2837
    %v3028 = vadd.f32 %v2957, %v2831
    %v3029 = vadd.f32 %v2957, %v2837
    %v3030 = vadd.f32 %v2961, %v2831
    %v3031 = vadd.f32 %v2961, %v2837
    %v3032 = vadd.f32 %v2965, %v2831
    %v3033 = vadd.f32 %v2965, %v2837
    %v3034 = vadd.f32 %v2969, %v2831
    %v3035 = vadd.f32 %v2969, %v2837
    %v3036 = vadd.f32 %v2973, %v2831
    %v3037 = vadd.f32 %v2973, %v2837
    %v3038 = vadd.f32 %v2977, %v2831
    %v3039 = vadd.f32 %v2977, %v2837
    %v3040 = vadd.f32 %v2981, %v2831
    %v3041 = vadd.f32 %v2981, %v2837
    %v3042 = vadd.f32 %v2985, %v2831
    %v3043 = vadd.f32 %v2985, %v2837
    %v3044 = vadd.f32 %v2989, %v2831
    %v3045 = vadd.f32 %v2989, %v2837
    %v3046 = vadd.f32 %v2993, %v2831
    %v3047 = vadd.f32 %v2993, %v2837
    %v3048 = vadd.f32 %v2997, %v2831
    %v3049 = vadd.f32 %v2997, %v2837
    %v3050 = vadd.f32 %v3001, %v2831
    %v3051 = vadd.f32 %v3001, %v2837
    %v3052 = vadd.f32 %v3005, %v2831
    %v3053 = vadd.f32 %v3005, %v2837
    %vm3054 = vcmp.ge.f32.partialorder %v3022, 0.0
    %vm3055 = vcmp.ge.f32.partialorder %v3023, 0.0
    %vm3056 = vcmp.ge.f32.partialorder %v3024, 0.0
    %vm3057 = vcmp.ge.f32.partialorder %v3025, 0.0
    %vm3058 = vcmp.ge.f32.partialorder %v3026, 0.0
    %vm3059 = vcmp.ge.f32.partialorder %v3027, 0.0
    %vm3060 = vcmp.ge.f32.partialorder %v3028, 0.0
    %vm3061 = vcmp.ge.f32.partialorder %v3029, 0.0
    %vm3062 = vcmp.ge.f32.partialorder %v3030, 0.0
    %vm3063 = vcmp.ge.f32.partialorder %v3031, 0.0
    %vm3064 = vcmp.ge.f32.partialorder %v3032, 0.0
    %vm3065 = vcmp.ge.f32.partialorder %v3033, 0.0
    %vm3066 = vcmp.ge.f32.partialorder %v3034, 0.0
    %vm3067 = vcmp.ge.f32.partialorder %v3035, 0.0
    %vm3068 = vcmp.ge.f32.partialorder %v3036, 0.0
    %vm3069 = vcmp.ge.f32.partialorder %v3037, 0.0
    %vm3070 = vcmp.ge.f32.partialorder %v3038, 0.0
    %vm3071 = vcmp.ge.f32.partialorder %v3039, 0.0
    %vm3072 = vcmp.ge.f32.partialorder %v3040, 0.0
    %vm3073 = vcmp.ge.f32.partialorder %v3041, 0.0
    %vm3074 = vcmp.ge.f32.partialorder %v3042, 0.0
    %vm3075 = vcmp.ge.f32.partialorder %v3043, 0.0
    %vm3076 = vcmp.ge.f32.partialorder %v3044, 0.0
    %vm3077 = vcmp.ge.f32.partialorder %v3045, 0.0
    %vm3078 = vcmp.ge.f32.partialorder %v3046, 0.0
    %vm3079 = vcmp.ge.f32.partialorder %v3047, 0.0
    %vm3080 = vcmp.ge.f32.partialorder %v3048, 0.0
    %vm3081 = vcmp.ge.f32.partialorder %v3049, 0.0
    %vm3082 = vcmp.ge.f32.partialorder %v3050, 0.0
    %vm3083 = vcmp.ge.f32.partialorder %v3051, 0.0
    %vm3084 = vcmp.ge.f32.partialorder %v3052, 0.0
    %vm3085 = vcmp.ge.f32.partialorder %v3053, 0.0
    %v3086 = vmul.f32 %v3022, 0.2
    %v3087 = vmul.f32 %v3023, 0.2
    %v3088 = vmul.f32 %v3024, 0.2
    %v3089 = vmul.f32 %v3025, 0.2
    %v3090 = vmul.f32 %v3026, 0.2
    %v3091 = vmul.f32 %v3027, 0.2
    %v3092 = vmul.f32 %v3028, 0.2
    %v3093 = vmul.f32 %v3029, 0.2
    %v3094 = vmul.f32 %v3030, 0.2
    %v3095 = vmul.f32 %v3031, 0.2
    %v3096 = vmul.f32 %v3032, 0.2
    %v3097 = vmul.f32 %v3033, 0.2
    %v3098 = vmul.f32 %v3034, 0.2
    %v3099 = vmul.f32 %v3035, 0.2
    %v3100 = vmul.f32 %v3036, 0.2
    %v3101 = vmul.f32 %v3037, 0.2
    %v3102 = vmul.f32 %v3038, 0.2
    %v3103 = vmul.f32 %v3039, 0.2
    %v3104 = vmul.f32 %v3040, 0.2
    %v3105 = vmul.f32 %v3041, 0.2
    %v3106 = vmul.f32 %v3042, 0.2
    %v3107 = vmul.f32 %v3043, 0.2
    %v3108 = vmul.f32 %v3044, 0.2
    %v3109 = vmul.f32 %v3045, 0.2
    %v3110 = vmul.f32 %v3046, 0.2
    %v3111 = vmul.f32 %v3047, 0.2
    %v3112 = vmul.f32 %v3048, 0.2
    %v3113 = vmul.f32 %v3049, 0.2
    %v3114 = vmul.f32 %v3050, 0.2
    %v3115 = vmul.f32 %v3051, 0.2
    %v3116 = vmul.f32 %v3052, 0.2
    %v3117 = vmul.f32 %v3053, 0.2
    %v3118 = vsel %vm3054, %v3022, %v3086
    %v3119 = vsel %vm3055, %v3023, %v3087
    %v3120 = vsel %vm3056, %v3024, %v3088
    %v3121 = vsel %vm3057, %v3025, %v3089
    %v3122 = vsel %vm3058, %v3026, %v3090
    %v3123 = vsel %vm3059, %v3027, %v3091
    %v3124 = vsel %vm3060, %v3028, %v3092
    %v3125 = vsel %vm3061, %v3029, %v3093
    %v3126 = vsel %vm3062, %v3030, %v3094
    %v3127 = vsel %vm3063, %v3031, %v3095
    %v3128 = vsel %vm3064, %v3032, %v3096
    %v3129 = vsel %vm3065, %v3033, %v3097
    %v3130 = vsel %vm3066, %v3034, %v3098
    %v3131 = vsel %vm3067, %v3035, %v3099
    %v3132 = vsel %vm3068, %v3036, %v3100
    %v3133 = vsel %vm3069, %v3037, %v3101
    %v3134 = vsel %vm3070, %v3038, %v3102
    %v3135 = vsel %vm3071, %v3039, %v3103
    %v3136 = vsel %vm3072, %v3040, %v3104
    %v3137 = vsel %vm3073, %v3041, %v3105
    %v3138 = vsel %vm3074, %v3042, %v3106
    %v3139 = vsel %vm3075, %v3043, %v3107
    %v3140 = vsel %vm3076, %v3044, %v3108
    %v3141 = vsel %vm3077, %v3045, %v3109
    %v3142 = vsel %vm3078, %v3046, %v3110
    %v3143 = vsel %vm3079, %v3047, %v3111
    %v3144 = vsel %vm3080, %v3048, %v3112
    %v3145 = vsel %vm3081, %v3049, %v3113
    %v3146 = vsel %vm3082, %v3050, %v3114
    %v3147 = vsel %vm3083, %v3051, %v3115
    %v3148 = vsel %vm3084, %v3052, %v3116
    %v3149 = vsel %vm3085, %v3053, %v3117
    %v3150 = vlaneseq
    %v3151 = vshrl.u32 %v3150, 7
    %v3152 = vsub.s32 0, %v3151
    %v3153 = vrot.slane %v2841, %v3152
    %v3154 = vmul.f32 %v3118, %v3153
    %v3155 = vmul.f32 %v3119, %v3153
    %v3156 = vmul.f32 %v3120, %v3153
    %v3157 = vmul.f32 %v3121, %v3153
    %v3158 = vmul.f32 %v3122, %v3153
    %v3159 = vmul.f32 %v3123, %v3153
    %v3160 = vmul.f32 %v3124, %v3153
    %v3161 = vmul.f32 %v3125, %v3153
    %v3162 = vmul.f32 %v3126, %v3153
    %v3163 = vmul.f32 %v3127, %v3153
    %v3164 = vmul.f32 %v3128, %v3153
    %v3165 = vmul.f32 %v3129, %v3153
    %v3166 = vmul.f32 %v3130, %v3153
    %v3167 = vmul.f32 %v3131, %v3153
    %v3168 = vmul.f32 %v3132, %v3153
    %v3169 = vmul.f32 %v3133, %v3153
    %v3170 = vmul.f32 %v3134, %v3153
    %v3171 = vmul.f32 %v3135, %v3153
    %v3172 = vmul.f32 %v3136, %v3153
    %v3173 = vmul.f32 %v3137, %v3153
    %v3174 = vmul.f32 %v3138, %v3153
    %v3175 = vmul.f32 %v3139, %v3153
    %v3176 = vmul.f32 %v3140, %v3153
    %v3177 = vmul.f32 %v3141, %v3153
    %v3178 = vmul.f32 %v3142, %v3153
    %v3179 = vmul.f32 %v3143, %v3153
    %v3180 = vmul.f32 %v3144, %v3153
    %v3181 = vmul.f32 %v3145, %v3153
    %v3182 = vmul.f32 %v3146, %v3153
    %v3183 = vmul.f32 %v3147, %v3153
    %v3184 = vmul.f32 %v3148, %v3153
    %v3185 = vmul.f32 %v3149, %v3153
    %v3186 = vsel %vm521, %v3154, 0.0
    %3187 = vadd.xlane.f32.xlu0 %v3186
    %v3188 = vpop.xlane.xlu0 %3187
    %v3189 = vsel %vm521, %v3155, 0.0
    %3190 = vadd.xlane.f32.xlu0 %v3189
    %v3191 = vpop.xlane.xlu0 %3190
    %v3192 = vsel %vm521, %v3156, 0.0
    %3193 = vadd.xlane.f32.xlu0 %v3192
    %v3194 = vpop.xlane.xlu0 %3193
    %v3195 = vsel %vm521, %v3157, 0.0
    %3196 = vadd.xlane.f32.xlu0 %v3195
    %v3197 = vpop.xlane.xlu0 %3196
    %v3198 = vsel %vm521, %v3158, 0.0
    %3199 = vadd.xlane.f32.xlu0 %v3198
    %v3200 = vpop.xlane.xlu0 %3199
    %v3201 = vsel %vm521, %v3159, 0.0
    %3202 = vadd.xlane.f32.xlu0 %v3201
    %v3203 = vpop.xlane.xlu0 %3202
    %v3204 = vsel %vm521, %v3160, 0.0
    %3205 = vadd.xlane.f32.xlu0 %v3204
    %v3206 = vpop.xlane.xlu0 %3205
    %v3207 = vsel %vm521, %v3161, 0.0
    %3208 = vadd.xlane.f32.xlu0 %v3207
    %v3209 = vpop.xlane.xlu0 %3208
    %v3210 = vsel %vm521, %v3162, 0.0
    %3211 = vadd.xlane.f32.xlu0 %v3210
    %v3212 = vpop.xlane.xlu0 %3211
    %v3213 = vsel %vm521, %v3163, 0.0
    %3214 = vadd.xlane.f32.xlu0 %v3213
    %v3215 = vpop.xlane.xlu0 %3214
    %v3216 = vsel %vm521, %v3164, 0.0
    %3217 = vadd.xlane.f32.xlu0 %v3216
    %v3218 = vpop.xlane.xlu0 %3217
    %v3219 = vsel %vm521, %v3165, 0.0
    %3220 = vadd.xlane.f32.xlu0 %v3219
    %v3221 = vpop.xlane.xlu0 %3220
    %v3222 = vsel %vm521, %v3166, 0.0
    %3223 = vadd.xlane.f32.xlu0 %v3222
    %v3224 = vpop.xlane.xlu0 %3223
    %v3225 = vsel %vm521, %v3167, 0.0
    %3226 = vadd.xlane.f32.xlu0 %v3225
    %v3227 = vpop.xlane.xlu0 %3226
    %v3228 = vsel %vm521, %v3168, 0.0
    %3229 = vadd.xlane.f32.xlu0 %v3228
    %v3230 = vpop.xlane.xlu0 %3229
    %v3231 = vsel %vm521, %v3169, 0.0
    %3232 = vadd.xlane.f32.xlu0 %v3231
    %v3233 = vpop.xlane.xlu0 %3232
    %v3234 = vsel %vm521, %v3170, 0.0
    %3235 = vadd.xlane.f32.xlu0 %v3234
    %v3236 = vpop.xlane.xlu0 %3235
    %v3237 = vsel %vm521, %v3171, 0.0
    %3238 = vadd.xlane.f32.xlu0 %v3237
    %v3239 = vpop.xlane.xlu0 %3238
    %v3240 = vsel %vm521, %v3172, 0.0
    %3241 = vadd.xlane.f32.xlu0 %v3240
    %v3242 = vpop.xlane.xlu0 %3241
    %v3243 = vsel %vm521, %v3173, 0.0
    %3244 = vadd.xlane.f32.xlu0 %v3243
    %v3245 = vpop.xlane.xlu0 %3244
    %v3246 = vsel %vm521, %v3174, 0.0
    %3247 = vadd.xlane.f32.xlu0 %v3246
    %v3248 = vpop.xlane.xlu0 %3247
    %v3249 = vsel %vm521, %v3175, 0.0
    %3250 = vadd.xlane.f32.xlu0 %v3249
    %v3251 = vpop.xlane.xlu0 %3250
    %v3252 = vsel %vm521, %v3176, 0.0
    %3253 = vadd.xlane.f32.xlu0 %v3252
    %v3254 = vpop.xlane.xlu0 %3253
    %v3255 = vsel %vm521, %v3177, 0.0
    %3256 = vadd.xlane.f32.xlu0 %v3255
    %v3257 = vpop.xlane.xlu0 %3256
    %v3258 = vsel %vm521, %v3178, 0.0
    %3259 = vadd.xlane.f32.xlu0 %v3258
    %v3260 = vpop.xlane.xlu0 %3259
    %v3261 = vsel %vm521, %v3179, 0.0
    %3262 = vadd.xlane.f32.xlu0 %v3261
    %v3263 = vpop.xlane.xlu0 %3262
    %v3264 = vsel %vm521, %v3180, 0.0
    %3265 = vadd.xlane.f32.xlu0 %v3264
    %v3266 = vpop.xlane.xlu0 %3265
    %v3267 = vsel %vm521, %v3181, 0.0
    %3268 = vadd.xlane.f32.xlu0 %v3267
    %v3269 = vpop.xlane.xlu0 %3268
    %v3270 = vsel %vm521, %v3182, 0.0
    %3271 = vadd.xlane.f32.xlu0 %v3270
    %v3272 = vpop.xlane.xlu0 %3271
    %v3273 = vsel %vm521, %v3183, 0.0
    %3274 = vadd.xlane.f32.xlu0 %v3273
    %v3275 = vpop.xlane.xlu0 %3274
    %v3276 = vsel %vm521, %v3184, 0.0
    %3277 = vadd.xlane.f32.xlu0 %v3276
    %v3278 = vpop.xlane.xlu0 %3277
    %v3279 = vsel %vm521, %v3185, 0.0
    %3280 = vadd.xlane.f32.xlu0 %v3279
    %v3281 = vpop.xlane.xlu0 %3280
    %v3314 = vlaneseq
    %v3315 = vshrl.u32 %v3314, 7
    %v3316 = vsub.s32 %v653, %v3315
    %v3317 = vrot.slane %v3188, %v3316
    %v3318 = vlaneseq
    %v3319 = vshrl.u32 %v3318, 7
    %v3320 = vsub.s32 %v658, %v3319
    %v3321 = vrot.slane %v3191, %v3320
    %v3322 = vsel %vm663, %v3321, %v3317
    %v3323 = vlaneseq
    %v3324 = vshrl.u32 %v3323, 7
    %v3325 = vsub.s32 %v653, %v3324
    %v3326 = vrot.slane %v3194, %v3325
    %v3327 = vlaneseq
    %v3328 = vshrl.u32 %v3327, 7
    %v3329 = vsub.s32 %v658, %v3328
    %v3330 = vrot.slane %v3197, %v3329
    %v3331 = vsel %vm663, %v3330, %v3326
    %v3332 = vlaneseq
    %v3333 = vshrl.u32 %v3332, 7
    %v3334 = vsub.s32 %v653, %v3333
    %v3335 = vrot.slane %v3200, %v3334
    %v3336 = vlaneseq
    %v3337 = vshrl.u32 %v3336, 7
    %v3338 = vsub.s32 %v658, %v3337
    %v3339 = vrot.slane %v3203, %v3338
    %v3340 = vsel %vm663, %v3339, %v3335
    %v3341 = vlaneseq
    %v3342 = vshrl.u32 %v3341, 7
    %v3343 = vsub.s32 %v653, %v3342
    %v3344 = vrot.slane %v3206, %v3343
    %v3345 = vlaneseq
    %v3346 = vshrl.u32 %v3345, 7
    %v3347 = vsub.s32 %v658, %v3346
    %v3348 = vrot.slane %v3209, %v3347
    %v3349 = vsel %vm663, %v3348, %v3344
    %v3350 = vlaneseq
    %v3351 = vshrl.u32 %v3350, 7
    %v3352 = vsub.s32 %v653, %v3351
    %v3353 = vrot.slane %v3212, %v3352
    %v3354 = vlaneseq
    %v3355 = vshrl.u32 %v3354, 7
    %v3356 = vsub.s32 %v658, %v3355
    %v3357 = vrot.slane %v3215, %v3356
    %v3358 = vsel %vm663, %v3357, %v3353
    %v3359 = vlaneseq
    %v3360 = vshrl.u32 %v3359, 7
    %v3361 = vsub.s32 %v653, %v3360
    %v3362 = vrot.slane %v3218, %v3361
    %v3363 = vlaneseq
    %v3364 = vshrl.u32 %v3363, 7
    %v3365 = vsub.s32 %v658, %v3364
    %v3366 = vrot.slane %v3221, %v3365
    %v3367 = vsel %vm663, %v3366, %v3362
    %v3368 = vlaneseq
    %v3369 = vshrl.u32 %v3368, 7
    %v3370 = vsub.s32 %v653, %v3369
    %v3371 = vrot.slane %v3224, %v3370
    %v3372 = vlaneseq
    %v3373 = vshrl.u32 %v3372, 7
    %v3374 = vsub.s32 %v658, %v3373
    %v3375 = vrot.slane %v3227, %v3374
    %v3376 = vsel %vm663, %v3375, %v3371
    %v3377 = vlaneseq
    %v3378 = vshrl.u32 %v3377, 7
    %v3379 = vsub.s32 %v653, %v3378
    %v3380 = vrot.slane %v3230, %v3379
    %v3381 = vlaneseq
    %v3382 = vshrl.u32 %v3381, 7
    %v3383 = vsub.s32 %v658, %v3382
    %v3384 = vrot.slane %v3233, %v3383
    %v3385 = vsel %vm663, %v3384, %v3380
    %v3386 = vlaneseq
    %v3387 = vshrl.u32 %v3386, 7
    %v3388 = vsub.s32 %v653, %v3387
    %v3389 = vrot.slane %v3236, %v3388
    %v3390 = vlaneseq
    %v3391 = vshrl.u32 %v3390, 7
    %v3392 = vsub.s32 %v658, %v3391
    %v3393 = vrot.slane %v3239, %v3392
    %v3394 = vsel %vm663, %v3393, %v3389
    %v3395 = vlaneseq
    %v3396 = vshrl.u32 %v3395, 7
    %v3397 = vsub.s32 %v653, %v3396
    %v3398 = vrot.slane %v3242, %v3397
    %v3399 = vlaneseq
    %v3400 = vshrl.u32 %v3399, 7
    %v3401 = vsub.s32 %v658, %v3400
    %v3402 = vrot.slane %v3245, %v3401
    %v3403 = vsel %vm663, %v3402, %v3398
    %v3404 = vlaneseq
    %v3405 = vshrl.u32 %v3404, 7
    %v3406 = vsub.s32 %v653, %v3405
    %v3407 = vrot.slane %v3248, %v3406
    %v3408 = vlaneseq
    %v3409 = vshrl.u32 %v3408, 7
    %v3410 = vsub.s32 %v658, %v3409
    %v3411 = vrot.slane %v3251, %v3410
    %v3412 = vsel %vm663, %v3411, %v3407
    %v3413 = vlaneseq
    %v3414 = vshrl.u32 %v3413, 7
    %v3415 = vsub.s32 %v653, %v3414
    %v3416 = vrot.slane %v3254, %v3415
    %v3417 = vlaneseq
    %v3418 = vshrl.u32 %v3417, 7
    %v3419 = vsub.s32 %v658, %v3418
    %v3420 = vrot.slane %v3257, %v3419
    %v3421 = vsel %vm663, %v3420, %v3416
    %v3422 = vlaneseq
    %v3423 = vshrl.u32 %v3422, 7
    %v3424 = vsub.s32 %v653, %v3423
    %v3425 = vrot.slane %v3260, %v3424
    %v3426 = vlaneseq
    %v3427 = vshrl.u32 %v3426, 7
    %v3428 = vsub.s32 %v658, %v3427
    %v3429 = vrot.slane %v3263, %v3428
    %v3430 = vsel %vm663, %v3429, %v3425
    %v3431 = vlaneseq
    %v3432 = vshrl.u32 %v3431, 7
    %v3433 = vsub.s32 %v653, %v3432
    %v3434 = vrot.slane %v3266, %v3433
    %v3435 = vlaneseq
    %v3436 = vshrl.u32 %v3435, 7
    %v3437 = vsub.s32 %v658, %v3436
    %v3438 = vrot.slane %v3269, %v3437
    %v3439 = vsel %vm663, %v3438, %v3434
    %v3440 = vlaneseq
    %v3441 = vshrl.u32 %v3440, 7
    %v3442 = vsub.s32 %v653, %v3441
    %v3443 = vrot.slane %v3272, %v3442
    %v3444 = vlaneseq
    %v3445 = vshrl.u32 %v3444, 7
    %v3446 = vsub.s32 %v658, %v3445
    %v3447 = vrot.slane %v3275, %v3446
    %v3448 = vsel %vm663, %v3447, %v3443
    %v3449 = vlaneseq
    %v3450 = vshrl.u32 %v3449, 7
    %v3451 = vsub.s32 %v653, %v3450
    %v3452 = vrot.slane %v3278, %v3451
    %v3453 = vlaneseq
    %v3454 = vshrl.u32 %v3453, 7
    %v3455 = vsub.s32 %v658, %v3454
    %v3456 = vrot.slane %v3281, %v3455
    %v3457 = vsel %vm663, %v3456, %v3452
    %v3458 = vsel %vm800, %v3331, %v3322
    %v3459 = vsel %vm802, %v3340, %v3458
    %v3460 = vsel %vm804, %v3349, %v3459
    %v3461 = vsel %vm806, %v3358, %v3460
    %v3462 = vsel %vm808, %v3367, %v3461
    %v3463 = vsel %vm810, %v3376, %v3462
    %v3464 = vsel %vm812, %v3385, %v3463
    %v3465 = vsel %vm800, %v3403, %v3394
    %v3466 = vsel %vm802, %v3412, %v3465
    %v3467 = vsel %vm804, %v3421, %v3466
    %v3468 = vsel %vm806, %v3430, %v3467
    %v3469 = vsel %vm808, %v3439, %v3468
    %v3470 = vsel %vm810, %v3448, %v3469
    %v3471 = vsel %vm812, %v3457, %v3470
    %v3474 = vsel %vm618, %v3464, -1e+30
    %v3475 = vsel %vm619, %v3471, -1e+30
    %v3476 = vsel %vm825, %v3474, -inf
    %3477 = vmax.xlane.f32.xlu0 %v3476
    %v3478 = vpop.xlane.xlu0 %3477
    %v3479 = vsel %vm825, %v3475, -inf
    %3480 = vmax.xlane.f32.xlu0 %v3479
    %v3481 = vpop.xlane.xlu0 %3480
    %v3482 = vsub.f32 %v3474, %v3478
    %v3483 = vsub.f32 %v3475, %v3481
    %v3484 = vmul.f32 %v3482, 1.442695
    %v3485 = vpow.pop %v3484
    %v3486 = vmul.f32 %v3483, 1.442695
    %v3487 = vpow.pop %v3486
    %v3488 = vmul.f32 %v3485, %v76
    %v3489 = vmul.f32 %v3487, %v77
    %v3490 = vsel %vm825, %v3488, 0.0
    %3491 = vadd.xlane.f32.xlu0 %v3490
    %v3492 = vpop.xlane.xlu0 %3491
    %v3493 = vsel %vm825, %v3489, 0.0
    %3494 = vadd.xlane.f32.xlu0 %v3493
    %v3495 = vpop.xlane.xlu0 %3494
    %v3496 = vadd.f32 %v3492, 1e-16
    %v3497 = vadd.f32 %v3495, 1e-16
    %v3499 = vsel %vm825, %v3488, 0
    %v3502 = vsel %vm825, %v3489, 0
    %3504 = vmatprep.subr.mxu0 0.0
    %3505 = vmatpush1.msra.mxu0 %v2831
    %3506 = vmatprep.subr.mxu0 0.0
    %3507 = vmatpush1.msra.mxu0 %v2837
    %3508 = vmatprep.subr.mxu0 0.0
    %3509 = vmatpush1.msra.mxu0 0.0
    %3510 = vmatprep.subr.mxu0 0.0
    %3511 = vmatpush1.msra.mxu0 0.0
    %3512 = vmatprep.subr.mxu0 0.0
    %3513 = vmatpush1.msra.mxu0 0.0
    %3514 = vmatprep.subr.mxu0 0.0
    %3515 = vmatpush1.msra.mxu0 0.0
    %3516 = vmatprep.subr.mxu0 0.0
    %3517 = vmatpush1.msra.mxu0 0.0
    %3518 = vmatprep.subr.mxu0 0.0
    %3519 = vmatpush1.msra.mxu0 0.0
    %3520 = vmatprep.subr.mxu0 0.0
    %3521 = vmatpush1.msra.mxu0 0.0
    %3522 = vmatprep.subr.mxu0 0.0
    %3523 = vmatpush1.msra.mxu0 0.0
    %3524 = vmatprep.subr.mxu0 0.0
    %3525 = vmatpush1.msra.mxu0 0.0
    %3526 = vmatprep.subr.mxu0 0.0
    %3527 = vmatpush1.msra.mxu0 0.0
    %3528 = vmatprep.subr.mxu0 0.0
    %3529 = vmatpush1.msra.mxu0 0.0
    %3530 = vmatprep.subr.mxu0 0.0
    %3531 = vmatpush1.msra.mxu0 0.0
    %3532 = vmatprep.subr.mxu0 0.0
    %3533 = vmatpush1.msra.mxu0 0.0
    %3534 = vmatprep.subr.mxu0 0.0
    %3535 = vmatpush1.msra.mxu0 0.0
    %3536 = vmatprep.subr.mxu0 0.0
    %3537 = vmatpush1.msra.mxu0 0.0
    %3538 = vmatprep.subr.mxu0 0.0
    %3539 = vmatpush1.msra.mxu0 0.0
    %3540 = vmatprep.subr.mxu0 0.0
    %3541 = vmatpush1.msra.mxu0 0.0
    %3542 = vmatprep.subr.mxu0 0.0
    %3543 = vmatpush1.msra.mxu0 0.0
    %3544 = vmatprep.subr.mxu0 0.0
    %3545 = vmatpush1.msra.mxu0 0.0
    %3546 = vmatprep.subr.mxu0 0.0
    %3547 = vmatpush1.msra.mxu0 0.0
    %3548 = vmatprep.subr.mxu0 0.0
    %3549 = vmatpush1.msra.mxu0 0.0
    %3550 = vmatprep.subr.mxu0 0.0
    %3551 = vmatpush1.msra.mxu0 0.0
    %3552 = vmatprep.subr.mxu0 0.0
    %3553 = vmatpush1.msra.mxu0 0.0
    %3554 = vmatprep.subr.mxu0 0.0
    %3555 = vmatpush1.msra.mxu0 0.0
    %3556 = vmatprep.subr.mxu0 0.0
    %3557 = vmatpush1.msra.mxu0 0.0
    %3558 = vmatprep.subr.mxu0 0.0
    %3559 = vmatpush1.msra.mxu0 0.0
    %3560 = vmatprep.subr.mxu0 0.0
    %3561 = vmatpush1.msra.mxu0 0.0
    %3562 = vmatprep.subr.mxu0 0.0
    %3563 = vmatpush1.msra.mxu0 0.0
    %3564 = vmatprep.subr.mxu0 0.0
    %3565 = vmatpush1.msra.mxu0 0.0
    %3566 = vmatprep.subr.mxu0 0.0
    %3567 = vmatpush1.msra.mxu0 0.0
    %3568 = vmatprep.mubr.f32.mxu0 0.0
    %3569 = vmatmul.mubr.f32.gmra.mrb[0].mxu0 %v3499
    %v3570 = vpop.f32.mrb[0].mxu0
    %v3571 = vadd.f32 0.0, %v3570
    %v3572 = vpop.f32.mrb[0].mxu0
    %3573 = vmatprep.mubr.f32.mxu0 0.0
    %3574 = vmatmul.mubr.f32.gmra.mrb[0].mxu0 %v3502
    %v3575 = vpop.f32.mrb[0].mxu0
    %v3576 = vadd.f32 0.0, %v3575
    %v3577 = vpop.f32.mrb[0].mxu0
    %3578 = vdwg.mxu0
    %v3579 = vrcp.pop %v3496
    %v3580 = vrcp.pop %v3497
    %v3581 = vmul.f32 %v3571, %v3579
    %v3582 = vmul.f32 %v3576, %v3580
    %v3583 = vadd.f32 %v3581, 0.0
    %v3584 = vadd.f32 %v3582, 0.0
    %v3585 = vld [vmem:[%s10 + $0x1] sm:$0x1]
    %v3586 = vlaneseq
    %v3587 = vshrl.u32 %v3586, 7
    %v3588 = vsub.s32 0, %v3587
    %v3589 = vrot.slane %v3585, %v3588
    %3591 = vrot.lane.b32.xlu0 %v3589, 32
    %v3592 = vpop.permute.xlu0 %3591
    %v3594 = vmul.f32 %v3118, %v3592
    %v3595 = vmul.f32 %v3119, %v3592
    %v3596 = vmul.f32 %v3120, %v3592
    %v3597 = vmul.f32 %v3121, %v3592
    %v3598 = vmul.f32 %v3122, %v3592
    %v3599 = vmul.f32 %v3123, %v3592
    %v3600 = vmul.f32 %v3124, %v3592
    %v3601 = vmul.f32 %v3125, %v3592
    %v3602 = vmul.f32 %v3126, %v3592
    %v3603 = vmul.f32 %v3127, %v3592
    %v3604 = vmul.f32 %v3128, %v3592
    %v3605 = vmul.f32 %v3129, %v3592
    %v3606 = vmul.f32 %v3130, %v3592
    %v3607 = vmul.f32 %v3131, %v3592
    %v3608 = vmul.f32 %v3132, %v3592
    %v3609 = vmul.f32 %v3133, %v3592
    %v3610 = vmul.f32 %v3134, %v3592
    %v3611 = vmul.f32 %v3135, %v3592
    %v3612 = vmul.f32 %v3136, %v3592
    %v3613 = vmul.f32 %v3137, %v3592
    %v3614 = vmul.f32 %v3138, %v3592
    %v3615 = vmul.f32 %v3139, %v3592
    %v3616 = vmul.f32 %v3140, %v3592
    %v3617 = vmul.f32 %v3141, %v3592
    %v3618 = vmul.f32 %v3142, %v3592
    %v3619 = vmul.f32 %v3143, %v3592
    %v3620 = vmul.f32 %v3144, %v3592
    %v3621 = vmul.f32 %v3145, %v3592
    %v3622 = vmul.f32 %v3146, %v3592
    %v3623 = vmul.f32 %v3147, %v3592
    %v3624 = vmul.f32 %v3148, %v3592
    %v3625 = vmul.f32 %v3149, %v3592
    %3658 = vrot.lane.b32.xlu0 %v3594, 96
    %v3659 = vpop.permute.xlu0 %3658
    %3660 = vrot.lane.b32.xlu0 %v3595, 96
    %v3661 = vpop.permute.xlu0 %3660
    %3662 = vrot.lane.b32.xlu0 %v3596, 96
    %v3663 = vpop.permute.xlu0 %3662
    %3664 = vrot.lane.b32.xlu0 %v3597, 96
    %v3665 = vpop.permute.xlu0 %3664
    %3666 = vrot.lane.b32.xlu0 %v3598, 96
    %v3667 = vpop.permute.xlu0 %3666
    %3668 = vrot.lane.b32.xlu0 %v3599, 96
    %v3669 = vpop.permute.xlu0 %3668
    %3670 = vrot.lane.b32.xlu0 %v3600, 96
    %v3671 = vpop.permute.xlu0 %3670
    %3672 = vrot.lane.b32.xlu0 %v3601, 96
    %v3673 = vpop.permute.xlu0 %3672
    %3674 = vrot.lane.b32.xlu0 %v3602, 96
    %v3675 = vpop.permute.xlu0 %3674
    %3676 = vrot.lane.b32.xlu0 %v3603, 96
    %v3677 = vpop.permute.xlu0 %3676
    %3678 = vrot.lane.b32.xlu0 %v3604, 96
    %v3679 = vpop.permute.xlu0 %3678
    %3680 = vrot.lane.b32.xlu0 %v3605, 96
    %v3681 = vpop.permute.xlu0 %3680
    %3682 = vrot.lane.b32.xlu0 %v3606, 96
    %v3683 = vpop.permute.xlu0 %3682
    %3684 = vrot.lane.b32.xlu0 %v3607, 96
    %v3685 = vpop.permute.xlu0 %3684
    %3686 = vrot.lane.b32.xlu0 %v3608, 96
    %v3687 = vpop.permute.xlu0 %3686
    %3688 = vrot.lane.b32.xlu0 %v3609, 96
    %v3689 = vpop.permute.xlu0 %3688
    %3690 = vrot.lane.b32.xlu0 %v3610, 96
    %v3691 = vpop.permute.xlu0 %3690
    %3692 = vrot.lane.b32.xlu0 %v3611, 96
    %v3693 = vpop.permute.xlu0 %3692
    %3694 = vrot.lane.b32.xlu0 %v3612, 96
    %v3695 = vpop.permute.xlu0 %3694
    %3696 = vrot.lane.b32.xlu0 %v3613, 96
    %v3697 = vpop.permute.xlu0 %3696
    %3698 = vrot.lane.b32.xlu0 %v3614, 96
    %v3699 = vpop.permute.xlu0 %3698
    %3700 = vrot.lane.b32.xlu0 %v3615, 96
    %v3701 = vpop.permute.xlu0 %3700
    %3702 = vrot.lane.b32.xlu0 %v3616, 96
    %v3703 = vpop.permute.xlu0 %3702
    %3704 = vrot.lane.b32.xlu0 %v3617, 96
    %v3705 = vpop.permute.xlu0 %3704
    %3706 = vrot.lane.b32.xlu0 %v3618, 96
    %v3707 = vpop.permute.xlu0 %3706
    %3708 = vrot.lane.b32.xlu0 %v3619, 96
    %v3709 = vpop.permute.xlu0 %3708
    %3710 = vrot.lane.b32.xlu0 %v3620, 96
    %v3711 = vpop.permute.xlu0 %3710
    %3712 = vrot.lane.b32.xlu0 %v3621, 96
    %v3713 = vpop.permute.xlu0 %3712
    %3714 = vrot.lane.b32.xlu0 %v3622, 96
    %v3715 = vpop.permute.xlu0 %3714
    %3716 = vrot.lane.b32.xlu0 %v3623, 96
    %v3717 = vpop.permute.xlu0 %3716
    %3718 = vrot.lane.b32.xlu0 %v3624, 96
    %v3719 = vpop.permute.xlu0 %3718
    %3720 = vrot.lane.b32.xlu0 %v3625, 96
    %v3721 = vpop.permute.xlu0 %3720
    %v3754 = vsel %vm521, %v3659, 0.0
    %3755 = vadd.xlane.f32.xlu0 %v3754
    %v3756 = vpop.xlane.xlu0 %3755
    %v3757 = vsel %vm521, %v3661, 0.0
    %3758 = vadd.xlane.f32.xlu0 %v3757
    %v3759 = vpop.xlane.xlu0 %3758
    %v3760 = vsel %vm521, %v3663, 0.0
    %3761 = vadd.xlane.f32.xlu0 %v3760
    %v3762 = vpop.xlane.xlu0 %3761
    %v3763 = vsel %vm521, %v3665, 0.0
    %3764 = vadd.xlane.f32.xlu0 %v3763
    %v3765 = vpop.xlane.xlu0 %3764
    %v3766 = vsel %vm521, %v3667, 0.0
    %3767 = vadd.xlane.f32.xlu0 %v3766
    %v3768 = vpop.xlane.xlu0 %3767
    %v3769 = vsel %vm521, %v3669, 0.0
    %3770 = vadd.xlane.f32.xlu0 %v3769
    %v3771 = vpop.xlane.xlu0 %3770
    %v3772 = vsel %vm521, %v3671, 0.0
    %3773 = vadd.xlane.f32.xlu0 %v3772
    %v3774 = vpop.xlane.xlu0 %3773
    %v3775 = vsel %vm521, %v3673, 0.0
    %3776 = vadd.xlane.f32.xlu0 %v3775
    %v3777 = vpop.xlane.xlu0 %3776
    %v3778 = vsel %vm521, %v3675, 0.0
    %3779 = vadd.xlane.f32.xlu0 %v3778
    %v3780 = vpop.xlane.xlu0 %3779
    %v3781 = vsel %vm521, %v3677, 0.0
    %3782 = vadd.xlane.f32.xlu0 %v3781
    %v3783 = vpop.xlane.xlu0 %3782
    %v3784 = vsel %vm521, %v3679, 0.0
    %3785 = vadd.xlane.f32.xlu0 %v3784
    %v3786 = vpop.xlane.xlu0 %3785
    %v3787 = vsel %vm521, %v3681, 0.0
    %3788 = vadd.xlane.f32.xlu0 %v3787
    %v3789 = vpop.xlane.xlu0 %3788
    %v3790 = vsel %vm521, %v3683, 0.0
    %3791 = vadd.xlane.f32.xlu0 %v3790
    %v3792 = vpop.xlane.xlu0 %3791
    %v3793 = vsel %vm521, %v3685, 0.0
    %3794 = vadd.xlane.f32.xlu0 %v3793
    %v3795 = vpop.xlane.xlu0 %3794
    %v3796 = vsel %vm521, %v3687, 0.0
    %3797 = vadd.xlane.f32.xlu0 %v3796
    %v3798 = vpop.xlane.xlu0 %3797
    %v3799 = vsel %vm521, %v3689, 0.0
    %3800 = vadd.xlane.f32.xlu0 %v3799
    %v3801 = vpop.xlane.xlu0 %3800
    %v3802 = vsel %vm521, %v3691, 0.0
    %3803 = vadd.xlane.f32.xlu0 %v3802
    %v3804 = vpop.xlane.xlu0 %3803
    %v3805 = vsel %vm521, %v3693, 0.0
    %3806 = vadd.xlane.f32.xlu0 %v3805
    %v3807 = vpop.xlane.xlu0 %3806
    %v3808 = vsel %vm521, %v3695, 0.0
    %3809 = vadd.xlane.f32.xlu0 %v3808
    %v3810 = vpop.xlane.xlu0 %3809
    %v3811 = vsel %vm521, %v3697, 0.0
    %3812 = vadd.xlane.f32.xlu0 %v3811
    %v3813 = vpop.xlane.xlu0 %3812
    %v3814 = vsel %vm521, %v3699, 0.0
    %3815 = vadd.xlane.f32.xlu0 %v3814
    %v3816 = vpop.xlane.xlu0 %3815
    %v3817 = vsel %vm521, %v3701, 0.0
    %3818 = vadd.xlane.f32.xlu0 %v3817
    %v3819 = vpop.xlane.xlu0 %3818
    %v3820 = vsel %vm521, %v3703, 0.0
    %3821 = vadd.xlane.f32.xlu0 %v3820
    %v3822 = vpop.xlane.xlu0 %3821
    %v3823 = vsel %vm521, %v3705, 0.0
    %3824 = vadd.xlane.f32.xlu0 %v3823
    %v3825 = vpop.xlane.xlu0 %3824
    %v3826 = vsel %vm521, %v3707, 0.0
    %3827 = vadd.xlane.f32.xlu0 %v3826
    %v3828 = vpop.xlane.xlu0 %3827
    %v3829 = vsel %vm521, %v3709, 0.0
    %3830 = vadd.xlane.f32.xlu0 %v3829
    %v3831 = vpop.xlane.xlu0 %3830
    %v3832 = vsel %vm521, %v3711, 0.0
    %3833 = vadd.xlane.f32.xlu0 %v3832
    %v3834 = vpop.xlane.xlu0 %3833
    %v3835 = vsel %vm521, %v3713, 0.0
    %3836 = vadd.xlane.f32.xlu0 %v3835
    %v3837 = vpop.xlane.xlu0 %3836
    %v3838 = vsel %vm521, %v3715, 0.0
    %3839 = vadd.xlane.f32.xlu0 %v3838
    %v3840 = vpop.xlane.xlu0 %3839
    %v3841 = vsel %vm521, %v3717, 0.0
    %3842 = vadd.xlane.f32.xlu0 %v3841
    %v3843 = vpop.xlane.xlu0 %3842
    %v3844 = vsel %vm521, %v3719, 0.0
    %3845 = vadd.xlane.f32.xlu0 %v3844
    %v3846 = vpop.xlane.xlu0 %3845
    %v3847 = vsel %vm521, %v3721, 0.0
    %3848 = vadd.xlane.f32.xlu0 %v3847
    %v3849 = vpop.xlane.xlu0 %3848
    %v3882 = vlaneseq
    %v3883 = vshrl.u32 %v3882, 7
    %v3884 = vsub.s32 %v653, %v3883
    %v3885 = vrot.slane %v3756, %v3884
    %v3886 = vlaneseq
    %v3887 = vshrl.u32 %v3886, 7
    %v3888 = vsub.s32 %v658, %v3887
    %v3889 = vrot.slane %v3759, %v3888
    %v3890 = vsel %vm663, %v3889, %v3885
    %v3891 = vlaneseq
    %v3892 = vshrl.u32 %v3891, 7
    %v3893 = vsub.s32 %v653, %v3892
    %v3894 = vrot.slane %v3762, %v3893
    %v3895 = vlaneseq
    %v3896 = vshrl.u32 %v3895, 7
    %v3897 = vsub.s32 %v658, %v3896
    %v3898 = vrot.slane %v3765, %v3897
    %v3899 = vsel %vm663, %v3898, %v3894
    %v3900 = vlaneseq
    %v3901 = vshrl.u32 %v3900, 7
    %v3902 = vsub.s32 %v653, %v3901
    %v3903 = vrot.slane %v3768, %v3902
    %v3904 = vlaneseq
    %v3905 = vshrl.u32 %v3904, 7
    %v3906 = vsub.s32 %v658, %v3905
    %v3907 = vrot.slane %v3771, %v3906
    %v3908 = vsel %vm663, %v3907, %v3903
    %v3909 = vlaneseq
    %v3910 = vshrl.u32 %v3909, 7
    %v3911 = vsub.s32 %v653, %v3910
    %v3912 = vrot.slane %v3774, %v3911
    %v3913 = vlaneseq
    %v3914 = vshrl.u32 %v3913, 7
    %v3915 = vsub.s32 %v658, %v3914
    %v3916 = vrot.slane %v3777, %v3915
    %v3917 = vsel %vm663, %v3916, %v3912
    %v3918 = vlaneseq
    %v3919 = vshrl.u32 %v3918, 7
    %v3920 = vsub.s32 %v653, %v3919
    %v3921 = vrot.slane %v3780, %v3920
    %v3922 = vlaneseq
    %v3923 = vshrl.u32 %v3922, 7
    %v3924 = vsub.s32 %v658, %v3923
    %v3925 = vrot.slane %v3783, %v3924
    %v3926 = vsel %vm663, %v3925, %v3921
    %v3927 = vlaneseq
    %v3928 = vshrl.u32 %v3927, 7
    %v3929 = vsub.s32 %v653, %v3928
    %v3930 = vrot.slane %v3786, %v3929
    %v3931 = vlaneseq
    %v3932 = vshrl.u32 %v3931, 7
    %v3933 = vsub.s32 %v658, %v3932
    %v3934 = vrot.slane %v3789, %v3933
    %v3935 = vsel %vm663, %v3934, %v3930
    %v3936 = vlaneseq
    %v3937 = vshrl.u32 %v3936, 7
    %v3938 = vsub.s32 %v653, %v3937
    %v3939 = vrot.slane %v3792, %v3938
    %v3940 = vlaneseq
    %v3941 = vshrl.u32 %v3940, 7
    %v3942 = vsub.s32 %v658, %v3941
    %v3943 = vrot.slane %v3795, %v3942
    %v3944 = vsel %vm663, %v3943, %v3939
    %v3945 = vlaneseq
    %v3946 = vshrl.u32 %v3945, 7
    %v3947 = vsub.s32 %v653, %v3946
    %v3948 = vrot.slane %v3798, %v3947
    %v3949 = vlaneseq
    %v3950 = vshrl.u32 %v3949, 7
    %v3951 = vsub.s32 %v658, %v3950
    %v3952 = vrot.slane %v3801, %v3951
    %v3953 = vsel %vm663, %v3952, %v3948
    %v3954 = vlaneseq
    %v3955 = vshrl.u32 %v3954, 7
    %v3956 = vsub.s32 %v653, %v3955
    %v3957 = vrot.slane %v3804, %v3956
    %v3958 = vlaneseq
    %v3959 = vshrl.u32 %v3958, 7
    %v3960 = vsub.s32 %v658, %v3959
    %v3961 = vrot.slane %v3807, %v3960
    %v3962 = vsel %vm663, %v3961, %v3957
    %v3963 = vlaneseq
    %v3964 = vshrl.u32 %v3963, 7
    %v3965 = vsub.s32 %v653, %v3964
    %v3966 = vrot.slane %v3810, %v3965
    %v3967 = vlaneseq
    %v3968 = vshrl.u32 %v3967, 7
    %v3969 = vsub.s32 %v658, %v3968
    %v3970 = vrot.slane %v3813, %v3969
    %v3971 = vsel %vm663, %v3970, %v3966
    %v3972 = vlaneseq
    %v3973 = vshrl.u32 %v3972, 7
    %v3974 = vsub.s32 %v653, %v3973
    %v3975 = vrot.slane %v3816, %v3974
    %v3976 = vlaneseq
    %v3977 = vshrl.u32 %v3976, 7
    %v3978 = vsub.s32 %v658, %v3977
    %v3979 = vrot.slane %v3819, %v3978
    %v3980 = vsel %vm663, %v3979, %v3975
    %v3981 = vlaneseq
    %v3982 = vshrl.u32 %v3981, 7
    %v3983 = vsub.s32 %v653, %v3982
    %v3984 = vrot.slane %v3822, %v3983
    %v3985 = vlaneseq
    %v3986 = vshrl.u32 %v3985, 7
    %v3987 = vsub.s32 %v658, %v3986
    %v3988 = vrot.slane %v3825, %v3987
    %v3989 = vsel %vm663, %v3988, %v3984
    %v3990 = vlaneseq
    %v3991 = vshrl.u32 %v3990, 7
    %v3992 = vsub.s32 %v653, %v3991
    %v3993 = vrot.slane %v3828, %v3992
    %v3994 = vlaneseq
    %v3995 = vshrl.u32 %v3994, 7
    %v3996 = vsub.s32 %v658, %v3995
    %v3997 = vrot.slane %v3831, %v3996
    %v3998 = vsel %vm663, %v3997, %v3993
    %v3999 = vlaneseq
    %v4000 = vshrl.u32 %v3999, 7
    %v4001 = vsub.s32 %v653, %v4000
    %v4002 = vrot.slane %v3834, %v4001
    %v4003 = vlaneseq
    %v4004 = vshrl.u32 %v4003, 7
    %v4005 = vsub.s32 %v658, %v4004
    %v4006 = vrot.slane %v3837, %v4005
    %v4007 = vsel %vm663, %v4006, %v4002
    %v4008 = vlaneseq
    %v4009 = vshrl.u32 %v4008, 7
    %v4010 = vsub.s32 %v653, %v4009
    %v4011 = vrot.slane %v3840, %v4010
    %v4012 = vlaneseq
    %v4013 = vshrl.u32 %v4012, 7
    %v4014 = vsub.s32 %v658, %v4013
    %v4015 = vrot.slane %v3843, %v4014
    %v4016 = vsel %vm663, %v4015, %v4011
    %v4017 = vlaneseq
    %v4018 = vshrl.u32 %v4017, 7
    %v4019 = vsub.s32 %v653, %v4018
    %v4020 = vrot.slane %v3846, %v4019
    %v4021 = vlaneseq
    %v4022 = vshrl.u32 %v4021, 7
    %v4023 = vsub.s32 %v658, %v4022
    %v4024 = vrot.slane %v3849, %v4023
    %v4025 = vsel %vm663, %v4024, %v4020
    %v4026 = vsel %vm800, %v3899, %v3890
    %v4027 = vsel %vm802, %v3908, %v4026
    %v4028 = vsel %vm804, %v3917, %v4027
    %v4029 = vsel %vm806, %v3926, %v4028
    %v4030 = vsel %vm808, %v3935, %v4029
    %v4031 = vsel %vm810, %v3944, %v4030
    %v4032 = vsel %vm812, %v3953, %v4031
    %v4033 = vsel %vm800, %v3971, %v3962
    %v4034 = vsel %vm802, %v3980, %v4033
    %v4035 = vsel %vm804, %v3989, %v4034
    %v4036 = vsel %vm806, %v3998, %v4035
    %v4037 = vsel %vm808, %v4007, %v4036
    %v4038 = vsel %vm810, %v4016, %v4037
    %v4039 = vsel %vm812, %v4025, %v4038
    %v4042 = vsel %vm618, %v4032, -1e+30
    %v4043 = vsel %vm619, %v4039, -1e+30
    %v4044 = vsel %vm825, %v4042, -inf
    %4045 = vmax.xlane.f32.xlu0 %v4044
    %v4046 = vpop.xlane.xlu0 %4045
    %v4047 = vsel %vm825, %v4043, -inf
    %4048 = vmax.xlane.f32.xlu0 %v4047
    %v4049 = vpop.xlane.xlu0 %4048
    %v4050 = vsub.f32 %v4042, %v4046
    %v4051 = vsub.f32 %v4043, %v4049
    %v4052 = vmul.f32 %v4050, 1.442695
    %v4053 = vpow.pop %v4052
    %v4054 = vmul.f32 %v4051, 1.442695
    %v4055 = vpow.pop %v4054
    %v4056 = vmul.f32 %v4053, %v76
    %v4057 = vmul.f32 %v4055, %v77
    %v4058 = vsel %vm825, %v4056, 0.0
    %4059 = vadd.xlane.f32.xlu0 %v4058
    %v4060 = vpop.xlane.xlu0 %4059
    %v4061 = vsel %vm825, %v4057, 0.0
    %4062 = vadd.xlane.f32.xlu0 %v4061
    %v4063 = vpop.xlane.xlu0 %4062
    %v4064 = vadd.f32 %v4060, 1e-16
    %v4065 = vadd.f32 %v4063, 1e-16
    %4068 = vrot.lane.b32.xlu0 %v2831, 96
    %v4069 = vpop.permute.xlu0 %4068
    %4070 = vrot.lane.b32.xlu0 %v2837, 96
    %v4071 = vpop.permute.xlu0 %4070
    %v4075 = vsel %vm825, %v4056, 0
    %v4078 = vsel %vm825, %v4057, 0
    %4080 = vmatprep.subr.mxu0 0.0
    %4081 = vmatpush1.msra.mxu0 %v4069
    %4082 = vmatprep.subr.mxu0 0.0
    %4083 = vmatpush1.msra.mxu0 %v4071
    %4084 = vmatprep.subr.mxu0 0.0
    %4085 = vmatpush1.msra.mxu0 0.0
    %4086 = vmatprep.subr.mxu0 0.0
    %4087 = vmatpush1.msra.mxu0 0.0
    %4088 = vmatprep.subr.mxu0 0.0
    %4089 = vmatpush1.msra.mxu0 0.0
    %4090 = vmatprep.subr.mxu0 0.0
    %4091 = vmatpush1.msra.mxu0 0.0
    %4092 = vmatprep.subr.mxu0 0.0
    %4093 = vmatpush1.msra.mxu0 0.0
    %4094 = vmatprep.subr.mxu0 0.0
    %4095 = vmatpush1.msra.mxu0 0.0
    %4096 = vmatprep.subr.mxu0 0.0
    %4097 = vmatpush1.msra.mxu0 0.0
    %4098 = vmatprep.subr.mxu0 0.0
    %4099 = vmatpush1.msra.mxu0 0.0
    %4100 = vmatprep.subr.mxu0 0.0
    %4101 = vmatpush1.msra.mxu0 0.0
    %4102 = vmatprep.subr.mxu0 0.0
    %4103 = vmatpush1.msra.mxu0 0.0
    %4104 = vmatprep.subr.mxu0 0.0
    %4105 = vmatpush1.msra.mxu0 0.0
    %4106 = vmatprep.subr.mxu0 0.0
    %4107 = vmatpush1.msra.mxu0 0.0
    %4108 = vmatprep.subr.mxu0 0.0
    %4109 = vmatpush1.msra.mxu0 0.0
    %4110 = vmatprep.subr.mxu0 0.0
    %4111 = vmatpush1.msra.mxu0 0.0
    %4112 = vmatprep.subr.mxu0 0.0
    %4113 = vmatpush1.msra.mxu0 0.0
    %4114 = vmatprep.subr.mxu0 0.0
    %4115 = vmatpush1.msra.mxu0 0.0
    %4116 = vmatprep.subr.mxu0 0.0
    %4117 = vmatpush1.msra.mxu0 0.0
    %4118 = vmatprep.subr.mxu0 0.0
    %4119 = vmatpush1.msra.mxu0 0.0
    %4120 = vmatprep.subr.mxu0 0.0
    %4121 = vmatpush1.msra.mxu0 0.0
    %4122 = vmatprep.subr.mxu0 0.0
    %4123 = vmatpush1.msra.mxu0 0.0
    %4124 = vmatprep.subr.mxu0 0.0
    %4125 = vmatpush1.msra.mxu0 0.0
    %4126 = vmatprep.subr.mxu0 0.0
    %4127 = vmatpush1.msra.mxu0 0.0
    %4128 = vmatprep.subr.mxu0 0.0
    %4129 = vmatpush1.msra.mxu0 0.0
    %4130 = vmatprep.subr.mxu0 0.0
    %4131 = vmatpush1.msra.mxu0 0.0
    %4132 = vmatprep.subr.mxu0 0.0
    %4133 = vmatpush1.msra.mxu0 0.0
    %4134 = vmatprep.subr.mxu0 0.0
    %4135 = vmatpush1.msra.mxu0 0.0
    %4136 = vmatprep.subr.mxu0 0.0
    %4137 = vmatpush1.msra.mxu0 0.0
    %4138 = vmatprep.subr.mxu0 0.0
    %4139 = vmatpush1.msra.mxu0 0.0
    %4140 = vmatprep.subr.mxu0 0.0
    %4141 = vmatpush1.msra.mxu0 0.0
    %4142 = vmatprep.subr.mxu0 0.0
    %4143 = vmatpush1.msra.mxu0 0.0
    %4144 = vmatprep.mubr.f32.mxu0 0.0
    %4145 = vmatmul.mubr.f32.gmra.mrb[0].mxu0 %v4075
    %v4146 = vpop.f32.mrb[0].mxu0
    %v4147 = vadd.f32 0.0, %v4146
    %v4148 = vpop.f32.mrb[0].mxu0
    %4149 = vmatprep.mubr.f32.mxu0 0.0
    %4150 = vmatmul.mubr.f32.gmra.mrb[0].mxu0 %v4078
    %v4151 = vpop.f32.mrb[0].mxu0
    %v4152 = vadd.f32 0.0, %v4151
    %v4153 = vpop.f32.mrb[0].mxu0
    %4154 = vdwg.mxu0
    %v4155 = vrcp.pop %v4064
    %v4156 = vrcp.pop %v4065
    %v4157 = vmul.f32 %v4147, %v4155
    %v4158 = vmul.f32 %v4152, %v4156
    %v4159 = vadd.f32 %v3583, %v4157
    %v4160 = vadd.f32 %v3584, %v4158
    %v4161 = vld [vmem:[%s10 + $0x2] sm:$0x1]
    %v4162 = vlaneseq
    %v4163 = vshrl.u32 %v4162, 7
    %v4164 = vsub.s32 0, %v4163
    %v4165 = vrot.slane %v4161, %v4164
    %4167 = vrot.lane.b32.xlu0 %v4165, 64
    %v4168 = vpop.permute.xlu0 %4167
    %v4170 = vmul.f32 %v3118, %v4168
    %v4171 = vmul.f32 %v3119, %v4168
    %v4172 = vmul.f32 %v3120, %v4168
    %v4173 = vmul.f32 %v3121, %v4168
    %v4174 = vmul.f32 %v3122, %v4168
    %v4175 = vmul.f32 %v3123, %v4168
    %v4176 = vmul.f32 %v3124, %v4168
    %v4177 = vmul.f32 %v3125, %v4168
    %v4178 = vmul.f32 %v3126, %v4168
    %v4179 = vmul.f32 %v3127, %v4168
    %v4180 = vmul.f32 %v3128, %v4168
    %v4181 = vmul.f32 %v3129, %v4168
    %v4182 = vmul.f32 %v3130, %v4168
    %v4183 = vmul.f32 %v3131, %v4168
    %v4184 = vmul.f32 %v3132, %v4168
    %v4185 = vmul.f32 %v3133, %v4168
    %v4186 = vmul.f32 %v3134, %v4168
    %v4187 = vmul.f32 %v3135, %v4168
    %v4188 = vmul.f32 %v3136, %v4168
    %v4189 = vmul.f32 %v3137, %v4168
    %v4190 = vmul.f32 %v3138, %v4168
    %v4191 = vmul.f32 %v3139, %v4168
    %v4192 = vmul.f32 %v3140, %v4168
    %v4193 = vmul.f32 %v3141, %v4168
    %v4194 = vmul.f32 %v3142, %v4168
    %v4195 = vmul.f32 %v3143, %v4168
    %v4196 = vmul.f32 %v3144, %v4168
    %v4197 = vmul.f32 %v3145, %v4168
    %v4198 = vmul.f32 %v3146, %v4168
    %v4199 = vmul.f32 %v3147, %v4168
    %v4200 = vmul.f32 %v3148, %v4168
    %v4201 = vmul.f32 %v3149, %v4168
    %4234 = vrot.lane.b32.xlu0 %v4170, 64
    %v4235 = vpop.permute.xlu0 %4234
    %4236 = vrot.lane.b32.xlu0 %v4171, 64
    %v4237 = vpop.permute.xlu0 %4236
    %4238 = vrot.lane.b32.xlu0 %v4172, 64
    %v4239 = vpop.permute.xlu0 %4238
    %4240 = vrot.lane.b32.xlu0 %v4173, 64
    %v4241 = vpop.permute.xlu0 %4240
    %4242 = vrot.lane.b32.xlu0 %v4174, 64
    %v4243 = vpop.permute.xlu0 %4242
    %4244 = vrot.lane.b32.xlu0 %v4175, 64
    %v4245 = vpop.permute.xlu0 %4244
    %4246 = vrot.lane.b32.xlu0 %v4176, 64
    %v4247 = vpop.permute.xlu0 %4246
    %4248 = vrot.lane.b32.xlu0 %v4177, 64
    %v4249 = vpop.permute.xlu0 %4248
    %4250 = vrot.lane.b32.xlu0 %v4178, 64
    %v4251 = vpop.permute.xlu0 %4250
    %4252 = vrot.lane.b32.xlu0 %v4179, 64
    %v4253 = vpop.permute.xlu0 %4252
    %4254 = vrot.lane.b32.xlu0 %v4180, 64
    %v4255 = vpop.permute.xlu0 %4254
    %4256 = vrot.lane.b32.xlu0 %v4181, 64
    %v4257 = vpop.permute.xlu0 %4256
    %4258 = vrot.lane.b32.xlu0 %v4182, 64
    %v4259 = vpop.permute.xlu0 %4258
    %4260 = vrot.lane.b32.xlu0 %v4183, 64
    %v4261 = vpop.permute.xlu0 %4260
    %4262 = vrot.lane.b32.xlu0 %v4184, 64
    %v4263 = vpop.permute.xlu0 %4262
    %4264 = vrot.lane.b32.xlu0 %v4185, 64
    %v4265 = vpop.permute.xlu0 %4264
    %4266 = vrot.lane.b32.xlu0 %v4186, 64
    %v4267 = vpop.permute.xlu0 %4266
    %4268 = vrot.lane.b32.xlu0 %v4187, 64
    %v4269 = vpop.permute.xlu0 %4268
    %4270 = vrot.lane.b32.xlu0 %v4188, 64
    %v4271 = vpop.permute.xlu0 %4270
    %4272 = vrot.lane.b32.xlu0 %v4189, 64
    %v4273 = vpop.permute.xlu0 %4272
    %4274 = vrot.lane.b32.xlu0 %v4190, 64
    %v4275 = vpop.permute.xlu0 %4274
    %4276 = vrot.lane.b32.xlu0 %v4191, 64
    %v4277 = vpop.permute.xlu0 %4276
    %4278 = vrot.lane.b32.xlu0 %v4192, 64
    %v4279 = vpop.permute.xlu0 %4278
    %4280 = vrot.lane.b32.xlu0 %v4193, 64
    %v4281 = vpop.permute.xlu0 %4280
    %4282 = vrot.lane.b32.xlu0 %v4194, 64
    %v4283 = vpop.permute.xlu0 %4282
    %4284 = vrot.lane.b32.xlu0 %v4195, 64
    %v4285 = vpop.permute.xlu0 %4284
    %4286 = vrot.lane.b32.xlu0 %v4196, 64
    %v4287 = vpop.permute.xlu0 %4286
    %4288 = vrot.lane.b32.xlu0 %v4197, 64
    %v4289 = vpop.permute.xlu0 %4288
    %4290 = vrot.lane.b32.xlu0 %v4198, 64
    %v4291 = vpop.permute.xlu0 %4290
    %4292 = vrot.lane.b32.xlu0 %v4199, 64
    %v4293 = vpop.permute.xlu0 %4292
    %4294 = vrot.lane.b32.xlu0 %v4200, 64
    %v4295 = vpop.permute.xlu0 %4294
    %4296 = vrot.lane.b32.xlu0 %v4201, 64
    %v4297 = vpop.permute.xlu0 %4296
    %v4330 = vsel %vm521, %v4235, 0.0
    %4331 = vadd.xlane.f32.xlu0 %v4330
    %v4332 = vpop.xlane.xlu0 %4331
    %v4333 = vsel %vm521, %v4237, 0.0
    %4334 = vadd.xlane.f32.xlu0 %v4333
    %v4335 = vpop.xlane.xlu0 %4334
    %v4336 = vsel %vm521, %v4239, 0.0
    %4337 = vadd.xlane.f32.xlu0 %v4336
    %v4338 = vpop.xlane.xlu0 %4337
    %v4339 = vsel %vm521, %v4241, 0.0
    %4340 = vadd.xlane.f32.xlu0 %v4339
    %v4341 = vpop.xlane.xlu0 %4340
    %v4342 = vsel %vm521, %v4243, 0.0
    %4343 = vadd.xlane.f32.xlu0 %v4342
    %v4344 = vpop.xlane.xlu0 %4343
    %v4345 = vsel %vm521, %v4245, 0.0
    %4346 = vadd.xlane.f32.xlu0 %v4345
    %v4347 = vpop.xlane.xlu0 %4346
    %v4348 = vsel %vm521, %v4247, 0.0
    %4349 = vadd.xlane.f32.xlu0 %v4348
    %v4350 = vpop.xlane.xlu0 %4349
    %v4351 = vsel %vm521, %v4249, 0.0
    %4352 = vadd.xlane.f32.xlu0 %v4351
    %v4353 = vpop.xlane.xlu0 %4352
    %v4354 = vsel %vm521, %v4251, 0.0
    %4355 = vadd.xlane.f32.xlu0 %v4354
    %v4356 = vpop.xlane.xlu0 %4355
    %v4357 = vsel %vm521, %v4253, 0.0
    %4358 = vadd.xlane.f32.xlu0 %v4357
    %v4359 = vpop.xlane.xlu0 %4358
    %v4360 = vsel %vm521, %v4255, 0.0
    %4361 = vadd.xlane.f32.xlu0 %v4360
    %v4362 = vpop.xlane.xlu0 %4361
    %v4363 = vsel %vm521, %v4257, 0.0
    %4364 = vadd.xlane.f32.xlu0 %v4363
    %v4365 = vpop.xlane.xlu0 %4364
    %v4366 = vsel %vm521, %v4259, 0.0
    %4367 = vadd.xlane.f32.xlu0 %v4366
    %v4368 = vpop.xlane.xlu0 %4367
    %v4369 = vsel %vm521, %v4261, 0.0
    %4370 = vadd.xlane.f32.xlu0 %v4369
    %v4371 = vpop.xlane.xlu0 %4370
    %v4372 = vsel %vm521, %v4263, 0.0
    %4373 = vadd.xlane.f32.xlu0 %v4372
    %v4374 = vpop.xlane.xlu0 %4373
    %v4375 = vsel %vm521, %v4265, 0.0
    %4376 = vadd.xlane.f32.xlu0 %v4375
    %v4377 = vpop.xlane.xlu0 %4376
    %v4378 = vsel %vm521, %v4267, 0.0
    %4379 = vadd.xlane.f32.xlu0 %v4378
    %v4380 = vpop.xlane.xlu0 %4379
    %v4381 = vsel %vm521, %v4269, 0.0
    %4382 = vadd.xlane.f32.xlu0 %v4381
    %v4383 = vpop.xlane.xlu0 %4382
    %v4384 = vsel %vm521, %v4271, 0.0
    %4385 = vadd.xlane.f32.xlu0 %v4384
    %v4386 = vpop.xlane.xlu0 %4385
    %v4387 = vsel %vm521, %v4273, 0.0
    %4388 = vadd.xlane.f32.xlu0 %v4387
    %v4389 = vpop.xlane.xlu0 %4388
    %v4390 = vsel %vm521, %v4275, 0.0
    %4391 = vadd.xlane.f32.xlu0 %v4390
    %v4392 = vpop.xlane.xlu0 %4391
    %v4393 = vsel %vm521, %v4277, 0.0
    %4394 = vadd.xlane.f32.xlu0 %v4393
    %v4395 = vpop.xlane.xlu0 %4394
    %v4396 = vsel %vm521, %v4279, 0.0
    %4397 = vadd.xlane.f32.xlu0 %v4396
    %v4398 = vpop.xlane.xlu0 %4397
    %v4399 = vsel %vm521, %v4281, 0.0
    %4400 = vadd.xlane.f32.xlu0 %v4399
    %v4401 = vpop.xlane.xlu0 %4400
    %v4402 = vsel %vm521, %v4283, 0.0
    %4403 = vadd.xlane.f32.xlu0 %v4402
    %v4404 = vpop.xlane.xlu0 %4403
    %v4405 = vsel %vm521, %v4285, 0.0
    %4406 = vadd.xlane.f32.xlu0 %v4405
    %v4407 = vpop.xlane.xlu0 %4406
    %v4408 = vsel %vm521, %v4287, 0.0
    %4409 = vadd.xlane.f32.xlu0 %v4408
    %v4410 = vpop.xlane.xlu0 %4409
    %v4411 = vsel %vm521, %v4289, 0.0
    %4412 = vadd.xlane.f32.xlu0 %v4411
    %v4413 = vpop.xlane.xlu0 %4412
    %v4414 = vsel %vm521, %v4291, 0.0
    %4415 = vadd.xlane.f32.xlu0 %v4414
    %v4416 = vpop.xlane.xlu0 %4415
    %v4417 = vsel %vm521, %v4293, 0.0
    %4418 = vadd.xlane.f32.xlu0 %v4417
    %v4419 = vpop.xlane.xlu0 %4418
    %v4420 = vsel %vm521, %v4295, 0.0
    %4421 = vadd.xlane.f32.xlu0 %v4420
    %v4422 = vpop.xlane.xlu0 %4421
    %v4423 = vsel %vm521, %v4297, 0.0
    %4424 = vadd.xlane.f32.xlu0 %v4423
    %v4425 = vpop.xlane.xlu0 %4424
    %v4458 = vlaneseq
    %v4459 = vshrl.u32 %v4458, 7
    %v4460 = vsub.s32 %v653, %v4459
    %v4461 = vrot.slane %v4332, %v4460
    %v4462 = vlaneseq
    %v4463 = vshrl.u32 %v4462, 7
    %v4464 = vsub.s32 %v658, %v4463
    %v4465 = vrot.slane %v4335, %v4464
    %v4466 = vsel %vm663, %v4465, %v4461
    %v4467 = vlaneseq
    %v4468 = vshrl.u32 %v4467, 7
    %v4469 = vsub.s32 %v653, %v4468
    %v4470 = vrot.slane %v4338, %v4469
    %v4471 = vlaneseq
    %v4472 = vshrl.u32 %v4471, 7
    %v4473 = vsub.s32 %v658, %v4472
    %v4474 = vrot.slane %v4341, %v4473
    %v4475 = vsel %vm663, %v4474, %v4470
    %v4476 = vlaneseq
    %v4477 = vshrl.u32 %v4476, 7
    %v4478 = vsub.s32 %v653, %v4477
    %v4479 = vrot.slane %v4344, %v4478
    %v4480 = vlaneseq
    %v4481 = vshrl.u32 %v4480, 7
    %v4482 = vsub.s32 %v658, %v4481
    %v4483 = vrot.slane %v4347, %v4482
    %v4484 = vsel %vm663, %v4483, %v4479
    %v4485 = vlaneseq
    %v4486 = vshrl.u32 %v4485, 7
    %v4487 = vsub.s32 %v653, %v4486
    %v4488 = vrot.slane %v4350, %v4487
    %v4489 = vlaneseq
    %v4490 = vshrl.u32 %v4489, 7
    %v4491 = vsub.s32 %v658, %v4490
    %v4492 = vrot.slane %v4353, %v4491
    %v4493 = vsel %vm663, %v4492, %v4488
    %v4494 = vlaneseq
    %v4495 = vshrl.u32 %v4494, 7
    %v4496 = vsub.s32 %v653, %v4495
    %v4497 = vrot.slane %v4356, %v4496
    %v4498 = vlaneseq
    %v4499 = vshrl.u32 %v4498, 7
    %v4500 = vsub.s32 %v658, %v4499
    %v4501 = vrot.slane %v4359, %v4500
    %v4502 = vsel %vm663, %v4501, %v4497
    %v4503 = vlaneseq
    %v4504 = vshrl.u32 %v4503, 7
    %v4505 = vsub.s32 %v653, %v4504
    %v4506 = vrot.slane %v4362, %v4505
    %v4507 = vlaneseq
    %v4508 = vshrl.u32 %v4507, 7
    %v4509 = vsub.s32 %v658, %v4508
    %v4510 = vrot.slane %v4365, %v4509
    %v4511 = vsel %vm663, %v4510, %v4506
    %v4512 = vlaneseq
    %v4513 = vshrl.u32 %v4512, 7
    %v4514 = vsub.s32 %v653, %v4513
    %v4515 = vrot.slane %v4368, %v4514
    %v4516 = vlaneseq
    %v4517 = vshrl.u32 %v4516, 7
    %v4518 = vsub.s32 %v658, %v4517
    %v4519 = vrot.slane %v4371, %v4518
    %v4520 = vsel %vm663, %v4519, %v4515
    %v4521 = vlaneseq
    %v4522 = vshrl.u32 %v4521, 7
    %v4523 = vsub.s32 %v653, %v4522
    %v4524 = vrot.slane %v4374, %v4523
    %v4525 = vlaneseq
    %v4526 = vshrl.u32 %v4525, 7
    %v4527 = vsub.s32 %v658, %v4526
    %v4528 = vrot.slane %v4377, %v4527
    %v4529 = vsel %vm663, %v4528, %v4524
    %v4530 = vlaneseq
    %v4531 = vshrl.u32 %v4530, 7
    %v4532 = vsub.s32 %v653, %v4531
    %v4533 = vrot.slane %v4380, %v4532
    %v4534 = vlaneseq
    %v4535 = vshrl.u32 %v4534, 7
    %v4536 = vsub.s32 %v658, %v4535
    %v4537 = vrot.slane %v4383, %v4536
    %v4538 = vsel %vm663, %v4537, %v4533
    %v4539 = vlaneseq
    %v4540 = vshrl.u32 %v4539, 7
    %v4541 = vsub.s32 %v653, %v4540
    %v4542 = vrot.slane %v4386, %v4541
    %v4543 = vlaneseq
    %v4544 = vshrl.u32 %v4543, 7
    %v4545 = vsub.s32 %v658, %v4544
    %v4546 = vrot.slane %v4389, %v4545
    %v4547 = vsel %vm663, %v4546, %v4542
    %v4548 = vlaneseq
    %v4549 = vshrl.u32 %v4548, 7
    %v4550 = vsub.s32 %v653, %v4549
    %v4551 = vrot.slane %v4392, %v4550
    %v4552 = vlaneseq
    %v4553 = vshrl.u32 %v4552, 7
    %v4554 = vsub.s32 %v658, %v4553
    %v4555 = vrot.slane %v4395, %v4554
    %v4556 = vsel %vm663, %v4555, %v4551
    %v4557 = vlaneseq
    %v4558 = vshrl.u32 %v4557, 7
    %v4559 = vsub.s32 %v653, %v4558
    %v4560 = vrot.slane %v4398, %v4559
    %v4561 = vlaneseq
    %v4562 = vshrl.u32 %v4561, 7
    %v4563 = vsub.s32 %v658, %v4562
    %v4564 = vrot.slane %v4401, %v4563
    %v4565 = vsel %vm663, %v4564, %v4560
    %v4566 = vlaneseq
    %v4567 = vshrl.u32 %v4566, 7
    %v4568 = vsub.s32 %v653, %v4567
    %v4569 = vrot.slane %v4404, %v4568
    %v4570 = vlaneseq
    %v4571 = vshrl.u32 %v4570, 7
    %v4572 = vsub.s32 %v658, %v4571
    %v4573 = vrot.slane %v4407, %v4572
    %v4574 = vsel %vm663, %v4573, %v4569
    %v4575 = vlaneseq
    %v4576 = vshrl.u32 %v4575, 7
    %v4577 = vsub.s32 %v653, %v4576
    %v4578 = vrot.slane %v4410, %v4577
    %v4579 = vlaneseq
    %v4580 = vshrl.u32 %v4579, 7
    %v4581 = vsub.s32 %v658, %v4580
    %v4582 = vrot.slane %v4413, %v4581
    %v4583 = vsel %vm663, %v4582, %v4578
    %v4584 = vlaneseq
    %v4585 = vshrl.u32 %v4584, 7
    %v4586 = vsub.s32 %v653, %v4585
    %v4587 = vrot.slane %v4416, %v4586
    %v4588 = vlaneseq
    %v4589 = vshrl.u32 %v4588, 7
    %v4590 = vsub.s32 %v658, %v4589
    %v4591 = vrot.slane %v4419, %v4590
    %v4592 = vsel %vm663, %v4591, %v4587
    %v4593 = vlaneseq
    %v4594 = vshrl.u32 %v4593, 7
    %v4595 = vsub.s32 %v653, %v4594
    %v4596 = vrot.slane %v4422, %v4595
    %v4597 = vlaneseq
    %v4598 = vshrl.u32 %v4597, 7
    %v4599 = vsub.s32 %v658, %v4598
    %v4600 = vrot.slane %v4425, %v4599
    %v4601 = vsel %vm663, %v4600, %v4596
    %v4602 = vsel %vm800, %v4475, %v4466
    %v4603 = vsel %vm802, %v4484, %v4602
    %v4604 = vsel %vm804, %v4493, %v4603
    %v4605 = vsel %vm806, %v4502, %v4604
    %v4606 = vsel %vm808, %v4511, %v4605
    %v4607 = vsel %vm810, %v4520, %v4606
    %v4608 = vsel %vm812, %v4529, %v4607
    %v4609 = vsel %vm800, %v4547, %v4538
    %v4610 = vsel %vm802, %v4556, %v4609
    %v4611 = vsel %vm804, %v4565, %v4610
    %v4612 = vsel %vm806, %v4574, %v4611
    %v4613 = vsel %vm808, %v4583, %v4612
    %v4614 = vsel %vm810, %v4592, %v4613
    %v4615 = vsel %vm812, %v4601, %v4614
    %v4618 = vsel %vm618, %v4608, -1e+30
    %v4619 = vsel %vm619, %v4615, -1e+30
    %v4620 = vsel %vm825, %v4618, -inf
    %4621 = vmax.xlane.f32.xlu0 %v4620
    %v4622 = vpop.xlane.xlu0 %4621
    %v4623 = vsel %vm825, %v4619, -inf
    %4624 = vmax.xlane.f32.xlu0 %v4623
    %v4625 = vpop.xlane.xlu0 %4624
    %v4626 = vsub.f32 %v4618, %v4622
    %v4627 = vsub.f32 %v4619, %v4625
    %v4628 = vmul.f32 %v4626, 1.442695
    %v4629 = vpow.pop %v4628
    %v4630 = vmul.f32 %v4627, 1.442695
    %v4631 = vpow.pop %v4630
    %v4632 = vmul.f32 %v4629, %v76
    %v4633 = vmul.f32 %v4631, %v77
    %v4634 = vsel %vm825, %v4632, 0.0
    %4635 = vadd.xlane.f32.xlu0 %v4634
    %v4636 = vpop.xlane.xlu0 %4635
    %v4637 = vsel %vm825, %v4633, 0.0
    %4638 = vadd.xlane.f32.xlu0 %v4637
    %v4639 = vpop.xlane.xlu0 %4638
    %v4640 = vadd.f32 %v4636, 1e-16
    %v4641 = vadd.f32 %v4639, 1e-16
    %4642 = vrot.lane.b32.xlu0 %v2831, 64
    %v4643 = vpop.permute.xlu0 %4642
    %4644 = vrot.lane.b32.xlu0 %v2837, 64
    %v4645 = vpop.permute.xlu0 %4644
    %v4649 = vsel %vm825, %v4632, 0
    %v4652 = vsel %vm825, %v4633, 0
    %4654 = vmatprep.subr.mxu0 0.0
    %4655 = vmatpush1.msra.mxu0 %v4643
    %4656 = vmatprep.subr.mxu0 0.0
    %4657 = vmatpush1.msra.mxu0 %v4645
    %4658 = vmatprep.subr.mxu0 0.0
    %4659 = vmatpush1.msra.mxu0 0.0
    %4660 = vmatprep.subr.mxu0 0.0
    %4661 = vmatpush1.msra.mxu0 0.0
    %4662 = vmatprep.subr.mxu0 0.0
    %4663 = vmatpush1.msra.mxu0 0.0
    %4664 = vmatprep.subr.mxu0 0.0
    %4665 = vmatpush1.msra.mxu0 0.0
    %4666 = vmatprep.subr.mxu0 0.0
    %4667 = vmatpush1.msra.mxu0 0.0
    %4668 = vmatprep.subr.mxu0 0.0
    %4669 = vmatpush1.msra.mxu0 0.0
    %4670 = vmatprep.subr.mxu0 0.0
    %4671 = vmatpush1.msra.mxu0 0.0
    %4672 = vmatprep.subr.mxu0 0.0
    %4673 = vmatpush1.msra.mxu0 0.0
    %4674 = vmatprep.subr.mxu0 0.0
    %4675 = vmatpush1.msra.mxu0 0.0
    %4676 = vmatprep.subr.mxu0 0.0
    %4677 = vmatpush1.msra.mxu0 0.0
    %4678 = vmatprep.subr.mxu0 0.0
    %4679 = vmatpush1.msra.mxu0 0.0
    %4680 = vmatprep.subr.mxu0 0.0
    %4681 = vmatpush1.msra.mxu0 0.0
    %4682 = vmatprep.subr.mxu0 0.0
    %4683 = vmatpush1.msra.mxu0 0.0
    %4684 = vmatprep.subr.mxu0 0.0
    %4685 = vmatpush1.msra.mxu0 0.0
    %4686 = vmatprep.subr.mxu0 0.0
    %4687 = vmatpush1.msra.mxu0 0.0
    %4688 = vmatprep.subr.mxu0 0.0
    %4689 = vmatpush1.msra.mxu0 0.0
    %4690 = vmatprep.subr.mxu0 0.0
    %4691 = vmatpush1.msra.mxu0 0.0
    %4692 = vmatprep.subr.mxu0 0.0
    %4693 = vmatpush1.msra.mxu0 0.0
    %4694 = vmatprep.subr.mxu0 0.0
    %4695 = vmatpush1.msra.mxu0 0.0
    %4696 = vmatprep.subr.mxu0 0.0
    %4697 = vmatpush1.msra.mxu0 0.0
    %4698 = vmatprep.subr.mxu0 0.0
    %4699 = vmatpush1.msra.mxu0 0.0
    %4700 = vmatprep.subr.mxu0 0.0
    %4701 = vmatpush1.msra.mxu0 0.0
    %4702 = vmatprep.subr.mxu0 0.0
    %4703 = vmatpush1.msra.mxu0 0.0
    %4704 = vmatprep.subr.mxu0 0.0
    %4705 = vmatpush1.msra.mxu0 0.0
    %4706 = vmatprep.subr.mxu0 0.0
    %4707 = vmatpush1.msra.mxu0 0.0
    %4708 = vmatprep.subr.mxu0 0.0
    %4709 = vmatpush1.msra.mxu0 0.0
    %4710 = vmatprep.subr.mxu0 0.0
    %4711 = vmatpush1.msra.mxu0 0.0
    %4712 = vmatprep.subr.mxu0 0.0
    %4713 = vmatpush1.msra.mxu0 0.0
    %4714 = vmatprep.subr.mxu0 0.0
    %4715 = vmatpush1.msra.mxu0 0.0
    %4716 = vmatprep.subr.mxu0 0.0
    %4717 = vmatpush1.msra.mxu0 0.0
    %4718 = vmatprep.mubr.f32.mxu0 0.0
    %4719 = vmatmul.mubr.f32.gmra.mrb[0].mxu0 %v4649
    %v4720 = vpop.f32.mrb[0].mxu0
    %v4721 = vadd.f32 0.0, %v4720
    %v4722 = vpop.f32.mrb[0].mxu0
    %4723 = vmatprep.mubr.f32.mxu0 0.0
    %4724 = vmatmul.mubr.f32.gmra.mrb[0].mxu0 %v4652
    %v4725 = vpop.f32.mrb[0].mxu0
    %v4726 = vadd.f32 0.0, %v4725
    %v4727 = vpop.f32.mrb[0].mxu0
    %4728 = vdwg.mxu0
    %v4729 = vrcp.pop %v4640
    %v4730 = vrcp.pop %v4641
    %v4731 = vmul.f32 %v4721, %v4729
    %v4732 = vmul.f32 %v4726, %v4730
    %v4733 = vadd.f32 %v4159, %v4731
    %v4734 = vadd.f32 %v4160, %v4732
    %v4735 = vld [vmem:[%s10 + $0x3] sm:$0x1]
    %v4736 = vlaneseq
    %v4737 = vshrl.u32 %v4736, 7
    %v4738 = vsub.s32 0, %v4737
    %v4739 = vrot.slane %v4735, %v4738
    %4741 = vrot.lane.b32.xlu0 %v4739, 96
    %v4742 = vpop.permute.xlu0 %4741
    %v4744 = vmul.f32 %v3118, %v4742
    %v4745 = vmul.f32 %v3119, %v4742
    %v4746 = vmul.f32 %v3120, %v4742
    %v4747 = vmul.f32 %v3121, %v4742
    %v4748 = vmul.f32 %v3122, %v4742
    %v4749 = vmul.f32 %v3123, %v4742
    %v4750 = vmul.f32 %v3124, %v4742
    %v4751 = vmul.f32 %v3125, %v4742
    %v4752 = vmul.f32 %v3126, %v4742
    %v4753 = vmul.f32 %v3127, %v4742
    %v4754 = vmul.f32 %v3128, %v4742
    %v4755 = vmul.f32 %v3129, %v4742
    %v4756 = vmul.f32 %v3130, %v4742
    %v4757 = vmul.f32 %v3131, %v4742
    %v4758 = vmul.f32 %v3132, %v4742
    %v4759 = vmul.f32 %v3133, %v4742
    %v4760 = vmul.f32 %v3134, %v4742
    %v4761 = vmul.f32 %v3135, %v4742
    %v4762 = vmul.f32 %v3136, %v4742
    %v4763 = vmul.f32 %v3137, %v4742
    %v4764 = vmul.f32 %v3138, %v4742
    %v4765 = vmul.f32 %v3139, %v4742
    %v4766 = vmul.f32 %v3140, %v4742
    %v4767 = vmul.f32 %v3141, %v4742
    %v4768 = vmul.f32 %v3142, %v4742
    %v4769 = vmul.f32 %v3143, %v4742
    %v4770 = vmul.f32 %v3144, %v4742
    %v4771 = vmul.f32 %v3145, %v4742
    %v4772 = vmul.f32 %v3146, %v4742
    %v4773 = vmul.f32 %v3147, %v4742
    %v4774 = vmul.f32 %v3148, %v4742
    %v4775 = vmul.f32 %v3149, %v4742
    %4808 = vrot.lane.b32.xlu0 %v4744, 32
    %v4809 = vpop.permute.xlu0 %4808
    %4810 = vrot.lane.b32.xlu0 %v4745, 32
    %v4811 = vpop.permute.xlu0 %4810
    %4812 = vrot.lane.b32.xlu0 %v4746, 32
    %v4813 = vpop.permute.xlu0 %4812
    %4814 = vrot.lane.b32.xlu0 %v4747, 32
    %v4815 = vpop.permute.xlu0 %4814
    %4816 = vrot.lane.b32.xlu0 %v4748, 32
    %v4817 = vpop.permute.xlu0 %4816
    %4818 = vrot.lane.b32.xlu0 %v4749, 32
    %v4819 = vpop.permute.xlu0 %4818
    %4820 = vrot.lane.b32.xlu0 %v4750, 32
    %v4821 = vpop.permute.xlu0 %4820
    %4822 = vrot.lane.b32.xlu0 %v4751, 32
    %v4823 = vpop.permute.xlu0 %4822
    %4824 = vrot.lane.b32.xlu0 %v4752, 32
    %v4825 = vpop.permute.xlu0 %4824
    %4826 = vrot.lane.b32.xlu0 %v4753, 32
    %v4827 = vpop.permute.xlu0 %4826
    %4828 = vrot.lane.b32.xlu0 %v4754, 32
    %v4829 = vpop.permute.xlu0 %4828
    %4830 = vrot.lane.b32.xlu0 %v4755, 32
    %v4831 = vpop.permute.xlu0 %4830
    %4832 = vrot.lane.b32.xlu0 %v4756, 32
    %v4833 = vpop.permute.xlu0 %4832
    %4834 = vrot.lane.b32.xlu0 %v4757, 32
    %v4835 = vpop.permute.xlu0 %4834
    %4836 = vrot.lane.b32.xlu0 %v4758, 32
    %v4837 = vpop.permute.xlu0 %4836
    %4838 = vrot.lane.b32.xlu0 %v4759, 32
    %v4839 = vpop.permute.xlu0 %4838
    %4840 = vrot.lane.b32.xlu0 %v4760, 32
    %v4841 = vpop.permute.xlu0 %4840
    %4842 = vrot.lane.b32.xlu0 %v4761, 32
    %v4843 = vpop.permute.xlu0 %4842
    %4844 = vrot.lane.b32.xlu0 %v4762, 32
    %v4845 = vpop.permute.xlu0 %4844
    %4846 = vrot.lane.b32.xlu0 %v4763, 32
    %v4847 = vpop.permute.xlu0 %4846
    %4848 = vrot.lane.b32.xlu0 %v4764, 32
    %v4849 = vpop.permute.xlu0 %4848
    %4850 = vrot.lane.b32.xlu0 %v4765, 32
    %v4851 = vpop.permute.xlu0 %4850
    %4852 = vrot.lane.b32.xlu0 %v4766, 32
    %v4853 = vpop.permute.xlu0 %4852
    %4854 = vrot.lane.b32.xlu0 %v4767, 32
    %v4855 = vpop.permute.xlu0 %4854
    %4856 = vrot.lane.b32.xlu0 %v4768, 32
    %v4857 = vpop.permute.xlu0 %4856
    %4858 = vrot.lane.b32.xlu0 %v4769, 32
    %v4859 = vpop.permute.xlu0 %4858
    %4860 = vrot.lane.b32.xlu0 %v4770, 32
    %v4861 = vpop.permute.xlu0 %4860
    %4862 = vrot.lane.b32.xlu0 %v4771, 32
    %v4863 = vpop.permute.xlu0 %4862
    %4864 = vrot.lane.b32.xlu0 %v4772, 32
    %v4865 = vpop.permute.xlu0 %4864
    %4866 = vrot.lane.b32.xlu0 %v4773, 32
    %v4867 = vpop.permute.xlu0 %4866
    %4868 = vrot.lane.b32.xlu0 %v4774, 32
    %v4869 = vpop.permute.xlu0 %4868
    %4870 = vrot.lane.b32.xlu0 %v4775, 32
    %v4871 = vpop.permute.xlu0 %4870
    %v4904 = vsel %vm521, %v4809, 0.0
    %4905 = vadd.xlane.f32.xlu0 %v4904
    %v4906 = vpop.xlane.xlu0 %4905
    %v4907 = vsel %vm521, %v4811, 0.0
    %4908 = vadd.xlane.f32.xlu0 %v4907
    %v4909 = vpop.xlane.xlu0 %4908
    %v4910 = vsel %vm521, %v4813, 0.0
    %4911 = vadd.xlane.f32.xlu0 %v4910
    %v4912 = vpop.xlane.xlu0 %4911
    %v4913 = vsel %vm521, %v4815, 0.0
    %4914 = vadd.xlane.f32.xlu0 %v4913
    %v4915 = vpop.xlane.xlu0 %4914
    %v4916 = vsel %vm521, %v4817, 0.0
    %4917 = vadd.xlane.f32.xlu0 %v4916
    %v4918 = vpop.xlane.xlu0 %4917
    %v4919 = vsel %vm521, %v4819, 0.0
    %4920 = vadd.xlane.f32.xlu0 %v4919
    %v4921 = vpop.xlane.xlu0 %4920
    %v4922 = vsel %vm521, %v4821, 0.0
    %4923 = vadd.xlane.f32.xlu0 %v4922
    %v4924 = vpop.xlane.xlu0 %4923
    %v4925 = vsel %vm521, %v4823, 0.0
    %4926 = vadd.xlane.f32.xlu0 %v4925
    %v4927 = vpop.xlane.xlu0 %4926
    %v4928 = vsel %vm521, %v4825, 0.0
    %4929 = vadd.xlane.f32.xlu0 %v4928
    %v4930 = vpop.xlane.xlu0 %4929
    %v4931 = vsel %vm521, %v4827, 0.0
    %4932 = vadd.xlane.f32.xlu0 %v4931
    %v4933 = vpop.xlane.xlu0 %4932
    %v4934 = vsel %vm521, %v4829, 0.0
    %4935 = vadd.xlane.f32.xlu0 %v4934
    %v4936 = vpop.xlane.xlu0 %4935
    %v4937 = vsel %vm521, %v4831, 0.0
    %4938 = vadd.xlane.f32.xlu0 %v4937
    %v4939 = vpop.xlane.xlu0 %4938
    %v4940 = vsel %vm521, %v4833, 0.0
    %4941 = vadd.xlane.f32.xlu0 %v4940
    %v4942 = vpop.xlane.xlu0 %4941
    %v4943 = vsel %vm521, %v4835, 0.0
    %4944 = vadd.xlane.f32.xlu0 %v4943
    %v4945 = vpop.xlane.xlu0 %4944
    %v4946 = vsel %vm521, %v4837, 0.0
    %4947 = vadd.xlane.f32.xlu0 %v4946
    %v4948 = vpop.xlane.xlu0 %4947
    %v4949 = vsel %vm521, %v4839, 0.0
    %4950 = vadd.xlane.f32.xlu0 %v4949
    %v4951 = vpop.xlane.xlu0 %4950
    %v4952 = vsel %vm521, %v4841, 0.0
    %4953 = vadd.xlane.f32.xlu0 %v4952
    %v4954 = vpop.xlane.xlu0 %4953
    %v4955 = vsel %vm521, %v4843, 0.0
    %4956 = vadd.xlane.f32.xlu0 %v4955
    %v4957 = vpop.xlane.xlu0 %4956
    %v4958 = vsel %vm521, %v4845, 0.0
    %4959 = vadd.xlane.f32.xlu0 %v4958
    %v4960 = vpop.xlane.xlu0 %4959
    %v4961 = vsel %vm521, %v4847, 0.0
    %4962 = vadd.xlane.f32.xlu0 %v4961
    %v4963 = vpop.xlane.xlu0 %4962
    %v4964 = vsel %vm521, %v4849, 0.0
    %4965 = vadd.xlane.f32.xlu0 %v4964
    %v4966 = vpop.xlane.xlu0 %4965
    %v4967 = vsel %vm521, %v4851, 0.0
    %4968 = vadd.xlane.f32.xlu0 %v4967
    %v4969 = vpop.xlane.xlu0 %4968
    %v4970 = vsel %vm521, %v4853, 0.0
    %4971 = vadd.xlane.f32.xlu0 %v4970
    %v4972 = vpop.xlane.xlu0 %4971
    %v4973 = vsel %vm521, %v4855, 0.0
    %4974 = vadd.xlane.f32.xlu0 %v4973
    %v4975 = vpop.xlane.xlu0 %4974
    %v4976 = vsel %vm521, %v4857, 0.0
    %4977 = vadd.xlane.f32.xlu0 %v4976
    %v4978 = vpop.xlane.xlu0 %4977
    %v4979 = vsel %vm521, %v4859, 0.0
    %4980 = vadd.xlane.f32.xlu0 %v4979
    %v4981 = vpop.xlane.xlu0 %4980
    %v4982 = vsel %vm521, %v4861, 0.0
    %4983 = vadd.xlane.f32.xlu0 %v4982
    %v4984 = vpop.xlane.xlu0 %4983
    %v4985 = vsel %vm521, %v4863, 0.0
    %4986 = vadd.xlane.f32.xlu0 %v4985
    %v4987 = vpop.xlane.xlu0 %4986
    %v4988 = vsel %vm521, %v4865, 0.0
    %4989 = vadd.xlane.f32.xlu0 %v4988
    %v4990 = vpop.xlane.xlu0 %4989
    %v4991 = vsel %vm521, %v4867, 0.0
    %4992 = vadd.xlane.f32.xlu0 %v4991
    %v4993 = vpop.xlane.xlu0 %4992
    %v4994 = vsel %vm521, %v4869, 0.0
    %4995 = vadd.xlane.f32.xlu0 %v4994
    %v4996 = vpop.xlane.xlu0 %4995
    %v4997 = vsel %vm521, %v4871, 0.0
    %4998 = vadd.xlane.f32.xlu0 %v4997
    %v4999 = vpop.xlane.xlu0 %4998
    %v5032 = vlaneseq
    %v5033 = vshrl.u32 %v5032, 7
    %v5034 = vsub.s32 %v653, %v5033
    %v5035 = vrot.slane %v4906, %v5034
    %v5036 = vlaneseq
    %v5037 = vshrl.u32 %v5036, 7
    %v5038 = vsub.s32 %v658, %v5037
    %v5039 = vrot.slane %v4909, %v5038
    %v5040 = vsel %vm663, %v5039, %v5035
    %v5041 = vlaneseq
    %v5042 = vshrl.u32 %v5041, 7
    %v5043 = vsub.s32 %v653, %v5042
    %v5044 = vrot.slane %v4912, %v5043
    %v5045 = vlaneseq
    %v5046 = vshrl.u32 %v5045, 7
    %v5047 = vsub.s32 %v658, %v5046
    %v5048 = vrot.slane %v4915, %v5047
    %v5049 = vsel %vm663, %v5048, %v5044
    %v5050 = vlaneseq
    %v5051 = vshrl.u32 %v5050, 7
    %v5052 = vsub.s32 %v653, %v5051
    %v5053 = vrot.slane %v4918, %v5052
    %v5054 = vlaneseq
    %v5055 = vshrl.u32 %v5054, 7
    %v5056 = vsub.s32 %v658, %v5055
    %v5057 = vrot.slane %v4921, %v5056
    %v5058 = vsel %vm663, %v5057, %v5053
    %v5059 = vlaneseq
    %v5060 = vshrl.u32 %v5059, 7
    %v5061 = vsub.s32 %v653, %v5060
    %v5062 = vrot.slane %v4924, %v5061
    %v5063 = vlaneseq
    %v5064 = vshrl.u32 %v5063, 7
    %v5065 = vsub.s32 %v658, %v5064
    %v5066 = vrot.slane %v4927, %v5065
    %v5067 = vsel %vm663, %v5066, %v5062
    %v5068 = vlaneseq
    %v5069 = vshrl.u32 %v5068, 7
    %v5070 = vsub.s32 %v653, %v5069
    %v5071 = vrot.slane %v4930, %v5070
    %v5072 = vlaneseq
    %v5073 = vshrl.u32 %v5072, 7
    %v5074 = vsub.s32 %v658, %v5073
    %v5075 = vrot.slane %v4933, %v5074
    %v5076 = vsel %vm663, %v5075, %v5071
    %v5077 = vlaneseq
    %v5078 = vshrl.u32 %v5077, 7
    %v5079 = vsub.s32 %v653, %v5078
    %v5080 = vrot.slane %v4936, %v5079
    %v5081 = vlaneseq
    %v5082 = vshrl.u32 %v5081, 7
    %v5083 = vsub.s32 %v658, %v5082
    %v5084 = vrot.slane %v4939, %v5083
    %v5085 = vsel %vm663, %v5084, %v5080
    %v5086 = vlaneseq
    %v5087 = vshrl.u32 %v5086, 7
    %v5088 = vsub.s32 %v653, %v5087
    %v5089 = vrot.slane %v4942, %v5088
    %v5090 = vlaneseq
    %v5091 = vshrl.u32 %v5090, 7
    %v5092 = vsub.s32 %v658, %v5091
    %v5093 = vrot.slane %v4945, %v5092
    %v5094 = vsel %vm663, %v5093, %v5089
    %v5095 = vlaneseq
    %v5096 = vshrl.u32 %v5095, 7
    %v5097 = vsub.s32 %v653, %v5096
    %v5098 = vrot.slane %v4948, %v5097
    %v5099 = vlaneseq
    %v5100 = vshrl.u32 %v5099, 7
    %v5101 = vsub.s32 %v658, %v5100
    %v5102 = vrot.slane %v4951, %v5101
    %v5103 = vsel %vm663, %v5102, %v5098
    %v5104 = vlaneseq
    %v5105 = vshrl.u32 %v5104, 7
    %v5106 = vsub.s32 %v653, %v5105
    %v5107 = vrot.slane %v4954, %v5106
    %v5108 = vlaneseq
    %v5109 = vshrl.u32 %v5108, 7
    %v5110 = vsub.s32 %v658, %v5109
    %v5111 = vrot.slane %v4957, %v5110
    %v5112 = vsel %vm663, %v5111, %v5107
    %v5113 = vlaneseq
    %v5114 = vshrl.u32 %v5113, 7
    %v5115 = vsub.s32 %v653, %v5114
    %v5116 = vrot.slane %v4960, %v5115
    %v5117 = vlaneseq
    %v5118 = vshrl.u32 %v5117, 7
    %v5119 = vsub.s32 %v658, %v5118
    %v5120 = vrot.slane %v4963, %v5119
    %v5121 = vsel %vm663, %v5120, %v5116
    %v5122 = vlaneseq
    %v5123 = vshrl.u32 %v5122, 7
    %v5124 = vsub.s32 %v653, %v5123
    %v5125 = vrot.slane %v4966, %v5124
    %v5126 = vlaneseq
    %v5127 = vshrl.u32 %v5126, 7
    %v5128 = vsub.s32 %v658, %v5127
    %v5129 = vrot.slane %v4969, %v5128
    %v5130 = vsel %vm663, %v5129, %v5125
    %v5131 = vlaneseq
    %v5132 = vshrl.u32 %v5131, 7
    %v5133 = vsub.s32 %v653, %v5132
    %v5134 = vrot.slane %v4972, %v5133
    %v5135 = vlaneseq
    %v5136 = vshrl.u32 %v5135, 7
    %v5137 = vsub.s32 %v658, %v5136
    %v5138 = vrot.slane %v4975, %v5137
    %v5139 = vsel %vm663, %v5138, %v5134
    %v5140 = vlaneseq
    %v5141 = vshrl.u32 %v5140, 7
    %v5142 = vsub.s32 %v653, %v5141
    %v5143 = vrot.slane %v4978, %v5142
    %v5144 = vlaneseq
    %v5145 = vshrl.u32 %v5144, 7
    %v5146 = vsub.s32 %v658, %v5145
    %v5147 = vrot.slane %v4981, %v5146
    %v5148 = vsel %vm663, %v5147, %v5143
    %v5149 = vlaneseq
    %v5150 = vshrl.u32 %v5149, 7
    %v5151 = vsub.s32 %v653, %v5150
    %v5152 = vrot.slane %v4984, %v5151
    %v5153 = vlaneseq
    %v5154 = vshrl.u32 %v5153, 7
    %v5155 = vsub.s32 %v658, %v5154
    %v5156 = vrot.slane %v4987, %v5155
    %v5157 = vsel %vm663, %v5156, %v5152
    %v5158 = vlaneseq
    %v5159 = vshrl.u32 %v5158, 7
    %v5160 = vsub.s32 %v653, %v5159
    %v5161 = vrot.slane %v4990, %v5160
    %v5162 = vlaneseq
    %v5163 = vshrl.u32 %v5162, 7
    %v5164 = vsub.s32 %v658, %v5163
    %v5165 = vrot.slane %v4993, %v5164
    %v5166 = vsel %vm663, %v5165, %v5161
    %v5167 = vlaneseq
    %v5168 = vshrl.u32 %v5167, 7
    %v5169 = vsub.s32 %v653, %v5168
    %v5170 = vrot.slane %v4996, %v5169
    %v5171 = vlaneseq
    %v5172 = vshrl.u32 %v5171, 7
    %v5173 = vsub.s32 %v658, %v5172
    %v5174 = vrot.slane %v4999, %v5173
    %v5175 = vsel %vm663, %v5174, %v5170
    %v5176 = vsel %vm800, %v5049, %v5040
    %v5177 = vsel %vm802, %v5058, %v5176
    %v5178 = vsel %vm804, %v5067, %v5177
    %v5179 = vsel %vm806, %v5076, %v5178
    %v5180 = vsel %vm808, %v5085, %v5179
    %v5181 = vsel %vm810, %v5094, %v5180
    %v5182 = vsel %vm812, %v5103, %v5181
    %v5183 = vsel %vm800, %v5121, %v5112
    %v5184 = vsel %vm802, %v5130, %v5183
    %v5185 = vsel %vm804, %v5139, %v5184
    %v5186 = vsel %vm806, %v5148, %v5185
    %v5187 = vsel %vm808, %v5157, %v5186
    %v5188 = vsel %vm810, %v5166, %v5187
    %v5189 = vsel %vm812, %v5175, %v5188
    %v5192 = vsel %vm618, %v5182, -1e+30
    %v5193 = vsel %vm619, %v5189, -1e+30
    %v5194 = vsel %vm825, %v5192, -inf
    %5195 = vmax.xlane.f32.xlu0 %v5194
    %v5196 = vpop.xlane.xlu0 %5195
    %v5197 = vsel %vm825, %v5193, -inf
    %5198 = vmax.xlane.f32.xlu0 %v5197
    %v5199 = vpop.xlane.xlu0 %5198
    %v5200 = vsub.f32 %v5192, %v5196
    %v5201 = vsub.f32 %v5193, %v5199
    %v5202 = vmul.f32 %v5200, 1.442695
    %v5203 = vpow.pop %v5202
    %v5204 = vmul.f32 %v5201, 1.442695
    %v5205 = vpow.pop %v5204
    %v5206 = vmul.f32 %v5203, %v76
    %v5207 = vmul.f32 %v5205, %v77
    %v5208 = vsel %vm825, %v5206, 0.0
    %5209 = vadd.xlane.f32.xlu0 %v5208
    %v5210 = vpop.xlane.xlu0 %5209
    %v5211 = vsel %vm825, %v5207, 0.0
    %5212 = vadd.xlane.f32.xlu0 %v5211
    %v5213 = vpop.xlane.xlu0 %5212
    %v5214 = vadd.f32 %v5210, 1e-16
    %v5215 = vadd.f32 %v5213, 1e-16
    %5216 = vrot.lane.b32.xlu0 %v2831, 32
    %v5217 = vpop.permute.xlu0 %5216
    %5218 = vrot.lane.b32.xlu0 %v2837, 32
    %v5219 = vpop.permute.xlu0 %5218
    %v5223 = vsel %vm825, %v5206, 0
    %v5226 = vsel %vm825, %v5207, 0
    %5228 = vmatprep.subr.mxu0 0.0
    %5229 = vmatpush1.msra.mxu0 %v5217
    %5230 = vmatprep.subr.mxu0 0.0
    %5231 = vmatpush1.msra.mxu0 %v5219
    %5232 = vmatprep.subr.mxu0 0.0
    %5233 = vmatpush1.msra.mxu0 0.0
    %5234 = vmatprep.subr.mxu0 0.0
    %5235 = vmatpush1.msra.mxu0 0.0
    %5236 = vmatprep.subr.mxu0 0.0
    %5237 = vmatpush1.msra.mxu0 0.0
    %5238 = vmatprep.subr.mxu0 0.0
    %5239 = vmatpush1.msra.mxu0 0.0
    %5240 = vmatprep.subr.mxu0 0.0
    %5241 = vmatpush1.msra.mxu0 0.0
    %5242 = vmatprep.subr.mxu0 0.0
    %5243 = vmatpush1.msra.mxu0 0.0
    %5244 = vmatprep.subr.mxu0 0.0
    %5245 = vmatpush1.msra.mxu0 0.0
    %5246 = vmatprep.subr.mxu0 0.0
    %5247 = vmatpush1.msra.mxu0 0.0
    %5248 = vmatprep.subr.mxu0 0.0
    %5249 = vmatpush1.msra.mxu0 0.0
    %5250 = vmatprep.subr.mxu0 0.0
    %5251 = vmatpush1.msra.mxu0 0.0
    %5252 = vmatprep.subr.mxu0 0.0
    %5253 = vmatpush1.msra.mxu0 0.0
    %5254 = vmatprep.subr.mxu0 0.0
    %5255 = vmatpush1.msra.mxu0 0.0
    %5256 = vmatprep.subr.mxu0 0.0
    %5257 = vmatpush1.msra.mxu0 0.0
    %5258 = vmatprep.subr.mxu0 0.0
    %5259 = vmatpush1.msra.mxu0 0.0
    %5260 = vmatprep.subr.mxu0 0.0
    %5261 = vmatpush1.msra.mxu0 0.0
    %5262 = vmatprep.subr.mxu0 0.0
    %5263 = vmatpush1.msra.mxu0 0.0
    %5264 = vmatprep.subr.mxu0 0.0
    %5265 = vmatpush1.msra.mxu0 0.0
    %5266 = vmatprep.subr.mxu0 0.0
    %5267 = vmatpush1.msra.mxu0 0.0
    %5268 = vmatprep.subr.mxu0 0.0
    %5269 = vmatpush1.msra.mxu0 0.0
    %5270 = vmatprep.subr.mxu0 0.0
    %5271 = vmatpush1.msra.mxu0 0.0
    %5272 = vmatprep.subr.mxu0 0.0
    %5273 = vmatpush1.msra.mxu0 0.0
    %5274 = vmatprep.subr.mxu0 0.0
    %5275 = vmatpush1.msra.mxu0 0.0
    %5276 = vmatprep.subr.mxu0 0.0
    %5277 = vmatpush1.msra.mxu0 0.0
    %5278 = vmatprep.subr.mxu0 0.0
    %5279 = vmatpush1.msra.mxu0 0.0
    %5280 = vmatprep.subr.mxu0 0.0
    %5281 = vmatpush1.msra.mxu0 0.0
    %5282 = vmatprep.subr.mxu0 0.0
    %5283 = vmatpush1.msra.mxu0 0.0
    %5284 = vmatprep.subr.mxu0 0.0
    %5285 = vmatpush1.msra.mxu0 0.0
    %5286 = vmatprep.subr.mxu0 0.0
    %5287 = vmatpush1.msra.mxu0 0.0
    %5288 = vmatprep.subr.mxu0 0.0
    %5289 = vmatpush1.msra.mxu0 0.0
    %5290 = vmatprep.subr.mxu0 0.0
    %5291 = vmatpush1.msra.mxu0 0.0
    %5292 = vmatprep.mubr.f32.mxu0 0.0
    %5293 = vmatmul.mubr.f32.gmra.mrb[0].mxu0 %v5223
    %v5294 = vpop.f32.mrb[0].mxu0
    %v5295 = vadd.f32 0.0, %v5294
    %v5296 = vpop.f32.mrb[0].mxu0
    %5297 = vmatprep.mubr.f32.mxu0 0.0
    %5298 = vmatmul.mubr.f32.gmra.mrb[0].mxu0 %v5226
    %v5299 = vpop.f32.mrb[0].mxu0
    %v5300 = vadd.f32 0.0, %v5299
    %v5301 = vpop.f32.mrb[0].mxu0
    %5302 = vdwg.mxu0
    %v5303 = vrcp.pop %v5214
    %v5304 = vrcp.pop %v5215
    %v5305 = vmul.f32 %v5295, %v5303
    %v5306 = vmul.f32 %v5300, %v5304
    %v5307 = vadd.f32 %v4733, %v5305
    %v5308 = vadd.f32 %v4734, %v5306
    %v5309 = vmul.f32 %v5307, %v2659
    %v5310 = vmul.f32 %v5308, %v2659
    %v5311 = vld [vmem:[%s11] sm:$0x1]
    %v5313 = vlaneseq
    %v5314 = vshrl.u32 %v5313, 7
    %v5315 = vsub.s32 0, %v5314
    %v5316 = vrot.slane %v5311, %v5315
    %v5318 = vadd.f32 %v5309, %v5316
    %v5319 = vadd.f32 %v5310, %v5316
    %v5320 = vsel %vm521, %v5318, 0.0
    %v5321 = vsel %vm521, %v5319, 0.0
    %v5322 = vadd.f32 %v5320, %v5321
    %5323 = vadd.xlane.f32.xlu0 %v5322
    %v5324 = vpop.xlane.xlu0 %5323
    %v5325 = vrot.slane %v5324, 4
    %v5326 = vadd.f32 %v5324, %v5325
    %v5327 = vrot.slane %v5326, 2
    %v5328 = vadd.f32 %v5326, %v5327
    %v5329 = vrot.slane %v5328, 1
    %v5330 = vadd.f32 %v5328, %v5329
    %s5331 = vtos %v5330
    %v5332 = vrcp.pop 512.0
    %s5333 = vtos %v5332
    %s5334 = smul.f32 %s5331, %s5333
    %v5335 = vstv %s5334
    %v5336 = vsub.f32 %v5318, %v5335
    %v5337 = vsub.f32 %v5319, %v5335
    %v5338 = vmul.f32 %v5336, %v5336
    %v5339 = vmul.f32 %v5337, %v5337
    %v5340 = vsel %vm521, %v5338, 0.0
    %v5341 = vsel %vm521, %v5339, 0.0
    %v5342 = vadd.f32 %v5340, %v5341
    %5343 = vadd.xlane.f32.xlu0 %v5342
    %v5344 = vpop.xlane.xlu0 %5343
    %v5345 = vrot.slane %v5344, 4
    %v5346 = vadd.f32 %v5344, %v5345
    %v5347 = vrot.slane %v5346, 2
    %v5348 = vadd.f32 %v5346, %v5347
    %v5349 = vrot.slane %v5348, 1
    %v5350 = vadd.f32 %v5348, %v5349
    %s5351 = vtos %v5350
    %v5352 = vrcp.pop 512.0
    %s5353 = vtos %v5352
    %s5354 = smul.f32 %s5351, %s5353
    %v5355 = vstv %s5354
    %v5356 = vrsqrt.pop %v5355
    %v5357 = vmul.f32 %v5355, %v5356
    %vm5358 = vcmp.eq.f32.partialorder %v5355, inf
    %v5359 = vsel %vm5358, %v5355, %v5357
    %vm5360 = vcmp.eq.f32.partialorder %v5355, 0.0
    %v5361 = vand.u32 %v5355, 2147483648
    %v5362 = vsel %vm5360, %v5361, %v5359
    %s5363 = vtos %v5362
    %s5364 = sadd.f32 %s5363, 1e-05
    %v5365 = vstv %s5364
    %v5366 = vrcp.pop %v5365
    %v5367 = vmul.f32 %v5336, %v5366
    %v5368 = vmul.f32 %v5337, %v5366
    %v5369 = vld [vmem:[%s12] sm:$0x1]
    %v5371 = vlaneseq
    %v5372 = vshrl.u32 %v5371, 7
    %v5373 = vsub.s32 0, %v5372
    %v5374 = vrot.slane %v5369, %v5373
    %v5376 = vmul.f32 %v5367, %v5374
    %v5377 = vmul.f32 %v5368, %v5374
    %v5378 = vld [vmem:[%s13] sm:$0x1]
    %v5380 = vlaneseq
    %v5381 = vshrl.u32 %v5380, 7
    %v5382 = vsub.s32 0, %v5381
    %v5383 = vrot.slane %v5378, %v5382
    %v5385 = vadd.f32 %v5376, %v5383
    %v5386 = vadd.f32 %v5377, %v5383
    %5387 = vst.msk [vmem:[#allocation7] sm:$0xff] %vm521, %v5385
    %5388 = vst.msk [vmem:[#allocation7 + $0x8] sm:$0xff] %vm521, %v5386
    // Predicated region
    $region66: #{tpu_custom_call.1} parent=1 // pred_check
      _
    $region67: #{tpu_custom_call.1} parent=1 // pred_check_branch
      %5390 = sbr.rel (0) target = $region69
    $region68: #{tpu_custom_call.1} parent=1 // pred_region
      %s5392 = ssub.s32 256, 256
      %5393 = vsyncadd [#allocation4], %s5392
      %s5394 = sshll.u32 [#allocation7], 4
      %s5395 = int_to_ptr.vmem [resolvable:$true] %s5394
      %5400 = dma.vmem_to_hbm [thread:$0]  %s5395, 256, %s14, [#allocation4], 128, 128, 8
    $region69: #{tpu_custom_call.1} parent=1 // pred_fallthru
      _
    // Predicated region
    $region70: #{tpu_custom_call.1} parent=1 // pred_check
      _
    $region71: #{tpu_custom_call.1} parent=1 // pred_check_branch
      %5402 = sbr.rel (0) target = $region73
    $region72: #{tpu_custom_call.1} parent=1 // pred_region
      %5403 = dma.done [#allocation4], 256
    $region73: #{tpu_custom_call.1} parent=1 // pred_fallthru
      _
    %5404 = vsyncpa [#allocation3], 1
    %5405 = vsyncpa [#allocation6], 1
    %5406 = vsyncpa [#allocation4], 1

</llo_original>
